<compile_context>
chip_gen: v5e
topology: v5e:2x2
jax: 0.10.0
libtpu: 0.0.40
codegen_flags: <defaults>
</compile_context>

<pallas_src>
import functools

import jax
import jax.numpy as jnp
from jax.experimental import pallas as pl
from jax.experimental.pallas import tpu as pltpu


def _geo_enc_kernel(lmd_ref, lon_ref, lat_ref, wsel_ref, vsel_ref, off_ref,
                    x_ref, o_ref):
    # lmd_ref : (1, 1) SMEM        -> 0.5 * lmd (folded on host)
    # lon_ref : (tm, kfold)        -> packed per-row longitudes
    # lat_ref : (tm, kfold)        -> packed per-row latitudes
    # wsel_ref: (kfold, L)         -> 1/w(k) on lanes of row-group j, 0 elsewhere
    # vsel_ref: (kfold, L)         -> 1/v(k) on lanes of row-group j, 0 elsewhere
    # off_ref : (1, L)             -> 0 on even channels, pi/2 on odd (cos = sin(t+pi/2))
    # x_ref/o_ref: (tm, L)         -> lane-packed features, L = kfold * D
    kfold = lon_ref.shape[-1]
    lon = lon_ref[...]
    lat = lat_ref[...]
    off = off_ref[...]

    phase_lon = off
    phase_lat = off
    for j in range(kfold):  # static, tiny unrolled loop (kfold = 4 for D = 32)
        phase_lon = phase_lon + lon[:, j:j + 1] * wsel_ref[j:j + 1, :]
        phase_lat = phase_lat + lat[:, j:j + 1] * vsel_ref[j:j + 1, :]

    pe = jnp.sin(phase_lon) + jnp.sin(phase_lat)   # 2 EUP transcendentals / element
    half_lmd = lmd_ref[0, 0]
    o_ref[...] = x_ref[...] + pe * half_lmd


def _round_up(a, b):
    return ((a + b - 1) // b) * b


@functools.partial(jax.jit, static_argnames=("constant", "block_rows"))
def geolocational_encoding(x, lon, lat, lmd, *, constant=100, block_rows=1024):
    """x: (B, H, W, D) f32, lon/lat: (B, H, W), lmd: scalar f32 parameter."""
    B, H, W, D = x.shape
    rows = B * H * W

    # Lane-dense packing factor: fold kfold consecutive rows into the lane dim.
    kfold = 128 // D if (D < 128 and 128 % D == 0) else 1
    L = kfold * D

    rows_p = pl.cdiv(rows, kfold)            # packed rows (Python int)
    tm = block_rows                          # packed rows per tile
    if rows_p <= tm:
        tm = _round_up(max(rows_p, 1), 8)    # single tile; keep sublane rule
    ntiles = pl.cdiv(rows_p, tm)
    rows_p_pad = ntiles * tm
    rows_pad = rows_p_pad * kfold

    xf = x.reshape(rows, D).astype(jnp.float32)
    lonf = lon.reshape(rows).astype(jnp.float32)
    latf = lat.reshape(rows).astype(jnp.float32)
    pad = rows_pad - rows
    if pad:
        xf = jnp.pad(xf, ((0, pad), (0, 0)))
        lonf = jnp.pad(lonf, (0, pad))
        latf = jnp.pad(latf, (0, pad))

    x2 = xf.reshape(rows_p_pad, L)
    lon2 = lonf.reshape(rows_p_pad, kfold)
    lat2 = latf.reshape(rows_p_pad, kfold)

    # Host-precomputed, loop-invariant per-lane coefficient vectors.
    k = jnp.arange(D, dtype=jnp.float32)
    inv_w = jnp.float32(constant) ** (-(k / D))                 # 1 / w(k)
    inv_v = jnp.float32(constant) ** (-((D - k - 1.0) / D))     # 1 / v(k)
    inv_w_t = jnp.tile(inv_w, kfold)                            # (L,)
    inv_v_t = jnp.tile(inv_v, kfold)                            # (L,)
    lane = jnp.arange(L)
    sel = ((lane // D)[None, :] == jnp.arange(kfold)[:, None]).astype(jnp.float32)
    wsel = sel * inv_w_t[None, :]                               # (kfold, L)
    vsel = sel * inv_v_t[None, :]                               # (kfold, L)
    off = jnp.where((lane % D) % 2 == 0, 0.0, jnp.pi / 2.0)
    off = off.astype(jnp.float32).reshape(1, L)

    half_lmd = (0.5 * jnp.asarray(lmd, jnp.float32)).reshape(1, 1)

    out2 = pl.pallas_call(
        _geo_enc_kernel,
        out_shape=jax.ShapeDtypeStruct((rows_p_pad, L), jnp.float32),
        grid=(ntiles,),
        in_specs=[
            pl.BlockSpec(memory_space=pltpu.MemorySpace.SMEM),   # 0.5*lmd (1,1)
            pl.BlockSpec((tm, kfold), lambda i: (i, 0)),         # lon (packed)
            pl.BlockSpec((tm, kfold), lambda i: (i, 0)),         # lat (packed)
            pl.BlockSpec((kfold, L), lambda i: (0, 0)),          # 1/w selection
            pl.BlockSpec((kfold, L), lambda i: (0, 0)),          # 1/v selection
            pl.BlockSpec((1, L), lambda i: (0, 0)),              # parity offset
            pl.BlockSpec((tm, L), lambda i: (i, 0)),             # x (lane-packed)
        ],
        out_specs=pl.BlockSpec((tm, L), lambda i: (i, 0)),
        compiler_params=pltpu.CompilerParams(
            dimension_semantics=("parallel",)),
    )(half_lmd, lon2, lat2, wsel, vsel, off, x2)

    out = out2.reshape(rows_pad, D)[:rows].reshape(B, H, W, D)
    return out.astype(x.dtype)


def _reference(x, lon, lat, lmd, constant=100):
    """Pure-JAX mirror of the PyTorch forward pass."""
    D = x.shape[-1]
    k = jnp.arange(D, dtype=jnp.float32)
    w = jnp.float32(constant) ** (k / D)
    v = jnp.float32(constant) ** ((D - k - 1.0) / D)
    ph_lon = lon[..., None] / w
    ph_lat = lat[..., None] / v
    even = (jnp.arange(D) % 2) == 0
    pe = jnp.where(even,
                   jnp.sin(ph_lon) + jnp.sin(ph_lat),
                   jnp.cos(ph_lon) + jnp.cos(ph_lat))
    return x + (pe / 2.0) * lmd


if __name__ == "__main__":
    key = jax.random.PRNGKey(0)
    B, H, W, D = 2, 16, 16, 32      # d_model = 32

    kx, klon, klat = jax.random.split(key, 3)
    x = jax.random.normal(kx, (B, H, W, D), dtype=jnp.float32)
    lon = jax.random.uniform(klon, (B, H, W), minval=-180.0, maxval=180.0)
    lat = jax.random.uniform(klat, (B, H, W), minval=-90.0, maxval=90.0)

    # Deterministic parameter init (matches nn.Parameter(torch.tensor(10000.0))).
    lmd = jnp.float32(10000.0)

    out = geolocational_encoding(x, lon, lat, lmd, constant=100)
    out = jax.block_until_ready(out)
    ref = _reference(x, lon, lat, lmd, constant=100)
    assert out.shape == (B, H, W, D)

    # Scale-aware tolerance: pe error of a few 1e-5 (f32 sin on ~180-rad args,
    # reciprocal-vs-divide rounding) is amplified by lmd/2 = 5000.
    scale = 0.5 * float(abs(lmd))
    assert jnp.allclose(out, ref, rtol=2e-3, atol=2e-3 * max(scale, 1.0)), \
        "mismatch vs. JAX reference (lmd=10000)"

    # Un-amplified structural check (tight absolute tolerance).
    lmd_small = jnp.float32(2.0)
    out_s = jax.block_until_ready(
        geolocational_encoding(x, lon, lat, lmd_small, constant=100))
    ref_s = _reference(x, lon, lat, lmd_small, constant=100)
    assert jnp.allclose(out_s, ref_s, rtol=1e-3, atol=1e-2), \
        "mismatch vs. JAX reference (lmd=2)"

    print("KERNEL_OK")
</pallas_src>

<mosaic_0001>
module attributes {stable_mosaic.version = 11 : i64} {
  func.func @_geo_enc_kernel(%arg0: i32, %arg1: memref<1x1xf32, #tpu.memory_space<smem>>, %arg2: memref<128x4xf32, #tpu.memory_space<vmem>>, %arg3: memref<128x4xf32, #tpu.memory_space<vmem>>, %arg4: memref<4x128xf32, #tpu.memory_space<vmem>>, %arg5: memref<4x128xf32, #tpu.memory_space<vmem>>, %arg6: memref<1x128xf32, #tpu.memory_space<vmem>>, %arg7: memref<128x128xf32, #tpu.memory_space<vmem>>, %arg8: memref<128x128xf32, #tpu.memory_space<vmem>>) attributes {dimension_semantics = [#tpu.dimension_semantics<parallel>], iteration_bounds = array<i64: 1>, scalar_prefetch = 0 : i64, scratch_operands = 0 : i64, tpu.core_type = #tpu.core_type<tc>, window_params = [{transform_indices = @transform_0, window_bounds = array<i64: 1, 1>}, {transform_indices = @transform_1, window_bounds = array<i64: 128, 4>}, {transform_indices = @transform_2, window_bounds = array<i64: 128, 4>}, {pipeline_mode = #tpu.pipeline_mode<synchronous>, transform_indices = @transform_3, window_bounds = array<i64: 4, 128>}, {pipeline_mode = #tpu.pipeline_mode<synchronous>, transform_indices = @transform_4, window_bounds = array<i64: 4, 128>}, {pipeline_mode = #tpu.pipeline_mode<synchronous>, transform_indices = @transform_5, window_bounds = array<i64: 1, 128>}, {transform_indices = @transform_6, window_bounds = array<i64: 128, 128>}, {transform_indices = @transform_7, window_bounds = array<i64: 128, 128>}]} {
    %c0 = arith.constant 0 : index
    %c0_0 = arith.constant 0 : index
    %0 = vector.load %arg2[%c0, %c0_0] : memref<128x4xf32, #tpu.memory_space<vmem>>, vector<128x4xf32>
    %c0_1 = arith.constant 0 : index
    %c0_2 = arith.constant 0 : index
    %1 = vector.load %arg3[%c0_1, %c0_2] : memref<128x4xf32, #tpu.memory_space<vmem>>, vector<128x4xf32>
    %c0_3 = arith.constant 0 : index
    %c0_4 = arith.constant 0 : index
    %2 = vector.load %arg6[%c0_3, %c0_4] : memref<1x128xf32, #tpu.memory_space<vmem>>, vector<1x128xf32>
    %3 = vector.extract_strided_slice %0 {offsets = [0, 0], sizes = [128, 1], strides = [1, 1]} : vector<128x4xf32> to vector<128x1xf32>
    %c0_5 = arith.constant 0 : index
    %c0_6 = arith.constant 0 : index
    %4 = vector.load %arg4[%c0_5, %c0_6] : memref<4x128xf32, #tpu.memory_space<vmem>>, vector<1x128xf32>
    %5 = vector.broadcast %3 : vector<128x1xf32> to vector<128x128xf32>
    %6 = vector.broadcast %4 : vector<1x128xf32> to vector<128x128xf32>
    %7 = arith.mulf %5, %6 : vector<128x128xf32>
    %8 = vector.broadcast %2 : vector<1x128xf32> to vector<128x128xf32>
    %9 = arith.addf %8, %7 : vector<128x128xf32>
    %10 = vector.extract_strided_slice %1 {offsets = [0, 0], sizes = [128, 1], strides = [1, 1]} : vector<128x4xf32> to vector<128x1xf32>
    %c0_7 = arith.constant 0 : index
    %c0_8 = arith.constant 0 : index
    %11 = vector.load %arg5[%c0_7, %c0_8] : memref<4x128xf32, #tpu.memory_space<vmem>>, vector<1x128xf32>
    %12 = vector.broadcast %10 : vector<128x1xf32> to vector<128x128xf32>
    %13 = vector.broadcast %11 : vector<1x128xf32> to vector<128x128xf32>
    %14 = arith.mulf %12, %13 : vector<128x128xf32>
    %15 = vector.broadcast %2 : vector<1x128xf32> to vector<128x128xf32>
    %16 = arith.addf %15, %14 : vector<128x128xf32>
    %17 = vector.extract_strided_slice %0 {offsets = [0, 1], sizes = [128, 1], strides = [1, 1]} : vector<128x4xf32> to vector<128x1xf32>
    %c1 = arith.constant 1 : index
    %c0_9 = arith.constant 0 : index
    %18 = vector.load %arg4[%c1, %c0_9] : memref<4x128xf32, #tpu.memory_space<vmem>>, vector<1x128xf32>
    %19 = vector.broadcast %17 : vector<128x1xf32> to vector<128x128xf32>
    %20 = vector.broadcast %18 : vector<1x128xf32> to vector<128x128xf32>
    %21 = arith.mulf %19, %20 : vector<128x128xf32>
    %22 = arith.addf %9, %21 : vector<128x128xf32>
    %23 = vector.extract_strided_slice %1 {offsets = [0, 1], sizes = [128, 1], strides = [1, 1]} : vector<128x4xf32> to vector<128x1xf32>
    %c1_10 = arith.constant 1 : index
    %c0_11 = arith.constant 0 : index
    %24 = vector.load %arg5[%c1_10, %c0_11] : memref<4x128xf32, #tpu.memory_space<vmem>>, vector<1x128xf32>
    %25 = vector.broadcast %23 : vector<128x1xf32> to vector<128x128xf32>
    %26 = vector.broadcast %24 : vector<1x128xf32> to vector<128x128xf32>
    %27 = arith.mulf %25, %26 : vector<128x128xf32>
    %28 = arith.addf %16, %27 : vector<128x128xf32>
    %29 = vector.extract_strided_slice %0 {offsets = [0, 2], sizes = [128, 1], strides = [1, 1]} : vector<128x4xf32> to vector<128x1xf32>
    %c2 = arith.constant 2 : index
    %c0_12 = arith.constant 0 : index
    %30 = vector.load %arg4[%c2, %c0_12] : memref<4x128xf32, #tpu.memory_space<vmem>>, vector<1x128xf32>
    %31 = vector.broadcast %29 : vector<128x1xf32> to vector<128x128xf32>
    %32 = vector.broadcast %30 : vector<1x128xf32> to vector<128x128xf32>
    %33 = arith.mulf %31, %32 : vector<128x128xf32>
    %34 = arith.addf %22, %33 : vector<128x128xf32>
    %35 = vector.extract_strided_slice %1 {offsets = [0, 2], sizes = [128, 1], strides = [1, 1]} : vector<128x4xf32> to vector<128x1xf32>
    %c2_13 = arith.constant 2 : index
    %c0_14 = arith.constant 0 : index
    %36 = vector.load %arg5[%c2_13, %c0_14] : memref<4x128xf32, #tpu.memory_space<vmem>>, vector<1x128xf32>
    %37 = vector.broadcast %35 : vector<128x1xf32> to vector<128x128xf32>
    %38 = vector.broadcast %36 : vector<1x128xf32> to vector<128x128xf32>
    %39 = arith.mulf %37, %38 : vector<128x128xf32>
    %40 = arith.addf %28, %39 : vector<128x128xf32>
    %41 = vector.extract_strided_slice %0 {offsets = [0, 3], sizes = [128, 1], strides = [1, 1]} : vector<128x4xf32> to vector<128x1xf32>
    %c3 = arith.constant 3 : index
    %c0_15 = arith.constant 0 : index
    %42 = vector.load %arg4[%c3, %c0_15] : memref<4x128xf32, #tpu.memory_space<vmem>>, vector<1x128xf32>
    %43 = vector.broadcast %41 : vector<128x1xf32> to vector<128x128xf32>
    %44 = vector.broadcast %42 : vector<1x128xf32> to vector<128x128xf32>
    %45 = arith.mulf %43, %44 : vector<128x128xf32>
    %46 = arith.addf %34, %45 : vector<128x128xf32>
    %47 = vector.extract_strided_slice %1 {offsets = [0, 3], sizes = [128, 1], strides = [1, 1]} : vector<128x4xf32> to vector<128x1xf32>
    %c3_16 = arith.constant 3 : index
    %c0_17 = arith.constant 0 : index
    %48 = vector.load %arg5[%c3_16, %c0_17] : memref<4x128xf32, #tpu.memory_space<vmem>>, vector<1x128xf32>
    %49 = vector.broadcast %47 : vector<128x1xf32> to vector<128x128xf32>
    %50 = vector.broadcast %48 : vector<1x128xf32> to vector<128x128xf32>
    %51 = arith.mulf %49, %50 : vector<128x128xf32>
    %52 = arith.addf %40, %51 : vector<128x128xf32>
    %53 = math.sin %46 : vector<128x128xf32>
    %54 = math.sin %52 : vector<128x128xf32>
    %55 = arith.addf %53, %54 : vector<128x128xf32>
    %c0_18 = arith.constant 0 : index
    %c0_19 = arith.constant 0 : index
    %56 = memref.load %arg1[%c0_18, %c0_19] : memref<1x1xf32, #tpu.memory_space<smem>>
    %c0_20 = arith.constant 0 : index
    %c0_21 = arith.constant 0 : index
    %57 = vector.load %arg7[%c0_20, %c0_21] : memref<128x128xf32, #tpu.memory_space<vmem>>, vector<128x128xf32>
    %58 = vector.broadcast %56 : f32 to vector<128x128xf32>
    %59 = arith.mulf %55, %58 : vector<128x128xf32>
    %60 = arith.addf %57, %59 : vector<128x128xf32>
    %c0_22 = arith.constant 0 : index
    %c0_23 = arith.constant 0 : index
    %61 = vector.load %arg8[%c0_22, %c0_23] : memref<128x128xf32, #tpu.memory_space<vmem>>, vector<128x128xf32>
    tpu.vector_store %arg8[%c0_22, %c0_23], %60 {strides = array<i32>} : memref<128x128xf32, #tpu.memory_space<vmem>>, vector<128x128xf32>,
    return
  }
  func.func @transform_0(%arg0: i32) -> (i32, i32) {
    %c0_i32 = arith.constant 0 : i32
    %c0_i32_0 = arith.constant 0 : i32
    %c0_i32_1 = arith.constant 0 : i32
    return %c0_i32, %c0_i32_0 : i32, i32
  }
  func.func @transform_1(%arg0: i32) -> (i32, i32) {
    %c0_i32 = arith.constant 0 : i32
    %c0_i32_0 = arith.constant 0 : i32
    return %arg0, %c0_i32 : i32, i32
  }
  func.func @transform_2(%arg0: i32) -> (i32, i32) {
    %c0_i32 = arith.constant 0 : i32
    %c0_i32_0 = arith.constant 0 : i32
    return %arg0, %c0_i32 : i32, i32
  }
  func.func @transform_3(%arg0: i32) -> (i32, i32) {
    %c0_i32 = arith.constant 0 : i32
    %c0_i32_0 = arith.constant 0 : i32
    %c0_i32_1 = arith.constant 0 : i32
    return %c0_i32, %c0_i32_0 : i32, i32
  }
  func.func @transform_4(%arg0: i32) -> (i32, i32) {
    %c0_i32 = arith.constant 0 : i32
    %c0_i32_0 = arith.constant 0 : i32
    %c0_i32_1 = arith.constant 0 : i32
    return %c0_i32, %c0_i32_0 : i32, i32
  }
  func.func @transform_5(%arg0: i32) -> (i32, i32) {
    %c0_i32 = arith.constant 0 : i32
    %c0_i32_0 = arith.constant 0 : i32
    %c0_i32_1 = arith.constant 0 : i32
    return %c0_i32, %c0_i32_0 : i32, i32
  }
  func.func @transform_6(%arg0: i32) -> (i32, i32) {
    %c0_i32 = arith.constant 0 : i32
    %c0_i32_0 = arith.constant 0 : i32
    return %arg0, %c0_i32 : i32, i32
  }
  func.func @transform_7(%arg0: i32) -> (i32, i32) {
    %c0_i32 = arith.constant 0 : i32
    %c0_i32_0 = arith.constant 0 : i32
    return %arg0, %c0_i32 : i32, i32
  }
}

</mosaic_0001>

<llo_original>
// kernel: tile.17
$region0: #{tile.17}
  #allocation0 [shape = 's32[1]{0}', space=sflag, size = 0x4, scoped, tag = 'scoped memory for tile.17']
  %s0 = inlined_call_operand.vmem [shape: f32[32], index: 0, kind: input, shape index: {}]
  %s1 = inlined_call_operand.vmem [shape: f32[4,32], index: 1, kind: output, shape index: {}]
  // Predicated region
  $region2: #{tile.17} parent=0 // pred_check
    _
  $region3: #{tile.17} parent=0 // pred_check_branch
    %3 = sbr.rel (0) target = $region5
  $region4: #{tile.17} parent=0 // pred_region
    _
  $region5: #{tile.17} parent=0 // pred_fallthru
    _
  %v4 = vld [vmem:[%s0] ss:$0 sm:$0xff]
  %5 = vst [vmem:[%s1] sm:$0xf] %v4

// kernel: mul.14
$region0: #{mul.14}
  %s0 = inlined_call_operand.vmem [shape: f32[4,32], index: 0, kind: input, shape index: {}]
  %s1 = inlined_call_operand.vmem [shape: f32[128], index: 1, kind: output, shape index: {}]
  $region1: #{mul.14} parent=0
    #allocation0 [shape = 'u8[4096]{0}', space=vmem, size = 0x1000, scoped, tag = 'scoped mem for output reshape']
    #allocation1 [shape = 'u8[4096]{0}', space=vmem, size = 0x1000, scoped, tag = 'scoped mem for input reshape']
    %s3 = ssub.s32 16, 1
    %v4 = vld [vmem:[%s0] sm:%s3]
    %5 = vst [vmem:[#allocation1] sm:%s3] %v4
    %v6 = vld [vmem:[#allocation1] sm:$0x1]
    %vm7 = vcmask 261120
    %8 = vst.msk [vmem:[#allocation0] sm:$0x1] %vm7, %v6
    %s9 = scalar_lea.vmem [#allocation1], 3
    %v10 = vld [vmem:[%s9] sm:$0x1]
    %11 = vrot.lane.b32.xlu0 %v10, 96
    %v12 = vpop.permute.xlu0 %11
    %vm13 = vcmask 1048320
    %14 = vst.msk [vmem:[#allocation0] sm:$0x1] %vm13, %v12
    %s15 = scalar_lea.vmem [#allocation1], 2
    %v16 = vld [vmem:[%s15] sm:$0x1]
    %17 = vrot.lane.b32.xlu0 %v16, 64
    %v18 = vpop.permute.xlu0 %17
    %vm19 = vcmask 785920
    %20 = vst.msk [vmem:[#allocation0] sm:$0x1] %vm19, %v18
    %s21 = scalar_lea.vmem [#allocation1], 1
    %v22 = vld [vmem:[%s21] sm:$0x1]
    %23 = vrot.lane.b32.xlu0 %v22, 32
    %v24 = vpop.permute.xlu0 %23
    %vm25 = vcmask 523520
    %26 = vst.msk [vmem:[#allocation0] sm:$0x1] %vm25, %v24
    %s28 = ssub.s32 2, 1
    %v29 = vld [vmem:[#allocation0] sm:%s28]
    %s31 = ssub.s32 2, 1
    %32 = vst [vmem:[%s1] sm:%s31] %v29

// kernel: geolocational_encoding.1
$region0: #{geolocational_encoding.1}
  #allocation0 [shape = 'u32[]', space=smem, size = 0x4, offset = 0x4, fixed_abs, tag = 'smem constant byte address 0x4 - core index']
  #allocation1 [shape = 'u32[72,128]{1,0:T(1,128)}', space=vmem, size = 0x9000, scoped, tag = 'internal scratch']
  #allocation2 [shape = 'f32[1,1]{1,0:T(1,128)S(6)}', space=smem, size = 0x200, scoped, tag = 'scoped memory for geolocational_encoding.1']
  %s0 = inlined_call_operand.<no memory space> [shape: f32[1,1], index: 0, kind: input, shape index: {}]
  %s1 = inlined_call_operand.vmem [shape: f32[128,4], index: 1, kind: input, shape index: {}]
  %s2 = inlined_call_operand.vmem [shape: f32[128,4], index: 2, kind: input, shape index: {}]
  %s3 = inlined_call_operand.vmem [shape: f32[4,128], index: 3, kind: input, shape index: {}]
  %s4 = inlined_call_operand.vmem [shape: f32[4,128], index: 4, kind: input, shape index: {}]
  %s5 = inlined_call_operand.vmem [shape: f32[1,128], index: 5, kind: input, shape index: {}]
  %s6 = inlined_call_operand.vmem [shape: f32[128,128], index: 6, kind: input, shape index: {}]
  %s7 = inlined_call_operand.vmem [shape: f32[128,128], index: 7, kind: output, shape index: {}]
  %s8 = sld [smem:[#allocation0]]
  $region38: #{geolocational_encoding.1} parent=0
    _
  %s10 = ssub.s32 1, %s8
  %s11 = scalar_select 0, %s10, %s8
  %12 = sst [smem:[#allocation2]] %s0
  // Predicated region
  $region2: #{geolocational_encoding.1} parent=0 // pred_check
    _
  $region3: #{geolocational_encoding.1} parent=0 // pred_check_branch
    %14 = sbr.rel (0) target = $region5
  $region4: #{geolocational_encoding.1} parent=0 // pred_region
    _
  $region5: #{geolocational_encoding.1} parent=0 // pred_fallthru
    _
  // Predicated region
  $region6: #{geolocational_encoding.1} parent=0 // pred_check
    _
  $region7: #{geolocational_encoding.1} parent=0 // pred_check_branch
    %16 = sbr.rel (0) target = $region9
  $region8: #{geolocational_encoding.1} parent=0 // pred_region
    _
  $region9: #{geolocational_encoding.1} parent=0 // pred_fallthru
    _
  // Predicated region
  $region10: #{geolocational_encoding.1} parent=0 // pred_check
    _
  $region11: #{geolocational_encoding.1} parent=0 // pred_check_branch
    %18 = sbr.rel (0) target = $region13
  $region12: #{geolocational_encoding.1} parent=0 // pred_region
    _
  $region13: #{geolocational_encoding.1} parent=0 // pred_fallthru
    _
  // Predicated region
  $region14: #{geolocational_encoding.1} parent=0 // pred_check
    _
  $region15: #{geolocational_encoding.1} parent=0 // pred_check_branch
    %20 = sbr.rel (0) target = $region17
  $region16: #{geolocational_encoding.1} parent=0 // pred_region
    _
  $region17: #{geolocational_encoding.1} parent=0 // pred_fallthru
    _
  // Predicated region
  $region18: #{geolocational_encoding.1} parent=0 // pred_check
    _
  $region19: #{geolocational_encoding.1} parent=0 // pred_check_branch
    %22 = sbr.rel (0) target = $region21
  $region20: #{geolocational_encoding.1} parent=0 // pred_region
    _
  $region21: #{geolocational_encoding.1} parent=0 // pred_fallthru
    _
  // Predicated region
  $region22: #{geolocational_encoding.1} parent=0 // pred_check
    _
  $region23: #{geolocational_encoding.1} parent=0 // pred_check_branch
    %24 = sbr.rel (0) target = $region25
  $region24: #{geolocational_encoding.1} parent=0 // pred_region
    _
  $region25: #{geolocational_encoding.1} parent=0 // pred_fallthru
    _
  // Predicated region
  $region26: #{geolocational_encoding.1} parent=0 // pred_check
    _
  $region27: #{geolocational_encoding.1} parent=0 // pred_check_branch
    %26 = sbr.rel (0) target = $region29
  $region28: #{geolocational_encoding.1} parent=0 // pred_region
    _
  $region29: #{geolocational_encoding.1} parent=0 // pred_fallthru
    _
  %v27 = vld [vmem:[%s1] sm:$0xff]
  %v28 = vld [vmem:[%s1 + $0x8] sm:$0xff]
  %v29 = vld [vmem:[%s1 + $0x10] sm:$0xff]
  %v30 = vld [vmem:[%s1 + $0x18] sm:$0xff]
  %v31 = vld [vmem:[%s1 + $0x20] sm:$0xff]
  %v32 = vld [vmem:[%s1 + $0x28] sm:$0xff]
  %v33 = vld [vmem:[%s1 + $0x30] sm:$0xff]
  %v34 = vld [vmem:[%s1 + $0x38] sm:$0xff]
  %v35 = vld [vmem:[%s1 + $0x40] sm:$0xff]
  %v36 = vld [vmem:[%s1 + $0x48] sm:$0xff]
  %v37 = vld [vmem:[%s1 + $0x50] sm:$0xff]
  %v38 = vld [vmem:[%s1 + $0x58] sm:$0xff]
  %v39 = vld [vmem:[%s1 + $0x60] sm:$0xff]
  %v40 = vld [vmem:[%s1 + $0x68] sm:$0xff]
  %v41 = vld [vmem:[%s1 + $0x70] sm:$0xff]
  %v42 = vld [vmem:[%s1 + $0x78] sm:$0xff]
  %v43 = vld [vmem:[%s2] sm:$0xff]
  %v44 = vld [vmem:[%s2 + $0x8] sm:$0xff]
  %v45 = vld [vmem:[%s2 + $0x10] sm:$0xff]
  %v46 = vld [vmem:[%s2 + $0x18] sm:$0xff]
  %v47 = vld [vmem:[%s2 + $0x20] sm:$0xff]
  %v48 = vld [vmem:[%s2 + $0x28] sm:$0xff]
  %v49 = vld [vmem:[%s2 + $0x30] sm:$0xff]
  %v50 = vld [vmem:[%s2 + $0x38] sm:$0xff]
  %v51 = vld [vmem:[%s2 + $0x40] sm:$0xff]
  %v52 = vld [vmem:[%s2 + $0x48] sm:$0xff]
  %v53 = vld [vmem:[%s2 + $0x50] sm:$0xff]
  %v54 = vld [vmem:[%s2 + $0x58] sm:$0xff]
  %v55 = vld [vmem:[%s2 + $0x60] sm:$0xff]
  %v56 = vld [vmem:[%s2 + $0x68] sm:$0xff]
  %v57 = vld [vmem:[%s2 + $0x70] sm:$0xff]
  %v58 = vld [vmem:[%s2 + $0x78] sm:$0xff]
  %v59 = vld [vmem:[%s5] sm:$0x1]
  %v60 = vld [vmem:[%s3] sm:$0x1]
  %62 = vset.pattern.permute.xlu0 0
  %63 = vperm.xlu0 %62, %v27
  %v64 = vpop.permute.xlu0 %63
  %67 = vset.pattern.permute.xlu0 0
  %68 = vperm.xlu0 %67, %v28
  %v69 = vpop.permute.xlu0 %68
  %72 = vset.pattern.permute.xlu0 0
  %73 = vperm.xlu0 %72, %v29
  %v74 = vpop.permute.xlu0 %73
  %77 = vset.pattern.permute.xlu0 0
  %78 = vperm.xlu0 %77, %v30
  %v79 = vpop.permute.xlu0 %78
  %82 = vset.pattern.permute.xlu0 0
  %83 = vperm.xlu0 %82, %v31
  %v84 = vpop.permute.xlu0 %83
  %87 = vset.pattern.permute.xlu0 0
  %88 = vperm.xlu0 %87, %v32
  %v89 = vpop.permute.xlu0 %88
  %92 = vset.pattern.permute.xlu0 0
  %93 = vperm.xlu0 %92, %v33
  %v94 = vpop.permute.xlu0 %93
  %97 = vset.pattern.permute.xlu0 0
  %98 = vperm.xlu0 %97, %v34
  %v99 = vpop.permute.xlu0 %98
  %102 = vset.pattern.permute.xlu0 0
  %103 = vperm.xlu0 %102, %v35
  %v104 = vpop.permute.xlu0 %103
  %107 = vset.pattern.permute.xlu0 0
  %108 = vperm.xlu0 %107, %v36
  %v109 = vpop.permute.xlu0 %108
  %112 = vset.pattern.permute.xlu0 0
  %113 = vperm.xlu0 %112, %v37
  %v114 = vpop.permute.xlu0 %113
  %117 = vset.pattern.permute.xlu0 0
  %118 = vperm.xlu0 %117, %v38
  %v119 = vpop.permute.xlu0 %118
  %122 = vset.pattern.permute.xlu0 0
  %123 = vperm.xlu0 %122, %v39
  %v124 = vpop.permute.xlu0 %123
  %127 = vset.pattern.permute.xlu0 0
  %128 = vperm.xlu0 %127, %v40
  %v129 = vpop.permute.xlu0 %128
  %132 = vset.pattern.permute.xlu0 0
  %133 = vperm.xlu0 %132, %v41
  %v134 = vpop.permute.xlu0 %133
  %137 = vset.pattern.permute.xlu0 0
  %138 = vperm.xlu0 %137, %v42
  %v139 = vpop.permute.xlu0 %138
  %v141 = vperm.slane %v60, 0
  %v142 = vmul.f32 %v64, %v141
  %v143 = vmul.f32 %v69, %v141
  %v144 = vmul.f32 %v74, %v141
  %v145 = vmul.f32 %v79, %v141
  %v146 = vmul.f32 %v84, %v141
  %v147 = vmul.f32 %v89, %v141
  %v148 = vmul.f32 %v94, %v141
  %v149 = vmul.f32 %v99, %v141
  %v150 = vmul.f32 %v104, %v141
  %v151 = vmul.f32 %v109, %v141
  %v152 = vmul.f32 %v114, %v141
  %v153 = vmul.f32 %v119, %v141
  %v154 = vmul.f32 %v124, %v141
  %v155 = vmul.f32 %v129, %v141
  %v156 = vmul.f32 %v134, %v141
  %v157 = vmul.f32 %v139, %v141
  %v159 = vperm.slane %v59, 0
  %v161 = vadd.f32 %v159, %v142
  %v162 = vadd.f32 %v159, %v143
  %v163 = vadd.f32 %v159, %v144
  %v164 = vadd.f32 %v159, %v145
  %v165 = vadd.f32 %v159, %v146
  %v166 = vadd.f32 %v159, %v147
  %v167 = vadd.f32 %v159, %v148
  %v168 = vadd.f32 %v159, %v149
  %v169 = vadd.f32 %v159, %v150
  %v170 = vadd.f32 %v159, %v151
  %v171 = vadd.f32 %v159, %v152
  %v172 = vadd.f32 %v159, %v153
  %v173 = vadd.f32 %v159, %v154
  %v174 = vadd.f32 %v159, %v155
  %v175 = vadd.f32 %v159, %v156
  %v176 = vadd.f32 %v159, %v157
  %v177 = vld [vmem:[%s4] sm:$0x1]
  %179 = vset.pattern.permute.xlu0 0
  %180 = vperm.xlu0 %179, %v43
  %v181 = vpop.permute.xlu0 %180
  %184 = vset.pattern.permute.xlu0 0
  %185 = vperm.xlu0 %184, %v44
  %v186 = vpop.permute.xlu0 %185
  %189 = vset.pattern.permute.xlu0 0
  %190 = vperm.xlu0 %189, %v45
  %v191 = vpop.permute.xlu0 %190
  %194 = vset.pattern.permute.xlu0 0
  %195 = vperm.xlu0 %194, %v46
  %v196 = vpop.permute.xlu0 %195
  %199 = vset.pattern.permute.xlu0 0
  %200 = vperm.xlu0 %199, %v47
  %v201 = vpop.permute.xlu0 %200
  %204 = vset.pattern.permute.xlu0 0
  %205 = vperm.xlu0 %204, %v48
  %v206 = vpop.permute.xlu0 %205
  %209 = vset.pattern.permute.xlu0 0
  %210 = vperm.xlu0 %209, %v49
  %v211 = vpop.permute.xlu0 %210
  %214 = vset.pattern.permute.xlu0 0
  %215 = vperm.xlu0 %214, %v50
  %v216 = vpop.permute.xlu0 %215
  %219 = vset.pattern.permute.xlu0 0
  %220 = vperm.xlu0 %219, %v51
  %v221 = vpop.permute.xlu0 %220
  %224 = vset.pattern.permute.xlu0 0
  %225 = vperm.xlu0 %224, %v52
  %v226 = vpop.permute.xlu0 %225
  %229 = vset.pattern.permute.xlu0 0
  %230 = vperm.xlu0 %229, %v53
  %v231 = vpop.permute.xlu0 %230
  %234 = vset.pattern.permute.xlu0 0
  %235 = vperm.xlu0 %234, %v54
  %v236 = vpop.permute.xlu0 %235
  %239 = vset.pattern.permute.xlu0 0
  %240 = vperm.xlu0 %239, %v55
  %v241 = vpop.permute.xlu0 %240
  %244 = vset.pattern.permute.xlu0 0
  %245 = vperm.xlu0 %244, %v56
  %v246 = vpop.permute.xlu0 %245
  %249 = vset.pattern.permute.xlu0 0
  %250 = vperm.xlu0 %249, %v57
  %v251 = vpop.permute.xlu0 %250
  %254 = vset.pattern.permute.xlu0 0
  %255 = vperm.xlu0 %254, %v58
  %v256 = vpop.permute.xlu0 %255
  %v258 = vperm.slane %v177, 0
  %v259 = vmul.f32 %v181, %v258
  %v260 = vmul.f32 %v186, %v258
  %v261 = vmul.f32 %v191, %v258
  %v262 = vmul.f32 %v196, %v258
  %v263 = vmul.f32 %v201, %v258
  %v264 = vmul.f32 %v206, %v258
  %v265 = vmul.f32 %v211, %v258
  %v266 = vmul.f32 %v216, %v258
  %v267 = vmul.f32 %v221, %v258
  %v268 = vmul.f32 %v226, %v258
  %v269 = vmul.f32 %v231, %v258
  %v270 = vmul.f32 %v236, %v258
  %v271 = vmul.f32 %v241, %v258
  %v272 = vmul.f32 %v246, %v258
  %v273 = vmul.f32 %v251, %v258
  %v274 = vmul.f32 %v256, %v258
  %v275 = vadd.f32 %v159, %v259
  %v276 = vadd.f32 %v159, %v260
  %v277 = vadd.f32 %v159, %v261
  %v278 = vadd.f32 %v159, %v262
  %v279 = vadd.f32 %v159, %v263
  %v280 = vadd.f32 %v159, %v264
  %v281 = vadd.f32 %v159, %v265
  %v282 = vadd.f32 %v159, %v266
  %v283 = vadd.f32 %v159, %v267
  %v284 = vadd.f32 %v159, %v268
  %v285 = vadd.f32 %v159, %v269
  %v286 = vadd.f32 %v159, %v270
  %v287 = vadd.f32 %v159, %v271
  %v288 = vadd.f32 %v159, %v272
  %v289 = vadd.f32 %v159, %v273
  %v290 = vadd.f32 %v159, %v274
  %v291 = vld [vmem:[%s3 + $0x1] sm:$0x1]
  %292 = vset.pattern.permute.xlu0 1
  %293 = vperm.xlu0 %292, %v27
  %v294 = vpop.permute.xlu0 %293
  %296 = vset.pattern.permute.xlu0 1
  %297 = vperm.xlu0 %296, %v28
  %v298 = vpop.permute.xlu0 %297
  %300 = vset.pattern.permute.xlu0 1
  %301 = vperm.xlu0 %300, %v29
  %v302 = vpop.permute.xlu0 %301
  %304 = vset.pattern.permute.xlu0 1
  %305 = vperm.xlu0 %304, %v30
  %v306 = vpop.permute.xlu0 %305
  %308 = vset.pattern.permute.xlu0 1
  %309 = vperm.xlu0 %308, %v31
  %v310 = vpop.permute.xlu0 %309
  %312 = vset.pattern.permute.xlu0 1
  %313 = vperm.xlu0 %312, %v32
  %v314 = vpop.permute.xlu0 %313
  %316 = vset.pattern.permute.xlu0 1
  %317 = vperm.xlu0 %316, %v33
  %v318 = vpop.permute.xlu0 %317
  %320 = vset.pattern.permute.xlu0 1
  %321 = vperm.xlu0 %320, %v34
  %v322 = vpop.permute.xlu0 %321
  %324 = vset.pattern.permute.xlu0 1
  %325 = vperm.xlu0 %324, %v35
  %v326 = vpop.permute.xlu0 %325
  %328 = vset.pattern.permute.xlu0 1
  %329 = vperm.xlu0 %328, %v36
  %v330 = vpop.permute.xlu0 %329
  %332 = vset.pattern.permute.xlu0 1
  %333 = vperm.xlu0 %332, %v37
  %v334 = vpop.permute.xlu0 %333
  %336 = vset.pattern.permute.xlu0 1
  %337 = vperm.xlu0 %336, %v38
  %v338 = vpop.permute.xlu0 %337
  %340 = vset.pattern.permute.xlu0 1
  %341 = vperm.xlu0 %340, %v39
  %v342 = vpop.permute.xlu0 %341
  %344 = vset.pattern.permute.xlu0 1
  %345 = vperm.xlu0 %344, %v40
  %v346 = vpop.permute.xlu0 %345
  %348 = vset.pattern.permute.xlu0 1
  %349 = vperm.xlu0 %348, %v41
  %v350 = vpop.permute.xlu0 %349
  %352 = vset.pattern.permute.xlu0 1
  %353 = vperm.xlu0 %352, %v42
  %v354 = vpop.permute.xlu0 %353
  %v356 = vperm.slane %v291, 0
  %v357 = vmul.f32 %v294, %v356
  %v358 = vmul.f32 %v298, %v356
  %v359 = vmul.f32 %v302, %v356
  %v360 = vmul.f32 %v306, %v356
  %v361 = vmul.f32 %v310, %v356
  %v362 = vmul.f32 %v314, %v356
  %v363 = vmul.f32 %v318, %v356
  %v364 = vmul.f32 %v322, %v356
  %v365 = vmul.f32 %v326, %v356
  %v366 = vmul.f32 %v330, %v356
  %v367 = vmul.f32 %v334, %v356
  %v368 = vmul.f32 %v338, %v356
  %v369 = vmul.f32 %v342, %v356
  %v370 = vmul.f32 %v346, %v356
  %v371 = vmul.f32 %v350, %v356
  %v372 = vmul.f32 %v354, %v356
  %v373 = vadd.f32 %v161, %v357
  %v374 = vadd.f32 %v162, %v358
  %v375 = vadd.f32 %v163, %v359
  %v376 = vadd.f32 %v164, %v360
  %v377 = vadd.f32 %v165, %v361
  %v378 = vadd.f32 %v166, %v362
  %v379 = vadd.f32 %v167, %v363
  %v380 = vadd.f32 %v168, %v364
  %v381 = vadd.f32 %v169, %v365
  %v382 = vadd.f32 %v170, %v366
  %v383 = vadd.f32 %v171, %v367
  %v384 = vadd.f32 %v172, %v368
  %v385 = vadd.f32 %v173, %v369
  %v386 = vadd.f32 %v174, %v370
  %v387 = vadd.f32 %v175, %v371
  %v388 = vadd.f32 %v176, %v372
  %v389 = vld [vmem:[%s4 + $0x1] sm:$0x1]
  %390 = vset.pattern.permute.xlu0 1
  %391 = vperm.xlu0 %390, %v43
  %v392 = vpop.permute.xlu0 %391
  %394 = vset.pattern.permute.xlu0 1
  %395 = vperm.xlu0 %394, %v44
  %v396 = vpop.permute.xlu0 %395
  %398 = vset.pattern.permute.xlu0 1
  %399 = vperm.xlu0 %398, %v45
  %v400 = vpop.permute.xlu0 %399
  %402 = vset.pattern.permute.xlu0 1
  %403 = vperm.xlu0 %402, %v46
  %v404 = vpop.permute.xlu0 %403
  %406 = vset.pattern.permute.xlu0 1
  %407 = vperm.xlu0 %406, %v47
  %v408 = vpop.permute.xlu0 %407
  %410 = vset.pattern.permute.xlu0 1
  %411 = vperm.xlu0 %410, %v48
  %v412 = vpop.permute.xlu0 %411
  %414 = vset.pattern.permute.xlu0 1
  %415 = vperm.xlu0 %414, %v49
  %v416 = vpop.permute.xlu0 %415
  %418 = vset.pattern.permute.xlu0 1
  %419 = vperm.xlu0 %418, %v50
  %v420 = vpop.permute.xlu0 %419
  %422 = vset.pattern.permute.xlu0 1
  %423 = vperm.xlu0 %422, %v51
  %v424 = vpop.permute.xlu0 %423
  %426 = vset.pattern.permute.xlu0 1
  %427 = vperm.xlu0 %426, %v52
  %v428 = vpop.permute.xlu0 %427
  %430 = vset.pattern.permute.xlu0 1
  %431 = vperm.xlu0 %430, %v53
  %v432 = vpop.permute.xlu0 %431
  %434 = vset.pattern.permute.xlu0 1
  %435 = vperm.xlu0 %434, %v54
  %v436 = vpop.permute.xlu0 %435
  %438 = vset.pattern.permute.xlu0 1
  %439 = vperm.xlu0 %438, %v55
  %v440 = vpop.permute.xlu0 %439
  %442 = vset.pattern.permute.xlu0 1
  %443 = vperm.xlu0 %442, %v56
  %v444 = vpop.permute.xlu0 %443
  %446 = vset.pattern.permute.xlu0 1
  %447 = vperm.xlu0 %446, %v57
  %v448 = vpop.permute.xlu0 %447
  %450 = vset.pattern.permute.xlu0 1
  %451 = vperm.xlu0 %450, %v58
  %v452 = vpop.permute.xlu0 %451
  %v454 = vperm.slane %v389, 0
  %v455 = vmul.f32 %v392, %v454
  %v456 = vmul.f32 %v396, %v454
  %v457 = vmul.f32 %v400, %v454
  %v458 = vmul.f32 %v404, %v454
  %v459 = vmul.f32 %v408, %v454
  %v460 = vmul.f32 %v412, %v454
  %v461 = vmul.f32 %v416, %v454
  %v462 = vmul.f32 %v420, %v454
  %v463 = vmul.f32 %v424, %v454
  %v464 = vmul.f32 %v428, %v454
  %v465 = vmul.f32 %v432, %v454
  %v466 = vmul.f32 %v436, %v454
  %v467 = vmul.f32 %v440, %v454
  %v468 = vmul.f32 %v444, %v454
  %v469 = vmul.f32 %v448, %v454
  %v470 = vmul.f32 %v452, %v454
  %v471 = vadd.f32 %v275, %v455
  %v472 = vadd.f32 %v276, %v456
  %v473 = vadd.f32 %v277, %v457
  %v474 = vadd.f32 %v278, %v458
  %v475 = vadd.f32 %v279, %v459
  %v476 = vadd.f32 %v280, %v460
  %v477 = vadd.f32 %v281, %v461
  %v478 = vadd.f32 %v282, %v462
  %v479 = vadd.f32 %v283, %v463
  %v480 = vadd.f32 %v284, %v464
  %v481 = vadd.f32 %v285, %v465
  %v482 = vadd.f32 %v286, %v466
  %v483 = vadd.f32 %v287, %v467
  %v484 = vadd.f32 %v288, %v468
  %v485 = vadd.f32 %v289, %v469
  %v486 = vadd.f32 %v290, %v470
  %v487 = vld [vmem:[%s3 + $0x2] sm:$0x1]
  %488 = vset.pattern.permute.xlu0 2
  %489 = vperm.xlu0 %488, %v27
  %v490 = vpop.permute.xlu0 %489
  %492 = vset.pattern.permute.xlu0 2
  %493 = vperm.xlu0 %492, %v28
  %v494 = vpop.permute.xlu0 %493
  %496 = vset.pattern.permute.xlu0 2
  %497 = vperm.xlu0 %496, %v29
  %v498 = vpop.permute.xlu0 %497
  %500 = vset.pattern.permute.xlu0 2
  %501 = vperm.xlu0 %500, %v30
  %v502 = vpop.permute.xlu0 %501
  %504 = vset.pattern.permute.xlu0 2
  %505 = vperm.xlu0 %504, %v31
  %v506 = vpop.permute.xlu0 %505
  %508 = vset.pattern.permute.xlu0 2
  %509 = vperm.xlu0 %508, %v32
  %v510 = vpop.permute.xlu0 %509
  %512 = vset.pattern.permute.xlu0 2
  %513 = vperm.xlu0 %512, %v33
  %v514 = vpop.permute.xlu0 %513
  %516 = vset.pattern.permute.xlu0 2
  %517 = vperm.xlu0 %516, %v34
  %v518 = vpop.permute.xlu0 %517
  %520 = vset.pattern.permute.xlu0 2
  %521 = vperm.xlu0 %520, %v35
  %v522 = vpop.permute.xlu0 %521
  %524 = vset.pattern.permute.xlu0 2
  %525 = vperm.xlu0 %524, %v36
  %v526 = vpop.permute.xlu0 %525
  %528 = vset.pattern.permute.xlu0 2
  %529 = vperm.xlu0 %528, %v37
  %v530 = vpop.permute.xlu0 %529
  %532 = vset.pattern.permute.xlu0 2
  %533 = vperm.xlu0 %532, %v38
  %v534 = vpop.permute.xlu0 %533
  %536 = vset.pattern.permute.xlu0 2
  %537 = vperm.xlu0 %536, %v39
  %v538 = vpop.permute.xlu0 %537
  %540 = vset.pattern.permute.xlu0 2
  %541 = vperm.xlu0 %540, %v40
  %v542 = vpop.permute.xlu0 %541
  %544 = vset.pattern.permute.xlu0 2
  %545 = vperm.xlu0 %544, %v41
  %v546 = vpop.permute.xlu0 %545
  %548 = vset.pattern.permute.xlu0 2
  %549 = vperm.xlu0 %548, %v42
  %v550 = vpop.permute.xlu0 %549
  %v552 = vperm.slane %v487, 0
  %v553 = vmul.f32 %v490, %v552
  %v554 = vmul.f32 %v494, %v552
  %v555 = vmul.f32 %v498, %v552
  %v556 = vmul.f32 %v502, %v552
  %v557 = vmul.f32 %v506, %v552
  %v558 = vmul.f32 %v510, %v552
  %v559 = vmul.f32 %v514, %v552
  %v560 = vmul.f32 %v518, %v552
  %v561 = vmul.f32 %v522, %v552
  %v562 = vmul.f32 %v526, %v552
  %v563 = vmul.f32 %v530, %v552
  %v564 = vmul.f32 %v534, %v552
  %v565 = vmul.f32 %v538, %v552
  %v566 = vmul.f32 %v542, %v552
  %v567 = vmul.f32 %v546, %v552
  %v568 = vmul.f32 %v550, %v552
  %v569 = vadd.f32 %v373, %v553
  %v570 = vadd.f32 %v374, %v554
  %v571 = vadd.f32 %v375, %v555
  %v572 = vadd.f32 %v376, %v556
  %v573 = vadd.f32 %v377, %v557
  %v574 = vadd.f32 %v378, %v558
  %v575 = vadd.f32 %v379, %v559
  %v576 = vadd.f32 %v380, %v560
  %v577 = vadd.f32 %v381, %v561
  %v578 = vadd.f32 %v382, %v562
  %v579 = vadd.f32 %v383, %v563
  %v580 = vadd.f32 %v384, %v564
  %v581 = vadd.f32 %v385, %v565
  %v582 = vadd.f32 %v386, %v566
  %v583 = vadd.f32 %v387, %v567
  %v584 = vadd.f32 %v388, %v568
  %v585 = vld [vmem:[%s4 + $0x2] sm:$0x1]
  %586 = vset.pattern.permute.xlu0 2
  %587 = vperm.xlu0 %586, %v43
  %v588 = vpop.permute.xlu0 %587
  %590 = vset.pattern.permute.xlu0 2
  %591 = vperm.xlu0 %590, %v44
  %v592 = vpop.permute.xlu0 %591
  %594 = vset.pattern.permute.xlu0 2
  %595 = vperm.xlu0 %594, %v45
  %v596 = vpop.permute.xlu0 %595
  %598 = vset.pattern.permute.xlu0 2
  %599 = vperm.xlu0 %598, %v46
  %v600 = vpop.permute.xlu0 %599
  %602 = vset.pattern.permute.xlu0 2
  %603 = vperm.xlu0 %602, %v47
  %v604 = vpop.permute.xlu0 %603
  %606 = vset.pattern.permute.xlu0 2
  %607 = vperm.xlu0 %606, %v48
  %v608 = vpop.permute.xlu0 %607
  %610 = vset.pattern.permute.xlu0 2
  %611 = vperm.xlu0 %610, %v49
  %v612 = vpop.permute.xlu0 %611
  %614 = vset.pattern.permute.xlu0 2
  %615 = vperm.xlu0 %614, %v50
  %v616 = vpop.permute.xlu0 %615
  %618 = vset.pattern.permute.xlu0 2
  %619 = vperm.xlu0 %618, %v51
  %v620 = vpop.permute.xlu0 %619
  %622 = vset.pattern.permute.xlu0 2
  %623 = vperm.xlu0 %622, %v52
  %v624 = vpop.permute.xlu0 %623
  %626 = vset.pattern.permute.xlu0 2
  %627 = vperm.xlu0 %626, %v53
  %v628 = vpop.permute.xlu0 %627
  %630 = vset.pattern.permute.xlu0 2
  %631 = vperm.xlu0 %630, %v54
  %v632 = vpop.permute.xlu0 %631
  %634 = vset.pattern.permute.xlu0 2
  %635 = vperm.xlu0 %634, %v55
  %v636 = vpop.permute.xlu0 %635
  %638 = vset.pattern.permute.xlu0 2
  %639 = vperm.xlu0 %638, %v56
  %v640 = vpop.permute.xlu0 %639
  %642 = vset.pattern.permute.xlu0 2
  %643 = vperm.xlu0 %642, %v57
  %v644 = vpop.permute.xlu0 %643
  %646 = vset.pattern.permute.xlu0 2
  %647 = vperm.xlu0 %646, %v58
  %v648 = vpop.permute.xlu0 %647
  %v650 = vperm.slane %v585, 0
  %v651 = vmul.f32 %v588, %v650
  %v652 = vmul.f32 %v592, %v650
  %v653 = vmul.f32 %v596, %v650
  %v654 = vmul.f32 %v600, %v650
  %v655 = vmul.f32 %v604, %v650
  %v656 = vmul.f32 %v608, %v650
  %v657 = vmul.f32 %v612, %v650
  %v658 = vmul.f32 %v616, %v650
  %v659 = vmul.f32 %v620, %v650
  %v660 = vmul.f32 %v624, %v650
  %v661 = vmul.f32 %v628, %v650
  %v662 = vmul.f32 %v632, %v650
  %v663 = vmul.f32 %v636, %v650
  %v664 = vmul.f32 %v640, %v650
  %v665 = vmul.f32 %v644, %v650
  %v666 = vmul.f32 %v648, %v650
  %v667 = vadd.f32 %v471, %v651
  %v668 = vadd.f32 %v472, %v652
  %v669 = vadd.f32 %v473, %v653
  %v670 = vadd.f32 %v474, %v654
  %v671 = vadd.f32 %v475, %v655
  %v672 = vadd.f32 %v476, %v656
  %v673 = vadd.f32 %v477, %v657
  %v674 = vadd.f32 %v478, %v658
  %v675 = vadd.f32 %v479, %v659
  %v676 = vadd.f32 %v480, %v660
  %v677 = vadd.f32 %v481, %v661
  %v678 = vadd.f32 %v482, %v662
  %v679 = vadd.f32 %v483, %v663
  %v680 = vadd.f32 %v484, %v664
  %v681 = vadd.f32 %v485, %v665
  %v682 = vadd.f32 %v486, %v666
  %v683 = vld [vmem:[%s3 + $0x3] sm:$0x1]
  %684 = vset.pattern.permute.xlu0 3
  %685 = vperm.xlu0 %684, %v27
  %v686 = vpop.permute.xlu0 %685
  %688 = vset.pattern.permute.xlu0 3
  %689 = vperm.xlu0 %688, %v28
  %v690 = vpop.permute.xlu0 %689
  %692 = vset.pattern.permute.xlu0 3
  %693 = vperm.xlu0 %692, %v29
  %v694 = vpop.permute.xlu0 %693
  %696 = vset.pattern.permute.xlu0 3
  %697 = vperm.xlu0 %696, %v30
  %v698 = vpop.permute.xlu0 %697
  %700 = vset.pattern.permute.xlu0 3
  %701 = vperm.xlu0 %700, %v31
  %v702 = vpop.permute.xlu0 %701
  %704 = vset.pattern.permute.xlu0 3
  %705 = vperm.xlu0 %704, %v32
  %v706 = vpop.permute.xlu0 %705
  %708 = vset.pattern.permute.xlu0 3
  %709 = vperm.xlu0 %708, %v33
  %v710 = vpop.permute.xlu0 %709
  %712 = vset.pattern.permute.xlu0 3
  %713 = vperm.xlu0 %712, %v34
  %v714 = vpop.permute.xlu0 %713
  %716 = vset.pattern.permute.xlu0 3
  %717 = vperm.xlu0 %716, %v35
  %v718 = vpop.permute.xlu0 %717
  %720 = vset.pattern.permute.xlu0 3
  %721 = vperm.xlu0 %720, %v36
  %v722 = vpop.permute.xlu0 %721
  %724 = vset.pattern.permute.xlu0 3
  %725 = vperm.xlu0 %724, %v37
  %v726 = vpop.permute.xlu0 %725
  %728 = vset.pattern.permute.xlu0 3
  %729 = vperm.xlu0 %728, %v38
  %v730 = vpop.permute.xlu0 %729
  %732 = vset.pattern.permute.xlu0 3
  %733 = vperm.xlu0 %732, %v39
  %v734 = vpop.permute.xlu0 %733
  %736 = vset.pattern.permute.xlu0 3
  %737 = vperm.xlu0 %736, %v40
  %v738 = vpop.permute.xlu0 %737
  %740 = vset.pattern.permute.xlu0 3
  %741 = vperm.xlu0 %740, %v41
  %v742 = vpop.permute.xlu0 %741
  %744 = vset.pattern.permute.xlu0 3
  %745 = vperm.xlu0 %744, %v42
  %v746 = vpop.permute.xlu0 %745
  %v748 = vperm.slane %v683, 0
  %v749 = vmul.f32 %v686, %v748
  %v750 = vmul.f32 %v690, %v748
  %v751 = vmul.f32 %v694, %v748
  %v752 = vmul.f32 %v698, %v748
  %v753 = vmul.f32 %v702, %v748
  %v754 = vmul.f32 %v706, %v748
  %v755 = vmul.f32 %v710, %v748
  %v756 = vmul.f32 %v714, %v748
  %v757 = vmul.f32 %v718, %v748
  %v758 = vmul.f32 %v722, %v748
  %v759 = vmul.f32 %v726, %v748
  %v760 = vmul.f32 %v730, %v748
  %v761 = vmul.f32 %v734, %v748
  %v762 = vmul.f32 %v738, %v748
  %v763 = vmul.f32 %v742, %v748
  %v764 = vmul.f32 %v746, %v748
  %v765 = vadd.f32 %v569, %v749
  %v766 = vadd.f32 %v570, %v750
  %v767 = vadd.f32 %v571, %v751
  %v768 = vadd.f32 %v572, %v752
  %v769 = vadd.f32 %v573, %v753
  %v770 = vadd.f32 %v574, %v754
  %v771 = vadd.f32 %v575, %v755
  %v772 = vadd.f32 %v576, %v756
  %v773 = vadd.f32 %v577, %v757
  %v774 = vadd.f32 %v578, %v758
  %v775 = vadd.f32 %v579, %v759
  %v776 = vadd.f32 %v580, %v760
  %v777 = vadd.f32 %v581, %v761
  %v778 = vadd.f32 %v582, %v762
  %v779 = vadd.f32 %v583, %v763
  %v780 = vadd.f32 %v584, %v764
  %v781 = vld [vmem:[%s4 + $0x3] sm:$0x1]
  %782 = vset.pattern.permute.xlu0 3
  %783 = vperm.xlu0 %782, %v43
  %v784 = vpop.permute.xlu0 %783
  %786 = vset.pattern.permute.xlu0 3
  %787 = vperm.xlu0 %786, %v44
  %v788 = vpop.permute.xlu0 %787
  %790 = vset.pattern.permute.xlu0 3
  %791 = vperm.xlu0 %790, %v45
  %v792 = vpop.permute.xlu0 %791
  %794 = vset.pattern.permute.xlu0 3
  %795 = vperm.xlu0 %794, %v46
  %v796 = vpop.permute.xlu0 %795
  %798 = vset.pattern.permute.xlu0 3
  %799 = vperm.xlu0 %798, %v47
  %v800 = vpop.permute.xlu0 %799
  %802 = vset.pattern.permute.xlu0 3
  %803 = vperm.xlu0 %802, %v48
  %v804 = vpop.permute.xlu0 %803
  %806 = vset.pattern.permute.xlu0 3
  %807 = vperm.xlu0 %806, %v49
  %v808 = vpop.permute.xlu0 %807
  %810 = vset.pattern.permute.xlu0 3
  %811 = vperm.xlu0 %810, %v50
  %v812 = vpop.permute.xlu0 %811
  %814 = vset.pattern.permute.xlu0 3
  %815 = vperm.xlu0 %814, %v51
  %v816 = vpop.permute.xlu0 %815
  %818 = vset.pattern.permute.xlu0 3
  %819 = vperm.xlu0 %818, %v52
  %v820 = vpop.permute.xlu0 %819
  %822 = vset.pattern.permute.xlu0 3
  %823 = vperm.xlu0 %822, %v53
  %v824 = vpop.permute.xlu0 %823
  %826 = vset.pattern.permute.xlu0 3
  %827 = vperm.xlu0 %826, %v54
  %v828 = vpop.permute.xlu0 %827
  %830 = vset.pattern.permute.xlu0 3
  %831 = vperm.xlu0 %830, %v55
  %v832 = vpop.permute.xlu0 %831
  %834 = vset.pattern.permute.xlu0 3
  %835 = vperm.xlu0 %834, %v56
  %v836 = vpop.permute.xlu0 %835
  %838 = vset.pattern.permute.xlu0 3
  %839 = vperm.xlu0 %838, %v57
  %v840 = vpop.permute.xlu0 %839
  %842 = vset.pattern.permute.xlu0 3
  %843 = vperm.xlu0 %842, %v58
  %v844 = vpop.permute.xlu0 %843
  %v846 = vperm.slane %v781, 0
  %v847 = vmul.f32 %v784, %v846
  %v848 = vmul.f32 %v788, %v846
  %v849 = vmul.f32 %v792, %v846
  %v850 = vmul.f32 %v796, %v846
  %v851 = vmul.f32 %v800, %v846
  %v852 = vmul.f32 %v804, %v846
  %v853 = vmul.f32 %v808, %v846
  %v854 = vmul.f32 %v812, %v846
  %v855 = vmul.f32 %v816, %v846
  %v856 = vmul.f32 %v820, %v846
  %v857 = vmul.f32 %v824, %v846
  %v858 = vmul.f32 %v828, %v846
  %v859 = vmul.f32 %v832, %v846
  %v860 = vmul.f32 %v836, %v846
  %v861 = vmul.f32 %v840, %v846
  %v862 = vmul.f32 %v844, %v846
  %v863 = vadd.f32 %v667, %v847
  %v864 = vadd.f32 %v668, %v848
  %v865 = vadd.f32 %v669, %v849
  %v866 = vadd.f32 %v670, %v850
  %v867 = vadd.f32 %v671, %v851
  %v868 = vadd.f32 %v672, %v852
  %v869 = vadd.f32 %v673, %v853
  %v870 = vadd.f32 %v674, %v854
  %v871 = vadd.f32 %v675, %v855
  %v872 = vadd.f32 %v676, %v856
  %v873 = vadd.f32 %v677, %v857
  %v874 = vadd.f32 %v678, %v858
  %v875 = vadd.f32 %v679, %v859
  %v876 = vadd.f32 %v680, %v860
  %v877 = vadd.f32 %v681, %v861
  %v878 = vadd.f32 %v682, %v862
  %v879 = vand.u32 2147483647, %v765
  %vm880 = vcmp.le.f32.partialorder %v879, 0.7853982
  %vm881 = vcmp.lt.s32.totalorder %v765, 0
  %v882 = vand.u32 %v765, 2139095040
  %v883 = vshrl.u32 %v882, 23
  %v884 = vsub.s32 %v883, 127
  %v885 = vand.u32 2147483647, %v765
  %v886 = vand.u32 %v885, 8388607
  %v887 = vor.u32 %v886, 8388608
  %v888 = vsub.s32 0, %v887
  %v889 = vadd.s32 %v884, 1
  %vm890 = vcmp.gt.s32.totalorder %v889, 0
  %v891 = vsel %vm890, %v889, 0
  %v892 = vshrl.u32 %v891, 5
  %v893 = vand.u32 %v891, 31
  %v894 = vsub.s32 32, %v893
  %v895 = vshrl.u32 683565275, %v894
  %v896 = vshll.u32 683565275, %v893
  %v897 = vshrl.u32 2475754826, %v894
  %v898 = vor.u32 %v896, %v897
  %v899 = vshll.u32 2475754826, %v893
  %v900 = vshrl.u32 2131351028, %v894
  %v901 = vor.u32 %v899, %v900
  %v902 = vshll.u32 2131351028, %v893
  %v903 = vshrl.u32 2102212464, %v894
  %v904 = vor.u32 %v902, %v903
  %v905 = vshll.u32 2102212464, %v893
  %v906 = vshrl.u32 920167782, %v894
  %v907 = vor.u32 %v905, %v906
  %v908 = vshll.u32 920167782, %v893
  %v909 = vshrl.u32 1326507024, %v894
  %v910 = vor.u32 %v908, %v909
  %vm911 = vcmp.lt.s32.totalorder %v892, 1
  %vm912 = vcmp.lt.s32.totalorder %v892, 2
  %vm913 = vcmp.lt.s32.totalorder %v892, 3
  %vm914 = vcmp.lt.s32.totalorder %v892, 4
  %v915 = vsel %vm911, %v895, %v898
  %v916 = vsel %vm914, %v904, 2102212464
  %v917 = vsel %vm913, %v901, %v916
  %v918 = vsel %vm912, %v915, %v917
  %v919 = vsel %vm911, %v898, %v901
  %v920 = vsel %vm914, %v907, 920167782
  %v921 = vsel %vm913, %v904, %v920
  %v922 = vsel %vm912, %v919, %v921
  %v923 = vsel %vm911, %v901, %v904
  %v924 = vsel %vm914, %v910, 1326507024
  %v925 = vsel %vm913, %v907, %v924
  %v926 = vsel %vm912, %v923, %v925
  %v927 = vshll.u32 %v887, 8
  %v928 = vand.u32 %v927, 65535
  %v929 = vshrl.u32 %v927, 16
  %v930 = vand.u32 %v926, 65535
  %v931 = vshrl.u32 %v926, 16
  %v932 = vmul.u32 %v928, %v930
  %v933 = vmul.u32 %v928, %v931
  %v934 = vmul.u32 %v929, %v930
  %v935 = vmul.u32 %v929, %v931
  %v936 = vshll.u32 %v933, 16
  %v937 = vshrl.u32 %v933, 16
  %v938 = vshll.u32 %v934, 16
  %v939 = vshrl.u32 %v934, 16
  %vm940 = vc.u32 %v932, %v936
  %v941 = vsel %vm940, 1, 0
  %v942 = vadd.s32 %v932, %v936
  %v943 = vadd.s32 %v935, %v941
  %vm944 = vc.u32 %v942, %v938
  %v945 = vsel %vm944, 1, 0
  %v946 = vadd.s32 %v942, %v938
  %v947 = vadd.s32 %v943, %v945
  %v948 = vadd.s32 %v947, %v937
  %v949 = vadd.s32 %v948, %v939
  %v950 = vand.u32 %v927, 65535
  %v951 = vshrl.u32 %v927, 16
  %v952 = vand.u32 %v922, 65535
  %v953 = vshrl.u32 %v922, 16
  %v954 = vmul.u32 %v950, %v952
  %v955 = vmul.u32 %v950, %v953
  %v956 = vmul.u32 %v951, %v952
  %v957 = vmul.u32 %v951, %v953
  %v958 = vshll.u32 %v955, 16
  %v959 = vshrl.u32 %v955, 16
  %v960 = vshll.u32 %v956, 16
  %v961 = vshrl.u32 %v956, 16
  %vm962 = vc.u32 %v954, %v958
  %v963 = vsel %vm962, 1, 0
  %v964 = vadd.s32 %v954, %v958
  %v965 = vadd.s32 %v957, %v963
  %vm966 = vc.u32 %v964, %v960
  %v967 = vsel %vm966, 1, 0
  %v968 = vadd.s32 %v964, %v960
  %v969 = vadd.s32 %v965, %v967
  %v970 = vadd.s32 %v969, %v959
  %v971 = vadd.s32 %v970, %v961
  %v972 = vmul.u32 %v927, %v918
  %v973 = vadd.s32 %v949, %v968
  %vm974 = vc.u32 %v949, %v968
  %v975 = vadd.s32 %v971, 1
  %v976 = vsel %vm974, %v975, %v971
  %v977 = vadd.s32 %v972, %v976
  %v978 = vadd.s32 %v977, 536870912
  %v979 = vshrl.u32 %v978, 30
  %v980 = vshll.u32 %v979, 30
  %v981 = vsub.s32 %v977, %v980
  %vm982 = vcmp.lt.s32.totalorder %v981, 0
  %v983 = vsub.s32 0, %v981
  %v984 = vsel %vm982, %v983, %v981
  %v985 = vclz %v984
  %v986 = vsub.s32 %v985, 2
  %vm987 = vcmp.gt.s32.totalorder 0, %v986
  %v988 = vsel %vm987, 0, %v986
  %v989 = vsub.s32 32, %v988
  %v990 = vshll.u32 %v981, %v988
  %v991 = vshrl.u32 %v973, %v989
  %v992 = vor.u32 %v990, %v991
  %v993 = vsub.s32 4294967266, %v988
  %v994 = vadd.s32 %v993, 127
  %v995 = vshll.u32 %v994, 23
  %v996 = vor.u32 4788187, %v995
  %v997 = vand.u32 2147483647, %v996
  %v999 = vcvt.s32.f32 %v992
  %v1000 = vmul.f32 %v999, %v997
  %v1001 = vxor.u32 %v1000, 2147483648
  %v1002 = vsel %vm881, %v1001, %v1000
  %v1003 = vsub.s32 4, %v979
  %v1004 = vsel %vm881, %v1003, %v979
  %v1005 = vsel %vm880, %v765, %v1002
  %v1006 = vsel %vm880, 0, %v1004
  %v1007 = vmul.f32 %v1005, %v1005
  %v1008 = vmul.f32 %v1007, -0.001358992
  %v1009 = vadd.f32 %v1008, 0.041655596
  %v1010 = vmul.f32 %v1007, %v1009
  %v1011 = vadd.f32 %v1010, -0.4999988
  %v1012 = vmul.f32 %v1007, %v1011
  %v1013 = vadd.f32 1.0, %v1012
  %v1014 = vmul.f32 %v1005, %v1005
  %v1015 = vmul.f32 %v1014, -0.00019511016
  %v1016 = vadd.f32 %v1015, 0.008332121
  %v1017 = vmul.f32 %v1014, %v1016
  %v1018 = vadd.f32 %v1017, -0.16666654
  %v1019 = vmul.f32 %v1014, %v1018
  %v1020 = vadd.f32 %v1019, 1.0
  %v1021 = vmul.f32 %v1020, %v1005
  %vm1022 = vweird.f32 %v765
  %v1023 = vadd.s32 %v1006, 3
  %v1024 = vand.u32 %v1023, 3
  %vm1025 = vcmp.lt.s32.totalorder %v1024, 2
  %vm1026 = vcmp.eq.s32.totalorder %v1024, 0
  %v1027 = vxor.u32 %v1021, 2147483648
  %v1028 = vsel %vm1026, %v1013, %v1027
  %vm1029 = vcmp.eq.s32.totalorder %v1024, 2
  %v1030 = vxor.u32 %v1013, 2147483648
  %v1031 = vsel %vm1029, %v1030, %v1021
  %v1032 = vsel %vm1025, %v1028, %v1031
  %v1033 = vsel %vm1022, nan, %v1032
  %v1034 = vand.u32 2147483647, %v766
  %vm1035 = vcmp.le.f32.partialorder %v1034, 0.7853982
  %vm1036 = vcmp.lt.s32.totalorder %v766, 0
  %v1037 = vand.u32 %v766, 2139095040
  %v1038 = vshrl.u32 %v1037, 23
  %v1039 = vsub.s32 %v1038, 127
  %v1040 = vand.u32 2147483647, %v766
  %v1041 = vand.u32 %v1040, 8388607
  %v1042 = vor.u32 %v1041, 8388608
  %v1043 = vsub.s32 0, %v1042
  %v1044 = vadd.s32 %v1039, 1
  %vm1045 = vcmp.gt.s32.totalorder %v1044, 0
  %v1046 = vsel %vm1045, %v1044, 0
  %v1047 = vshrl.u32 %v1046, 5
  %v1048 = vand.u32 %v1046, 31
  %v1049 = vsub.s32 32, %v1048
  %v1050 = vshrl.u32 683565275, %v1049
  %v1051 = vshll.u32 683565275, %v1048
  %v1052 = vshrl.u32 2475754826, %v1049
  %v1053 = vor.u32 %v1051, %v1052
  %v1054 = vshll.u32 2475754826, %v1048
  %v1055 = vshrl.u32 2131351028, %v1049
  %v1056 = vor.u32 %v1054, %v1055
  %v1057 = vshll.u32 2131351028, %v1048
  %v1058 = vshrl.u32 2102212464, %v1049
  %v1059 = vor.u32 %v1057, %v1058
  %v1060 = vshll.u32 2102212464, %v1048
  %v1061 = vshrl.u32 920167782, %v1049
  %v1062 = vor.u32 %v1060, %v1061
  %v1063 = vshll.u32 920167782, %v1048
  %v1064 = vshrl.u32 1326507024, %v1049
  %v1065 = vor.u32 %v1063, %v1064
  %vm1066 = vcmp.lt.s32.totalorder %v1047, 1
  %vm1067 = vcmp.lt.s32.totalorder %v1047, 2
  %vm1068 = vcmp.lt.s32.totalorder %v1047, 3
  %vm1069 = vcmp.lt.s32.totalorder %v1047, 4
  %v1070 = vsel %vm1066, %v1050, %v1053
  %v1071 = vsel %vm1069, %v1059, 2102212464
  %v1072 = vsel %vm1068, %v1056, %v1071
  %v1073 = vsel %vm1067, %v1070, %v1072
  %v1074 = vsel %vm1066, %v1053, %v1056
  %v1075 = vsel %vm1069, %v1062, 920167782
  %v1076 = vsel %vm1068, %v1059, %v1075
  %v1077 = vsel %vm1067, %v1074, %v1076
  %v1078 = vsel %vm1066, %v1056, %v1059
  %v1079 = vsel %vm1069, %v1065, 1326507024
  %v1080 = vsel %vm1068, %v1062, %v1079
  %v1081 = vsel %vm1067, %v1078, %v1080
  %v1082 = vshll.u32 %v1042, 8
  %v1083 = vand.u32 %v1082, 65535
  %v1084 = vshrl.u32 %v1082, 16
  %v1085 = vand.u32 %v1081, 65535
  %v1086 = vshrl.u32 %v1081, 16
  %v1087 = vmul.u32 %v1083, %v1085
  %v1088 = vmul.u32 %v1083, %v1086
  %v1089 = vmul.u32 %v1084, %v1085
  %v1090 = vmul.u32 %v1084, %v1086
  %v1091 = vshll.u32 %v1088, 16
  %v1092 = vshrl.u32 %v1088, 16
  %v1093 = vshll.u32 %v1089, 16
  %v1094 = vshrl.u32 %v1089, 16
  %vm1095 = vc.u32 %v1087, %v1091
  %v1096 = vsel %vm1095, 1, 0
  %v1097 = vadd.s32 %v1087, %v1091
  %v1098 = vadd.s32 %v1090, %v1096
  %vm1099 = vc.u32 %v1097, %v1093
  %v1100 = vsel %vm1099, 1, 0
  %v1101 = vadd.s32 %v1097, %v1093
  %v1102 = vadd.s32 %v1098, %v1100
  %v1103 = vadd.s32 %v1102, %v1092
  %v1104 = vadd.s32 %v1103, %v1094
  %v1105 = vand.u32 %v1082, 65535
  %v1106 = vshrl.u32 %v1082, 16
  %v1107 = vand.u32 %v1077, 65535
  %v1108 = vshrl.u32 %v1077, 16
  %v1109 = vmul.u32 %v1105, %v1107
  %v1110 = vmul.u32 %v1105, %v1108
  %v1111 = vmul.u32 %v1106, %v1107
  %v1112 = vmul.u32 %v1106, %v1108
  %v1113 = vshll.u32 %v1110, 16
  %v1114 = vshrl.u32 %v1110, 16
  %v1115 = vshll.u32 %v1111, 16
  %v1116 = vshrl.u32 %v1111, 16
  %vm1117 = vc.u32 %v1109, %v1113
  %v1118 = vsel %vm1117, 1, 0
  %v1119 = vadd.s32 %v1109, %v1113
  %v1120 = vadd.s32 %v1112, %v1118
  %vm1121 = vc.u32 %v1119, %v1115
  %v1122 = vsel %vm1121, 1, 0
  %v1123 = vadd.s32 %v1119, %v1115
  %v1124 = vadd.s32 %v1120, %v1122
  %v1125 = vadd.s32 %v1124, %v1114
  %v1126 = vadd.s32 %v1125, %v1116
  %v1127 = vmul.u32 %v1082, %v1073
  %v1128 = vadd.s32 %v1104, %v1123
  %vm1129 = vc.u32 %v1104, %v1123
  %v1130 = vadd.s32 %v1126, 1
  %v1131 = vsel %vm1129, %v1130, %v1126
  %v1132 = vadd.s32 %v1127, %v1131
  %v1133 = vadd.s32 %v1132, 536870912
  %v1134 = vshrl.u32 %v1133, 30
  %v1135 = vshll.u32 %v1134, 30
  %v1136 = vsub.s32 %v1132, %v1135
  %vm1137 = vcmp.lt.s32.totalorder %v1136, 0
  %v1138 = vsub.s32 0, %v1136
  %v1139 = vsel %vm1137, %v1138, %v1136
  %v1140 = vclz %v1139
  %v1141 = vsub.s32 %v1140, 2
  %vm1142 = vcmp.gt.s32.totalorder 0, %v1141
  %v1143 = vsel %vm1142, 0, %v1141
  %v1144 = vsub.s32 32, %v1143
  %v1145 = vshll.u32 %v1136, %v1143
  %v1146 = vshrl.u32 %v1128, %v1144
  %v1147 = vor.u32 %v1145, %v1146
  %v1148 = vsub.s32 4294967266, %v1143
  %v1149 = vadd.s32 %v1148, 127
  %v1150 = vshll.u32 %v1149, 23
  %v1151 = vor.u32 4788187, %v1150
  %v1152 = vand.u32 2147483647, %v1151
  %v1154 = vcvt.s32.f32 %v1147
  %v1155 = vmul.f32 %v1154, %v1152
  %v1156 = vxor.u32 %v1155, 2147483648
  %v1157 = vsel %vm1036, %v1156, %v1155
  %v1158 = vsub.s32 4, %v1134
  %v1159 = vsel %vm1036, %v1158, %v1134
  %v1160 = vsel %vm1035, %v766, %v1157
  %v1161 = vsel %vm1035, 0, %v1159
  %v1162 = vmul.f32 %v1160, %v1160
  %v1163 = vmul.f32 %v1162, -0.001358992
  %v1164 = vadd.f32 %v1163, 0.041655596
  %v1165 = vmul.f32 %v1162, %v1164
  %v1166 = vadd.f32 %v1165, -0.4999988
  %v1167 = vmul.f32 %v1162, %v1166
  %v1168 = vadd.f32 1.0, %v1167
  %v1169 = vmul.f32 %v1160, %v1160
  %v1170 = vmul.f32 %v1169, -0.00019511016
  %v1171 = vadd.f32 %v1170, 0.008332121
  %v1172 = vmul.f32 %v1169, %v1171
  %v1173 = vadd.f32 %v1172, -0.16666654
  %v1174 = vmul.f32 %v1169, %v1173
  %v1175 = vadd.f32 %v1174, 1.0
  %v1176 = vmul.f32 %v1175, %v1160
  %vm1177 = vweird.f32 %v766
  %v1178 = vadd.s32 %v1161, 3
  %v1179 = vand.u32 %v1178, 3
  %vm1180 = vcmp.lt.s32.totalorder %v1179, 2
  %vm1181 = vcmp.eq.s32.totalorder %v1179, 0
  %v1182 = vxor.u32 %v1176, 2147483648
  %v1183 = vsel %vm1181, %v1168, %v1182
  %vm1184 = vcmp.eq.s32.totalorder %v1179, 2
  %v1185 = vxor.u32 %v1168, 2147483648
  %v1186 = vsel %vm1184, %v1185, %v1176
  %v1187 = vsel %vm1180, %v1183, %v1186
  %v1188 = vsel %vm1177, nan, %v1187
  %v1189 = vand.u32 2147483647, %v767
  %vm1190 = vcmp.le.f32.partialorder %v1189, 0.7853982
  %vm1191 = vcmp.lt.s32.totalorder %v767, 0
  %v1192 = vand.u32 %v767, 2139095040
  %v1193 = vshrl.u32 %v1192, 23
  %v1194 = vsub.s32 %v1193, 127
  %v1195 = vand.u32 2147483647, %v767
  %v1196 = vand.u32 %v1195, 8388607
  %v1197 = vor.u32 %v1196, 8388608
  %v1198 = vsub.s32 0, %v1197
  %v1199 = vadd.s32 %v1194, 1
  %vm1200 = vcmp.gt.s32.totalorder %v1199, 0
  %v1201 = vsel %vm1200, %v1199, 0
  %v1202 = vshrl.u32 %v1201, 5
  %v1203 = vand.u32 %v1201, 31
  %v1204 = vsub.s32 32, %v1203
  %v1205 = vshrl.u32 683565275, %v1204
  %v1206 = vshll.u32 683565275, %v1203
  %v1207 = vshrl.u32 2475754826, %v1204
  %v1208 = vor.u32 %v1206, %v1207
  %v1209 = vshll.u32 2475754826, %v1203
  %v1210 = vshrl.u32 2131351028, %v1204
  %v1211 = vor.u32 %v1209, %v1210
  %v1212 = vshll.u32 2131351028, %v1203
  %v1213 = vshrl.u32 2102212464, %v1204
  %v1214 = vor.u32 %v1212, %v1213
  %v1215 = vshll.u32 2102212464, %v1203
  %v1216 = vshrl.u32 920167782, %v1204
  %v1217 = vor.u32 %v1215, %v1216
  %v1218 = vshll.u32 920167782, %v1203
  %v1219 = vshrl.u32 1326507024, %v1204
  %v1220 = vor.u32 %v1218, %v1219
  %vm1221 = vcmp.lt.s32.totalorder %v1202, 1
  %vm1222 = vcmp.lt.s32.totalorder %v1202, 2
  %vm1223 = vcmp.lt.s32.totalorder %v1202, 3
  %vm1224 = vcmp.lt.s32.totalorder %v1202, 4
  %v1225 = vsel %vm1221, %v1205, %v1208
  %v1226 = vsel %vm1224, %v1214, 2102212464
  %v1227 = vsel %vm1223, %v1211, %v1226
  %v1228 = vsel %vm1222, %v1225, %v1227
  %v1229 = vsel %vm1221, %v1208, %v1211
  %v1230 = vsel %vm1224, %v1217, 920167782
  %v1231 = vsel %vm1223, %v1214, %v1230
  %v1232 = vsel %vm1222, %v1229, %v1231
  %v1233 = vsel %vm1221, %v1211, %v1214
  %v1234 = vsel %vm1224, %v1220, 1326507024
  %v1235 = vsel %vm1223, %v1217, %v1234
  %v1236 = vsel %vm1222, %v1233, %v1235
  %v1237 = vshll.u32 %v1197, 8
  %v1238 = vand.u32 %v1237, 65535
  %v1239 = vshrl.u32 %v1237, 16
  %v1240 = vand.u32 %v1236, 65535
  %v1241 = vshrl.u32 %v1236, 16
  %v1242 = vmul.u32 %v1238, %v1240
  %v1243 = vmul.u32 %v1238, %v1241
  %v1244 = vmul.u32 %v1239, %v1240
  %v1245 = vmul.u32 %v1239, %v1241
  %v1246 = vshll.u32 %v1243, 16
  %v1247 = vshrl.u32 %v1243, 16
  %v1248 = vshll.u32 %v1244, 16
  %v1249 = vshrl.u32 %v1244, 16
  %vm1250 = vc.u32 %v1242, %v1246
  %v1251 = vsel %vm1250, 1, 0
  %v1252 = vadd.s32 %v1242, %v1246
  %v1253 = vadd.s32 %v1245, %v1251
  %vm1254 = vc.u32 %v1252, %v1248
  %v1255 = vsel %vm1254, 1, 0
  %v1256 = vadd.s32 %v1252, %v1248
  %v1257 = vadd.s32 %v1253, %v1255
  %v1258 = vadd.s32 %v1257, %v1247
  %v1259 = vadd.s32 %v1258, %v1249
  %v1260 = vand.u32 %v1237, 65535
  %v1261 = vshrl.u32 %v1237, 16
  %v1262 = vand.u32 %v1232, 65535
  %v1263 = vshrl.u32 %v1232, 16
  %v1264 = vmul.u32 %v1260, %v1262
  %v1265 = vmul.u32 %v1260, %v1263
  %v1266 = vmul.u32 %v1261, %v1262
  %v1267 = vmul.u32 %v1261, %v1263
  %v1268 = vshll.u32 %v1265, 16
  %v1269 = vshrl.u32 %v1265, 16
  %v1270 = vshll.u32 %v1266, 16
  %v1271 = vshrl.u32 %v1266, 16
  %vm1272 = vc.u32 %v1264, %v1268
  %v1273 = vsel %vm1272, 1, 0
  %v1274 = vadd.s32 %v1264, %v1268
  %v1275 = vadd.s32 %v1267, %v1273
  %vm1276 = vc.u32 %v1274, %v1270
  %v1277 = vsel %vm1276, 1, 0
  %v1278 = vadd.s32 %v1274, %v1270
  %v1279 = vadd.s32 %v1275, %v1277
  %v1280 = vadd.s32 %v1279, %v1269
  %v1281 = vadd.s32 %v1280, %v1271
  %v1282 = vmul.u32 %v1237, %v1228
  %v1283 = vadd.s32 %v1259, %v1278
  %vm1284 = vc.u32 %v1259, %v1278
  %v1285 = vadd.s32 %v1281, 1
  %v1286 = vsel %vm1284, %v1285, %v1281
  %v1287 = vadd.s32 %v1282, %v1286
  %v1288 = vadd.s32 %v1287, 536870912
  %v1289 = vshrl.u32 %v1288, 30
  %v1290 = vshll.u32 %v1289, 30
  %v1291 = vsub.s32 %v1287, %v1290
  %vm1292 = vcmp.lt.s32.totalorder %v1291, 0
  %v1293 = vsub.s32 0, %v1291
  %v1294 = vsel %vm1292, %v1293, %v1291
  %v1295 = vclz %v1294
  %v1296 = vsub.s32 %v1295, 2
  %vm1297 = vcmp.gt.s32.totalorder 0, %v1296
  %v1298 = vsel %vm1297, 0, %v1296
  %v1299 = vsub.s32 32, %v1298
  %v1300 = vshll.u32 %v1291, %v1298
  %v1301 = vshrl.u32 %v1283, %v1299
  %v1302 = vor.u32 %v1300, %v1301
  %v1303 = vsub.s32 4294967266, %v1298
  %v1304 = vadd.s32 %v1303, 127
  %v1305 = vshll.u32 %v1304, 23
  %v1306 = vor.u32 4788187, %v1305
  %v1307 = vand.u32 2147483647, %v1306
  %v1309 = vcvt.s32.f32 %v1302
  %v1310 = vmul.f32 %v1309, %v1307
  %v1311 = vxor.u32 %v1310, 2147483648
  %v1312 = vsel %vm1191, %v1311, %v1310
  %v1313 = vsub.s32 4, %v1289
  %v1314 = vsel %vm1191, %v1313, %v1289
  %v1315 = vsel %vm1190, %v767, %v1312
  %v1316 = vsel %vm1190, 0, %v1314
  %v1317 = vmul.f32 %v1315, %v1315
  %v1318 = vmul.f32 %v1317, -0.001358992
  %v1319 = vadd.f32 %v1318, 0.041655596
  %v1320 = vmul.f32 %v1317, %v1319
  %v1321 = vadd.f32 %v1320, -0.4999988
  %v1322 = vmul.f32 %v1317, %v1321
  %v1323 = vadd.f32 1.0, %v1322
  %v1324 = vmul.f32 %v1315, %v1315
  %v1325 = vmul.f32 %v1324, -0.00019511016
  %v1326 = vadd.f32 %v1325, 0.008332121
  %v1327 = vmul.f32 %v1324, %v1326
  %v1328 = vadd.f32 %v1327, -0.16666654
  %v1329 = vmul.f32 %v1324, %v1328
  %v1330 = vadd.f32 %v1329, 1.0
  %v1331 = vmul.f32 %v1330, %v1315
  %vm1332 = vweird.f32 %v767
  %v1333 = vadd.s32 %v1316, 3
  %v1334 = vand.u32 %v1333, 3
  %vm1335 = vcmp.lt.s32.totalorder %v1334, 2
  %vm1336 = vcmp.eq.s32.totalorder %v1334, 0
  %v1337 = vxor.u32 %v1331, 2147483648
  %v1338 = vsel %vm1336, %v1323, %v1337
  %vm1339 = vcmp.eq.s32.totalorder %v1334, 2
  %v1340 = vxor.u32 %v1323, 2147483648
  %v1341 = vsel %vm1339, %v1340, %v1331
  %v1342 = vsel %vm1335, %v1338, %v1341
  %v1343 = vsel %vm1332, nan, %v1342
  %v1344 = vand.u32 2147483647, %v768
  %vm1345 = vcmp.le.f32.partialorder %v1344, 0.7853982
  %vm1346 = vcmp.lt.s32.totalorder %v768, 0
  %v1347 = vand.u32 %v768, 2139095040
  %v1348 = vshrl.u32 %v1347, 23
  %v1349 = vsub.s32 %v1348, 127
  %v1350 = vand.u32 2147483647, %v768
  %v1351 = vand.u32 %v1350, 8388607
  %v1352 = vor.u32 %v1351, 8388608
  %v1353 = vsub.s32 0, %v1352
  %v1354 = vadd.s32 %v1349, 1
  %vm1355 = vcmp.gt.s32.totalorder %v1354, 0
  %v1356 = vsel %vm1355, %v1354, 0
  %v1357 = vshrl.u32 %v1356, 5
  %v1358 = vand.u32 %v1356, 31
  %v1359 = vsub.s32 32, %v1358
  %v1360 = vshrl.u32 683565275, %v1359
  %v1361 = vshll.u32 683565275, %v1358
  %v1362 = vshrl.u32 2475754826, %v1359
  %v1363 = vor.u32 %v1361, %v1362
  %v1364 = vshll.u32 2475754826, %v1358
  %v1365 = vshrl.u32 2131351028, %v1359
  %v1366 = vor.u32 %v1364, %v1365
  %v1367 = vshll.u32 2131351028, %v1358
  %v1368 = vshrl.u32 2102212464, %v1359
  %v1369 = vor.u32 %v1367, %v1368
  %v1370 = vshll.u32 2102212464, %v1358
  %v1371 = vshrl.u32 920167782, %v1359
  %v1372 = vor.u32 %v1370, %v1371
  %v1373 = vshll.u32 920167782, %v1358
  %v1374 = vshrl.u32 1326507024, %v1359
  %v1375 = vor.u32 %v1373, %v1374
  %vm1376 = vcmp.lt.s32.totalorder %v1357, 1
  %vm1377 = vcmp.lt.s32.totalorder %v1357, 2
  %vm1378 = vcmp.lt.s32.totalorder %v1357, 3
  %vm1379 = vcmp.lt.s32.totalorder %v1357, 4
  %v1380 = vsel %vm1376, %v1360, %v1363
  %v1381 = vsel %vm1379, %v1369, 2102212464
  %v1382 = vsel %vm1378, %v1366, %v1381
  %v1383 = vsel %vm1377, %v1380, %v1382
  %v1384 = vsel %vm1376, %v1363, %v1366
  %v1385 = vsel %vm1379, %v1372, 920167782
  %v1386 = vsel %vm1378, %v1369, %v1385
  %v1387 = vsel %vm1377, %v1384, %v1386
  %v1388 = vsel %vm1376, %v1366, %v1369
  %v1389 = vsel %vm1379, %v1375, 1326507024
  %v1390 = vsel %vm1378, %v1372, %v1389
  %v1391 = vsel %vm1377, %v1388, %v1390
  %v1392 = vshll.u32 %v1352, 8
  %v1393 = vand.u32 %v1392, 65535
  %v1394 = vshrl.u32 %v1392, 16
  %v1395 = vand.u32 %v1391, 65535
  %v1396 = vshrl.u32 %v1391, 16
  %v1397 = vmul.u32 %v1393, %v1395
  %v1398 = vmul.u32 %v1393, %v1396
  %v1399 = vmul.u32 %v1394, %v1395
  %v1400 = vmul.u32 %v1394, %v1396
  %v1401 = vshll.u32 %v1398, 16
  %v1402 = vshrl.u32 %v1398, 16
  %v1403 = vshll.u32 %v1399, 16
  %v1404 = vshrl.u32 %v1399, 16
  %vm1405 = vc.u32 %v1397, %v1401
  %v1406 = vsel %vm1405, 1, 0
  %v1407 = vadd.s32 %v1397, %v1401
  %v1408 = vadd.s32 %v1400, %v1406
  %vm1409 = vc.u32 %v1407, %v1403
  %v1410 = vsel %vm1409, 1, 0
  %v1411 = vadd.s32 %v1407, %v1403
  %v1412 = vadd.s32 %v1408, %v1410
  %v1413 = vadd.s32 %v1412, %v1402
  %v1414 = vadd.s32 %v1413, %v1404
  %v1415 = vand.u32 %v1392, 65535
  %v1416 = vshrl.u32 %v1392, 16
  %v1417 = vand.u32 %v1387, 65535
  %v1418 = vshrl.u32 %v1387, 16
  %v1419 = vmul.u32 %v1415, %v1417
  %v1420 = vmul.u32 %v1415, %v1418
  %v1421 = vmul.u32 %v1416, %v1417
  %v1422 = vmul.u32 %v1416, %v1418
  %v1423 = vshll.u32 %v1420, 16
  %v1424 = vshrl.u32 %v1420, 16
  %v1425 = vshll.u32 %v1421, 16
  %v1426 = vshrl.u32 %v1421, 16
  %vm1427 = vc.u32 %v1419, %v1423
  %v1428 = vsel %vm1427, 1, 0
  %v1429 = vadd.s32 %v1419, %v1423
  %v1430 = vadd.s32 %v1422, %v1428
  %vm1431 = vc.u32 %v1429, %v1425
  %v1432 = vsel %vm1431, 1, 0
  %v1433 = vadd.s32 %v1429, %v1425
  %v1434 = vadd.s32 %v1430, %v1432
  %v1435 = vadd.s32 %v1434, %v1424
  %v1436 = vadd.s32 %v1435, %v1426
  %v1437 = vmul.u32 %v1392, %v1383
  %v1438 = vadd.s32 %v1414, %v1433
  %vm1439 = vc.u32 %v1414, %v1433
  %v1440 = vadd.s32 %v1436, 1
  %v1441 = vsel %vm1439, %v1440, %v1436
  %v1442 = vadd.s32 %v1437, %v1441
  %v1443 = vadd.s32 %v1442, 536870912
  %v1444 = vshrl.u32 %v1443, 30
  %v1445 = vshll.u32 %v1444, 30
  %v1446 = vsub.s32 %v1442, %v1445
  %vm1447 = vcmp.lt.s32.totalorder %v1446, 0
  %v1448 = vsub.s32 0, %v1446
  %v1449 = vsel %vm1447, %v1448, %v1446
  %v1450 = vclz %v1449
  %v1451 = vsub.s32 %v1450, 2
  %vm1452 = vcmp.gt.s32.totalorder 0, %v1451
  %v1453 = vsel %vm1452, 0, %v1451
  %v1454 = vsub.s32 32, %v1453
  %v1455 = vshll.u32 %v1446, %v1453
  %v1456 = vshrl.u32 %v1438, %v1454
  %v1457 = vor.u32 %v1455, %v1456
  %v1458 = vsub.s32 4294967266, %v1453
  %v1459 = vadd.s32 %v1458, 127
  %v1460 = vshll.u32 %v1459, 23
  %v1461 = vor.u32 4788187, %v1460
  %v1462 = vand.u32 2147483647, %v1461
  %v1464 = vcvt.s32.f32 %v1457
  %v1465 = vmul.f32 %v1464, %v1462
  %v1466 = vxor.u32 %v1465, 2147483648
  %v1467 = vsel %vm1346, %v1466, %v1465
  %v1468 = vsub.s32 4, %v1444
  %v1469 = vsel %vm1346, %v1468, %v1444
  %v1470 = vsel %vm1345, %v768, %v1467
  %v1471 = vsel %vm1345, 0, %v1469
  %v1472 = vmul.f32 %v1470, %v1470
  %v1473 = vmul.f32 %v1472, -0.001358992
  %v1474 = vadd.f32 %v1473, 0.041655596
  %v1475 = vmul.f32 %v1472, %v1474
  %v1476 = vadd.f32 %v1475, -0.4999988
  %v1477 = vmul.f32 %v1472, %v1476
  %v1478 = vadd.f32 1.0, %v1477
  %v1479 = vmul.f32 %v1470, %v1470
  %v1480 = vmul.f32 %v1479, -0.00019511016
  %v1481 = vadd.f32 %v1480, 0.008332121
  %v1482 = vmul.f32 %v1479, %v1481
  %v1483 = vadd.f32 %v1482, -0.16666654
  %v1484 = vmul.f32 %v1479, %v1483
  %v1485 = vadd.f32 %v1484, 1.0
  %v1486 = vmul.f32 %v1485, %v1470
  %vm1487 = vweird.f32 %v768
  %v1488 = vadd.s32 %v1471, 3
  %v1489 = vand.u32 %v1488, 3
  %vm1490 = vcmp.lt.s32.totalorder %v1489, 2
  %vm1491 = vcmp.eq.s32.totalorder %v1489, 0
  %v1492 = vxor.u32 %v1486, 2147483648
  %v1493 = vsel %vm1491, %v1478, %v1492
  %vm1494 = vcmp.eq.s32.totalorder %v1489, 2
  %v1495 = vxor.u32 %v1478, 2147483648
  %v1496 = vsel %vm1494, %v1495, %v1486
  %v1497 = vsel %vm1490, %v1493, %v1496
  %v1498 = vsel %vm1487, nan, %v1497
  %v1499 = vand.u32 2147483647, %v769
  %vm1500 = vcmp.le.f32.partialorder %v1499, 0.7853982
  %vm1501 = vcmp.lt.s32.totalorder %v769, 0
  %v1502 = vand.u32 %v769, 2139095040
  %v1503 = vshrl.u32 %v1502, 23
  %v1504 = vsub.s32 %v1503, 127
  %v1505 = vand.u32 2147483647, %v769
  %v1506 = vand.u32 %v1505, 8388607
  %v1507 = vor.u32 %v1506, 8388608
  %v1508 = vsub.s32 0, %v1507
  %v1509 = vadd.s32 %v1504, 1
  %vm1510 = vcmp.gt.s32.totalorder %v1509, 0
  %v1511 = vsel %vm1510, %v1509, 0
  %v1512 = vshrl.u32 %v1511, 5
  %v1513 = vand.u32 %v1511, 31
  %v1514 = vsub.s32 32, %v1513
  %v1515 = vshrl.u32 683565275, %v1514
  %v1516 = vshll.u32 683565275, %v1513
  %v1517 = vshrl.u32 2475754826, %v1514
  %v1518 = vor.u32 %v1516, %v1517
  %v1519 = vshll.u32 2475754826, %v1513
  %v1520 = vshrl.u32 2131351028, %v1514
  %v1521 = vor.u32 %v1519, %v1520
  %v1522 = vshll.u32 2131351028, %v1513
  %v1523 = vshrl.u32 2102212464, %v1514
  %v1524 = vor.u32 %v1522, %v1523
  %v1525 = vshll.u32 2102212464, %v1513
  %v1526 = vshrl.u32 920167782, %v1514
  %v1527 = vor.u32 %v1525, %v1526
  %v1528 = vshll.u32 920167782, %v1513
  %v1529 = vshrl.u32 1326507024, %v1514
  %v1530 = vor.u32 %v1528, %v1529
  %vm1531 = vcmp.lt.s32.totalorder %v1512, 1
  %vm1532 = vcmp.lt.s32.totalorder %v1512, 2
  %vm1533 = vcmp.lt.s32.totalorder %v1512, 3
  %vm1534 = vcmp.lt.s32.totalorder %v1512, 4
  %v1535 = vsel %vm1531, %v1515, %v1518
  %v1536 = vsel %vm1534, %v1524, 2102212464
  %v1537 = vsel %vm1533, %v1521, %v1536
  %v1538 = vsel %vm1532, %v1535, %v1537
  %v1539 = vsel %vm1531, %v1518, %v1521
  %v1540 = vsel %vm1534, %v1527, 920167782
  %v1541 = vsel %vm1533, %v1524, %v1540
  %v1542 = vsel %vm1532, %v1539, %v1541
  %v1543 = vsel %vm1531, %v1521, %v1524
  %v1544 = vsel %vm1534, %v1530, 1326507024
  %v1545 = vsel %vm1533, %v1527, %v1544
  %v1546 = vsel %vm1532, %v1543, %v1545
  %v1547 = vshll.u32 %v1507, 8
  %v1548 = vand.u32 %v1547, 65535
  %v1549 = vshrl.u32 %v1547, 16
  %v1550 = vand.u32 %v1546, 65535
  %v1551 = vshrl.u32 %v1546, 16
  %v1552 = vmul.u32 %v1548, %v1550
  %v1553 = vmul.u32 %v1548, %v1551
  %v1554 = vmul.u32 %v1549, %v1550
  %v1555 = vmul.u32 %v1549, %v1551
  %v1556 = vshll.u32 %v1553, 16
  %v1557 = vshrl.u32 %v1553, 16
  %v1558 = vshll.u32 %v1554, 16
  %v1559 = vshrl.u32 %v1554, 16
  %vm1560 = vc.u32 %v1552, %v1556
  %v1561 = vsel %vm1560, 1, 0
  %v1562 = vadd.s32 %v1552, %v1556
  %v1563 = vadd.s32 %v1555, %v1561
  %vm1564 = vc.u32 %v1562, %v1558
  %v1565 = vsel %vm1564, 1, 0
  %v1566 = vadd.s32 %v1562, %v1558
  %v1567 = vadd.s32 %v1563, %v1565
  %v1568 = vadd.s32 %v1567, %v1557
  %v1569 = vadd.s32 %v1568, %v1559
  %v1570 = vand.u32 %v1547, 65535
  %v1571 = vshrl.u32 %v1547, 16
  %v1572 = vand.u32 %v1542, 65535
  %v1573 = vshrl.u32 %v1542, 16
  %v1574 = vmul.u32 %v1570, %v1572
  %v1575 = vmul.u32 %v1570, %v1573
  %v1576 = vmul.u32 %v1571, %v1572
  %v1577 = vmul.u32 %v1571, %v1573
  %v1578 = vshll.u32 %v1575, 16
  %v1579 = vshrl.u32 %v1575, 16
  %v1580 = vshll.u32 %v1576, 16
  %v1581 = vshrl.u32 %v1576, 16
  %vm1582 = vc.u32 %v1574, %v1578
  %v1583 = vsel %vm1582, 1, 0
  %v1584 = vadd.s32 %v1574, %v1578
  %v1585 = vadd.s32 %v1577, %v1583
  %vm1586 = vc.u32 %v1584, %v1580
  %v1587 = vsel %vm1586, 1, 0
  %v1588 = vadd.s32 %v1584, %v1580
  %v1589 = vadd.s32 %v1585, %v1587
  %v1590 = vadd.s32 %v1589, %v1579
  %v1591 = vadd.s32 %v1590, %v1581
  %v1592 = vmul.u32 %v1547, %v1538
  %v1593 = vadd.s32 %v1569, %v1588
  %vm1594 = vc.u32 %v1569, %v1588
  %v1595 = vadd.s32 %v1591, 1
  %v1596 = vsel %vm1594, %v1595, %v1591
  %v1597 = vadd.s32 %v1592, %v1596
  %v1598 = vadd.s32 %v1597, 536870912
  %v1599 = vshrl.u32 %v1598, 30
  %v1600 = vshll.u32 %v1599, 30
  %v1601 = vsub.s32 %v1597, %v1600
  %vm1602 = vcmp.lt.s32.totalorder %v1601, 0
  %v1603 = vsub.s32 0, %v1601
  %v1604 = vsel %vm1602, %v1603, %v1601
  %v1605 = vclz %v1604
  %v1606 = vsub.s32 %v1605, 2
  %vm1607 = vcmp.gt.s32.totalorder 0, %v1606
  %v1608 = vsel %vm1607, 0, %v1606
  %v1609 = vsub.s32 32, %v1608
  %v1610 = vshll.u32 %v1601, %v1608
  %v1611 = vshrl.u32 %v1593, %v1609
  %v1612 = vor.u32 %v1610, %v1611
  %v1613 = vsub.s32 4294967266, %v1608
  %v1614 = vadd.s32 %v1613, 127
  %v1615 = vshll.u32 %v1614, 23
  %v1616 = vor.u32 4788187, %v1615
  %v1617 = vand.u32 2147483647, %v1616
  %v1619 = vcvt.s32.f32 %v1612
  %v1620 = vmul.f32 %v1619, %v1617
  %v1621 = vxor.u32 %v1620, 2147483648
  %v1622 = vsel %vm1501, %v1621, %v1620
  %v1623 = vsub.s32 4, %v1599
  %v1624 = vsel %vm1501, %v1623, %v1599
  %v1625 = vsel %vm1500, %v769, %v1622
  %v1626 = vsel %vm1500, 0, %v1624
  %v1627 = vmul.f32 %v1625, %v1625
  %v1628 = vmul.f32 %v1627, -0.001358992
  %v1629 = vadd.f32 %v1628, 0.041655596
  %v1630 = vmul.f32 %v1627, %v1629
  %v1631 = vadd.f32 %v1630, -0.4999988
  %v1632 = vmul.f32 %v1627, %v1631
  %v1633 = vadd.f32 1.0, %v1632
  %v1634 = vmul.f32 %v1625, %v1625
  %v1635 = vmul.f32 %v1634, -0.00019511016
  %v1636 = vadd.f32 %v1635, 0.008332121
  %v1637 = vmul.f32 %v1634, %v1636
  %v1638 = vadd.f32 %v1637, -0.16666654
  %v1639 = vmul.f32 %v1634, %v1638
  %v1640 = vadd.f32 %v1639, 1.0
  %v1641 = vmul.f32 %v1640, %v1625
  %vm1642 = vweird.f32 %v769
  %v1643 = vadd.s32 %v1626, 3
  %v1644 = vand.u32 %v1643, 3
  %vm1645 = vcmp.lt.s32.totalorder %v1644, 2
  %vm1646 = vcmp.eq.s32.totalorder %v1644, 0
  %v1647 = vxor.u32 %v1641, 2147483648
  %v1648 = vsel %vm1646, %v1633, %v1647
  %vm1649 = vcmp.eq.s32.totalorder %v1644, 2
  %v1650 = vxor.u32 %v1633, 2147483648
  %v1651 = vsel %vm1649, %v1650, %v1641
  %v1652 = vsel %vm1645, %v1648, %v1651
  %v1653 = vsel %vm1642, nan, %v1652
  %v1654 = vand.u32 2147483647, %v770
  %vm1655 = vcmp.le.f32.partialorder %v1654, 0.7853982
  %vm1656 = vcmp.lt.s32.totalorder %v770, 0
  %v1657 = vand.u32 %v770, 2139095040
  %v1658 = vshrl.u32 %v1657, 23
  %v1659 = vsub.s32 %v1658, 127
  %v1660 = vand.u32 2147483647, %v770
  %v1661 = vand.u32 %v1660, 8388607
  %v1662 = vor.u32 %v1661, 8388608
  %v1663 = vsub.s32 0, %v1662
  %v1664 = vadd.s32 %v1659, 1
  %vm1665 = vcmp.gt.s32.totalorder %v1664, 0
  %v1666 = vsel %vm1665, %v1664, 0
  %v1667 = vshrl.u32 %v1666, 5
  %v1668 = vand.u32 %v1666, 31
  %v1669 = vsub.s32 32, %v1668
  %v1670 = vshrl.u32 683565275, %v1669
  %v1671 = vshll.u32 683565275, %v1668
  %v1672 = vshrl.u32 2475754826, %v1669
  %v1673 = vor.u32 %v1671, %v1672
  %v1674 = vshll.u32 2475754826, %v1668
  %v1675 = vshrl.u32 2131351028, %v1669
  %v1676 = vor.u32 %v1674, %v1675
  %v1677 = vshll.u32 2131351028, %v1668
  %v1678 = vshrl.u32 2102212464, %v1669
  %v1679 = vor.u32 %v1677, %v1678
  %v1680 = vshll.u32 2102212464, %v1668
  %v1681 = vshrl.u32 920167782, %v1669
  %v1682 = vor.u32 %v1680, %v1681
  %v1683 = vshll.u32 920167782, %v1668
  %v1684 = vshrl.u32 1326507024, %v1669
  %v1685 = vor.u32 %v1683, %v1684
  %vm1686 = vcmp.lt.s32.totalorder %v1667, 1
  %vm1687 = vcmp.lt.s32.totalorder %v1667, 2
  %vm1688 = vcmp.lt.s32.totalorder %v1667, 3
  %vm1689 = vcmp.lt.s32.totalorder %v1667, 4
  %v1690 = vsel %vm1686, %v1670, %v1673
  %v1691 = vsel %vm1689, %v1679, 2102212464
  %v1692 = vsel %vm1688, %v1676, %v1691
  %v1693 = vsel %vm1687, %v1690, %v1692
  %v1694 = vsel %vm1686, %v1673, %v1676
  %v1695 = vsel %vm1689, %v1682, 920167782
  %v1696 = vsel %vm1688, %v1679, %v1695
  %v1697 = vsel %vm1687, %v1694, %v1696
  %v1698 = vsel %vm1686, %v1676, %v1679
  %v1699 = vsel %vm1689, %v1685, 1326507024
  %v1700 = vsel %vm1688, %v1682, %v1699
  %v1701 = vsel %vm1687, %v1698, %v1700
  %v1702 = vshll.u32 %v1662, 8
  %v1703 = vand.u32 %v1702, 65535
  %v1704 = vshrl.u32 %v1702, 16
  %v1705 = vand.u32 %v1701, 65535
  %v1706 = vshrl.u32 %v1701, 16
  %v1707 = vmul.u32 %v1703, %v1705
  %v1708 = vmul.u32 %v1703, %v1706
  %v1709 = vmul.u32 %v1704, %v1705
  %v1710 = vmul.u32 %v1704, %v1706
  %v1711 = vshll.u32 %v1708, 16
  %v1712 = vshrl.u32 %v1708, 16
  %v1713 = vshll.u32 %v1709, 16
  %v1714 = vshrl.u32 %v1709, 16
  %vm1715 = vc.u32 %v1707, %v1711
  %v1716 = vsel %vm1715, 1, 0
  %v1717 = vadd.s32 %v1707, %v1711
  %v1718 = vadd.s32 %v1710, %v1716
  %vm1719 = vc.u32 %v1717, %v1713
  %v1720 = vsel %vm1719, 1, 0
  %v1721 = vadd.s32 %v1717, %v1713
  %v1722 = vadd.s32 %v1718, %v1720
  %v1723 = vadd.s32 %v1722, %v1712
  %v1724 = vadd.s32 %v1723, %v1714
  %v1725 = vand.u32 %v1702, 65535
  %v1726 = vshrl.u32 %v1702, 16
  %v1727 = vand.u32 %v1697, 65535
  %v1728 = vshrl.u32 %v1697, 16
  %v1729 = vmul.u32 %v1725, %v1727
  %v1730 = vmul.u32 %v1725, %v1728
  %v1731 = vmul.u32 %v1726, %v1727
  %v1732 = vmul.u32 %v1726, %v1728
  %v1733 = vshll.u32 %v1730, 16
  %v1734 = vshrl.u32 %v1730, 16
  %v1735 = vshll.u32 %v1731, 16
  %v1736 = vshrl.u32 %v1731, 16
  %vm1737 = vc.u32 %v1729, %v1733
  %v1738 = vsel %vm1737, 1, 0
  %v1739 = vadd.s32 %v1729, %v1733
  %v1740 = vadd.s32 %v1732, %v1738
  %vm1741 = vc.u32 %v1739, %v1735
  %v1742 = vsel %vm1741, 1, 0
  %v1743 = vadd.s32 %v1739, %v1735
  %v1744 = vadd.s32 %v1740, %v1742
  %v1745 = vadd.s32 %v1744, %v1734
  %v1746 = vadd.s32 %v1745, %v1736
  %v1747 = vmul.u32 %v1702, %v1693
  %v1748 = vadd.s32 %v1724, %v1743
  %vm1749 = vc.u32 %v1724, %v1743
  %v1750 = vadd.s32 %v1746, 1
  %v1751 = vsel %vm1749, %v1750, %v1746
  %v1752 = vadd.s32 %v1747, %v1751
  %v1753 = vadd.s32 %v1752, 536870912
  %v1754 = vshrl.u32 %v1753, 30
  %v1755 = vshll.u32 %v1754, 30
  %v1756 = vsub.s32 %v1752, %v1755
  %vm1757 = vcmp.lt.s32.totalorder %v1756, 0
  %v1758 = vsub.s32 0, %v1756
  %v1759 = vsel %vm1757, %v1758, %v1756
  %v1760 = vclz %v1759
  %v1761 = vsub.s32 %v1760, 2
  %vm1762 = vcmp.gt.s32.totalorder 0, %v1761
  %v1763 = vsel %vm1762, 0, %v1761
  %v1764 = vsub.s32 32, %v1763
  %v1765 = vshll.u32 %v1756, %v1763
  %v1766 = vshrl.u32 %v1748, %v1764
  %v1767 = vor.u32 %v1765, %v1766
  %v1768 = vsub.s32 4294967266, %v1763
  %v1769 = vadd.s32 %v1768, 127
  %v1770 = vshll.u32 %v1769, 23
  %v1771 = vor.u32 4788187, %v1770
  %v1772 = vand.u32 2147483647, %v1771
  %v1774 = vcvt.s32.f32 %v1767
  %v1775 = vmul.f32 %v1774, %v1772
  %v1776 = vxor.u32 %v1775, 2147483648
  %v1777 = vsel %vm1656, %v1776, %v1775
  %v1778 = vsub.s32 4, %v1754
  %v1779 = vsel %vm1656, %v1778, %v1754
  %v1780 = vsel %vm1655, %v770, %v1777
  %v1781 = vsel %vm1655, 0, %v1779
  %v1782 = vmul.f32 %v1780, %v1780
  %v1783 = vmul.f32 %v1782, -0.001358992
  %v1784 = vadd.f32 %v1783, 0.041655596
  %v1785 = vmul.f32 %v1782, %v1784
  %v1786 = vadd.f32 %v1785, -0.4999988
  %v1787 = vmul.f32 %v1782, %v1786
  %v1788 = vadd.f32 1.0, %v1787
  %v1789 = vmul.f32 %v1780, %v1780
  %v1790 = vmul.f32 %v1789, -0.00019511016
  %v1791 = vadd.f32 %v1790, 0.008332121
  %v1792 = vmul.f32 %v1789, %v1791
  %v1793 = vadd.f32 %v1792, -0.16666654
  %v1794 = vmul.f32 %v1789, %v1793
  %v1795 = vadd.f32 %v1794, 1.0
  %v1796 = vmul.f32 %v1795, %v1780
  %vm1797 = vweird.f32 %v770
  %v1798 = vadd.s32 %v1781, 3
  %v1799 = vand.u32 %v1798, 3
  %vm1800 = vcmp.lt.s32.totalorder %v1799, 2
  %vm1801 = vcmp.eq.s32.totalorder %v1799, 0
  %v1802 = vxor.u32 %v1796, 2147483648
  %v1803 = vsel %vm1801, %v1788, %v1802
  %vm1804 = vcmp.eq.s32.totalorder %v1799, 2
  %v1805 = vxor.u32 %v1788, 2147483648
  %v1806 = vsel %vm1804, %v1805, %v1796
  %v1807 = vsel %vm1800, %v1803, %v1806
  %v1808 = vsel %vm1797, nan, %v1807
  %v1809 = vand.u32 2147483647, %v771
  %vm1810 = vcmp.le.f32.partialorder %v1809, 0.7853982
  %vm1811 = vcmp.lt.s32.totalorder %v771, 0
  %v1812 = vand.u32 %v771, 2139095040
  %v1813 = vshrl.u32 %v1812, 23
  %v1814 = vsub.s32 %v1813, 127
  %v1815 = vand.u32 2147483647, %v771
  %v1816 = vand.u32 %v1815, 8388607
  %v1817 = vor.u32 %v1816, 8388608
  %v1818 = vsub.s32 0, %v1817
  %v1819 = vadd.s32 %v1814, 1
  %vm1820 = vcmp.gt.s32.totalorder %v1819, 0
  %v1821 = vsel %vm1820, %v1819, 0
  %v1822 = vshrl.u32 %v1821, 5
  %v1823 = vand.u32 %v1821, 31
  %v1824 = vsub.s32 32, %v1823
  %v1825 = vshrl.u32 683565275, %v1824
  %v1826 = vshll.u32 683565275, %v1823
  %v1827 = vshrl.u32 2475754826, %v1824
  %v1828 = vor.u32 %v1826, %v1827
  %v1829 = vshll.u32 2475754826, %v1823
  %v1830 = vshrl.u32 2131351028, %v1824
  %v1831 = vor.u32 %v1829, %v1830
  %v1832 = vshll.u32 2131351028, %v1823
  %v1833 = vshrl.u32 2102212464, %v1824
  %v1834 = vor.u32 %v1832, %v1833
  %v1835 = vshll.u32 2102212464, %v1823
  %v1836 = vshrl.u32 920167782, %v1824
  %v1837 = vor.u32 %v1835, %v1836
  %v1838 = vshll.u32 920167782, %v1823
  %v1839 = vshrl.u32 1326507024, %v1824
  %v1840 = vor.u32 %v1838, %v1839
  %vm1841 = vcmp.lt.s32.totalorder %v1822, 1
  %vm1842 = vcmp.lt.s32.totalorder %v1822, 2
  %vm1843 = vcmp.lt.s32.totalorder %v1822, 3
  %vm1844 = vcmp.lt.s32.totalorder %v1822, 4
  %v1845 = vsel %vm1841, %v1825, %v1828
  %v1846 = vsel %vm1844, %v1834, 2102212464
  %v1847 = vsel %vm1843, %v1831, %v1846
  %v1848 = vsel %vm1842, %v1845, %v1847
  %v1849 = vsel %vm1841, %v1828, %v1831
  %v1850 = vsel %vm1844, %v1837, 920167782
  %v1851 = vsel %vm1843, %v1834, %v1850
  %v1852 = vsel %vm1842, %v1849, %v1851
  %v1853 = vsel %vm1841, %v1831, %v1834
  %v1854 = vsel %vm1844, %v1840, 1326507024
  %v1855 = vsel %vm1843, %v1837, %v1854
  %v1856 = vsel %vm1842, %v1853, %v1855
  %v1857 = vshll.u32 %v1817, 8
  %v1858 = vand.u32 %v1857, 65535
  %v1859 = vshrl.u32 %v1857, 16
  %v1860 = vand.u32 %v1856, 65535
  %v1861 = vshrl.u32 %v1856, 16
  %v1862 = vmul.u32 %v1858, %v1860
  %v1863 = vmul.u32 %v1858, %v1861
  %v1864 = vmul.u32 %v1859, %v1860
  %v1865 = vmul.u32 %v1859, %v1861
  %v1866 = vshll.u32 %v1863, 16
  %v1867 = vshrl.u32 %v1863, 16
  %v1868 = vshll.u32 %v1864, 16
  %v1869 = vshrl.u32 %v1864, 16
  %vm1870 = vc.u32 %v1862, %v1866
  %v1871 = vsel %vm1870, 1, 0
  %v1872 = vadd.s32 %v1862, %v1866
  %v1873 = vadd.s32 %v1865, %v1871
  %vm1874 = vc.u32 %v1872, %v1868
  %v1875 = vsel %vm1874, 1, 0
  %v1876 = vadd.s32 %v1872, %v1868
  %v1877 = vadd.s32 %v1873, %v1875
  %v1878 = vadd.s32 %v1877, %v1867
  %v1879 = vadd.s32 %v1878, %v1869
  %v1880 = vand.u32 %v1857, 65535
  %v1881 = vshrl.u32 %v1857, 16
  %v1882 = vand.u32 %v1852, 65535
  %v1883 = vshrl.u32 %v1852, 16
  %v1884 = vmul.u32 %v1880, %v1882
  %v1885 = vmul.u32 %v1880, %v1883
  %v1886 = vmul.u32 %v1881, %v1882
  %v1887 = vmul.u32 %v1881, %v1883
  %v1888 = vshll.u32 %v1885, 16
  %v1889 = vshrl.u32 %v1885, 16
  %v1890 = vshll.u32 %v1886, 16
  %v1891 = vshrl.u32 %v1886, 16
  %vm1892 = vc.u32 %v1884, %v1888
  %v1893 = vsel %vm1892, 1, 0
  %v1894 = vadd.s32 %v1884, %v1888
  %v1895 = vadd.s32 %v1887, %v1893
  %vm1896 = vc.u32 %v1894, %v1890
  %v1897 = vsel %vm1896, 1, 0
  %v1898 = vadd.s32 %v1894, %v1890
  %v1899 = vadd.s32 %v1895, %v1897
  %v1900 = vadd.s32 %v1899, %v1889
  %v1901 = vadd.s32 %v1900, %v1891
  %v1902 = vmul.u32 %v1857, %v1848
  %v1903 = vadd.s32 %v1879, %v1898
  %vm1904 = vc.u32 %v1879, %v1898
  %v1905 = vadd.s32 %v1901, 1
  %v1906 = vsel %vm1904, %v1905, %v1901
  %v1907 = vadd.s32 %v1902, %v1906
  %v1908 = vadd.s32 %v1907, 536870912
  %v1909 = vshrl.u32 %v1908, 30
  %v1910 = vshll.u32 %v1909, 30
  %v1911 = vsub.s32 %v1907, %v1910
  %vm1912 = vcmp.lt.s32.totalorder %v1911, 0
  %v1913 = vsub.s32 0, %v1911
  %v1914 = vsel %vm1912, %v1913, %v1911
  %v1915 = vclz %v1914
  %v1916 = vsub.s32 %v1915, 2
  %vm1917 = vcmp.gt.s32.totalorder 0, %v1916
  %v1918 = vsel %vm1917, 0, %v1916
  %v1919 = vsub.s32 32, %v1918
  %v1920 = vshll.u32 %v1911, %v1918
  %v1921 = vshrl.u32 %v1903, %v1919
  %v1922 = vor.u32 %v1920, %v1921
  %v1923 = vsub.s32 4294967266, %v1918
  %v1924 = vadd.s32 %v1923, 127
  %v1925 = vshll.u32 %v1924, 23
  %v1926 = vor.u32 4788187, %v1925
  %v1927 = vand.u32 2147483647, %v1926
  %v1929 = vcvt.s32.f32 %v1922
  %v1930 = vmul.f32 %v1929, %v1927
  %v1931 = vxor.u32 %v1930, 2147483648
  %v1932 = vsel %vm1811, %v1931, %v1930
  %v1933 = vsub.s32 4, %v1909
  %v1934 = vsel %vm1811, %v1933, %v1909
  %v1935 = vsel %vm1810, %v771, %v1932
  %v1936 = vsel %vm1810, 0, %v1934
  %v1937 = vmul.f32 %v1935, %v1935
  %v1938 = vmul.f32 %v1937, -0.001358992
  %v1939 = vadd.f32 %v1938, 0.041655596
  %v1940 = vmul.f32 %v1937, %v1939
  %v1941 = vadd.f32 %v1940, -0.4999988
  %v1942 = vmul.f32 %v1937, %v1941
  %v1943 = vadd.f32 1.0, %v1942
  %v1944 = vmul.f32 %v1935, %v1935
  %v1945 = vmul.f32 %v1944, -0.00019511016
  %v1946 = vadd.f32 %v1945, 0.008332121
  %v1947 = vmul.f32 %v1944, %v1946
  %v1948 = vadd.f32 %v1947, -0.16666654
  %v1949 = vmul.f32 %v1944, %v1948
  %v1950 = vadd.f32 %v1949, 1.0
  %v1951 = vmul.f32 %v1950, %v1935
  %vm1952 = vweird.f32 %v771
  %v1953 = vadd.s32 %v1936, 3
  %v1954 = vand.u32 %v1953, 3
  %vm1955 = vcmp.lt.s32.totalorder %v1954, 2
  %vm1956 = vcmp.eq.s32.totalorder %v1954, 0
  %v1957 = vxor.u32 %v1951, 2147483648
  %v1958 = vsel %vm1956, %v1943, %v1957
  %vm1959 = vcmp.eq.s32.totalorder %v1954, 2
  %v1960 = vxor.u32 %v1943, 2147483648
  %v1961 = vsel %vm1959, %v1960, %v1951
  %v1962 = vsel %vm1955, %v1958, %v1961
  %v1963 = vsel %vm1952, nan, %v1962
  %v1964 = vand.u32 2147483647, %v772
  %vm1965 = vcmp.le.f32.partialorder %v1964, 0.7853982
  %vm1966 = vcmp.lt.s32.totalorder %v772, 0
  %v1967 = vand.u32 %v772, 2139095040
  %v1968 = vshrl.u32 %v1967, 23
  %v1969 = vsub.s32 %v1968, 127
  %v1970 = vand.u32 2147483647, %v772
  %v1971 = vand.u32 %v1970, 8388607
  %v1972 = vor.u32 %v1971, 8388608
  %v1973 = vsub.s32 0, %v1972
  %v1974 = vadd.s32 %v1969, 1
  %vm1975 = vcmp.gt.s32.totalorder %v1974, 0
  %v1976 = vsel %vm1975, %v1974, 0
  %v1977 = vshrl.u32 %v1976, 5
  %v1978 = vand.u32 %v1976, 31
  %v1979 = vsub.s32 32, %v1978
  %v1980 = vshrl.u32 683565275, %v1979
  %v1981 = vshll.u32 683565275, %v1978
  %v1982 = vshrl.u32 2475754826, %v1979
  %v1983 = vor.u32 %v1981, %v1982
  %v1984 = vshll.u32 2475754826, %v1978
  %v1985 = vshrl.u32 2131351028, %v1979
  %v1986 = vor.u32 %v1984, %v1985
  %v1987 = vshll.u32 2131351028, %v1978
  %v1988 = vshrl.u32 2102212464, %v1979
  %v1989 = vor.u32 %v1987, %v1988
  %v1990 = vshll.u32 2102212464, %v1978
  %v1991 = vshrl.u32 920167782, %v1979
  %v1992 = vor.u32 %v1990, %v1991
  %v1993 = vshll.u32 920167782, %v1978
  %v1994 = vshrl.u32 1326507024, %v1979
  %v1995 = vor.u32 %v1993, %v1994
  %vm1996 = vcmp.lt.s32.totalorder %v1977, 1
  %vm1997 = vcmp.lt.s32.totalorder %v1977, 2
  %vm1998 = vcmp.lt.s32.totalorder %v1977, 3
  %vm1999 = vcmp.lt.s32.totalorder %v1977, 4
  %v2000 = vsel %vm1996, %v1980, %v1983
  %v2001 = vsel %vm1999, %v1989, 2102212464
  %v2002 = vsel %vm1998, %v1986, %v2001
  %v2003 = vsel %vm1997, %v2000, %v2002
  %v2004 = vsel %vm1996, %v1983, %v1986
  %v2005 = vsel %vm1999, %v1992, 920167782
  %v2006 = vsel %vm1998, %v1989, %v2005
  %v2007 = vsel %vm1997, %v2004, %v2006
  %v2008 = vsel %vm1996, %v1986, %v1989
  %v2009 = vsel %vm1999, %v1995, 1326507024
  %v2010 = vsel %vm1998, %v1992, %v2009
  %v2011 = vsel %vm1997, %v2008, %v2010
  %v2012 = vshll.u32 %v1972, 8
  %v2013 = vand.u32 %v2012, 65535
  %v2014 = vshrl.u32 %v2012, 16
  %v2015 = vand.u32 %v2011, 65535
  %v2016 = vshrl.u32 %v2011, 16
  %v2017 = vmul.u32 %v2013, %v2015
  %v2018 = vmul.u32 %v2013, %v2016
  %v2019 = vmul.u32 %v2014, %v2015
  %v2020 = vmul.u32 %v2014, %v2016
  %v2021 = vshll.u32 %v2018, 16
  %v2022 = vshrl.u32 %v2018, 16
  %v2023 = vshll.u32 %v2019, 16
  %v2024 = vshrl.u32 %v2019, 16
  %vm2025 = vc.u32 %v2017, %v2021
  %v2026 = vsel %vm2025, 1, 0
  %v2027 = vadd.s32 %v2017, %v2021
  %v2028 = vadd.s32 %v2020, %v2026
  %vm2029 = vc.u32 %v2027, %v2023
  %v2030 = vsel %vm2029, 1, 0
  %v2031 = vadd.s32 %v2027, %v2023
  %v2032 = vadd.s32 %v2028, %v2030
  %v2033 = vadd.s32 %v2032, %v2022
  %v2034 = vadd.s32 %v2033, %v2024
  %v2035 = vand.u32 %v2012, 65535
  %v2036 = vshrl.u32 %v2012, 16
  %v2037 = vand.u32 %v2007, 65535
  %v2038 = vshrl.u32 %v2007, 16
  %v2039 = vmul.u32 %v2035, %v2037
  %v2040 = vmul.u32 %v2035, %v2038
  %v2041 = vmul.u32 %v2036, %v2037
  %v2042 = vmul.u32 %v2036, %v2038
  %v2043 = vshll.u32 %v2040, 16
  %v2044 = vshrl.u32 %v2040, 16
  %v2045 = vshll.u32 %v2041, 16
  %v2046 = vshrl.u32 %v2041, 16
  %vm2047 = vc.u32 %v2039, %v2043
  %v2048 = vsel %vm2047, 1, 0
  %v2049 = vadd.s32 %v2039, %v2043
  %v2050 = vadd.s32 %v2042, %v2048
  %vm2051 = vc.u32 %v2049, %v2045
  %v2052 = vsel %vm2051, 1, 0
  %v2053 = vadd.s32 %v2049, %v2045
  %v2054 = vadd.s32 %v2050, %v2052
  %v2055 = vadd.s32 %v2054, %v2044
  %v2056 = vadd.s32 %v2055, %v2046
  %v2057 = vmul.u32 %v2012, %v2003
  %v2058 = vadd.s32 %v2034, %v2053
  %vm2059 = vc.u32 %v2034, %v2053
  %v2060 = vadd.s32 %v2056, 1
  %v2061 = vsel %vm2059, %v2060, %v2056
  %v2062 = vadd.s32 %v2057, %v2061
  %v2063 = vadd.s32 %v2062, 536870912
  %v2064 = vshrl.u32 %v2063, 30
  %v2065 = vshll.u32 %v2064, 30
  %v2066 = vsub.s32 %v2062, %v2065
  %vm2067 = vcmp.lt.s32.totalorder %v2066, 0
  %v2068 = vsub.s32 0, %v2066
  %v2069 = vsel %vm2067, %v2068, %v2066
  %v2070 = vclz %v2069
  %v2071 = vsub.s32 %v2070, 2
  %vm2072 = vcmp.gt.s32.totalorder 0, %v2071
  %v2073 = vsel %vm2072, 0, %v2071
  %v2074 = vsub.s32 32, %v2073
  %v2075 = vshll.u32 %v2066, %v2073
  %v2076 = vshrl.u32 %v2058, %v2074
  %v2077 = vor.u32 %v2075, %v2076
  %v2078 = vsub.s32 4294967266, %v2073
  %v2079 = vadd.s32 %v2078, 127
  %v2080 = vshll.u32 %v2079, 23
  %v2081 = vor.u32 4788187, %v2080
  %v2082 = vand.u32 2147483647, %v2081
  %v2084 = vcvt.s32.f32 %v2077
  %v2085 = vmul.f32 %v2084, %v2082
  %v2086 = vxor.u32 %v2085, 2147483648
  %v2087 = vsel %vm1966, %v2086, %v2085
  %v2088 = vsub.s32 4, %v2064
  %v2089 = vsel %vm1966, %v2088, %v2064
  %v2090 = vsel %vm1965, %v772, %v2087
  %v2091 = vsel %vm1965, 0, %v2089
  %v2092 = vmul.f32 %v2090, %v2090
  %v2093 = vmul.f32 %v2092, -0.001358992
  %v2094 = vadd.f32 %v2093, 0.041655596
  %v2095 = vmul.f32 %v2092, %v2094
  %v2096 = vadd.f32 %v2095, -0.4999988
  %v2097 = vmul.f32 %v2092, %v2096
  %v2098 = vadd.f32 1.0, %v2097
  %v2099 = vmul.f32 %v2090, %v2090
  %v2100 = vmul.f32 %v2099, -0.00019511016
  %v2101 = vadd.f32 %v2100, 0.008332121
  %v2102 = vmul.f32 %v2099, %v2101
  %v2103 = vadd.f32 %v2102, -0.16666654
  %v2104 = vmul.f32 %v2099, %v2103
  %v2105 = vadd.f32 %v2104, 1.0
  %v2106 = vmul.f32 %v2105, %v2090
  %vm2107 = vweird.f32 %v772
  %v2108 = vadd.s32 %v2091, 3
  %v2109 = vand.u32 %v2108, 3
  %vm2110 = vcmp.lt.s32.totalorder %v2109, 2
  %vm2111 = vcmp.eq.s32.totalorder %v2109, 0
  %v2112 = vxor.u32 %v2106, 2147483648
  %v2113 = vsel %vm2111, %v2098, %v2112
  %vm2114 = vcmp.eq.s32.totalorder %v2109, 2
  %v2115 = vxor.u32 %v2098, 2147483648
  %v2116 = vsel %vm2114, %v2115, %v2106
  %v2117 = vsel %vm2110, %v2113, %v2116
  %v2118 = vsel %vm2107, nan, %v2117
  %v2119 = vand.u32 2147483647, %v773
  %vm2120 = vcmp.le.f32.partialorder %v2119, 0.7853982
  %vm2121 = vcmp.lt.s32.totalorder %v773, 0
  %v2122 = vand.u32 %v773, 2139095040
  %v2123 = vshrl.u32 %v2122, 23
  %v2124 = vsub.s32 %v2123, 127
  %v2125 = vand.u32 2147483647, %v773
  %v2126 = vand.u32 %v2125, 8388607
  %v2127 = vor.u32 %v2126, 8388608
  %v2128 = vsub.s32 0, %v2127
  %v2129 = vadd.s32 %v2124, 1
  %vm2130 = vcmp.gt.s32.totalorder %v2129, 0
  %v2131 = vsel %vm2130, %v2129, 0
  %v2132 = vshrl.u32 %v2131, 5
  %v2133 = vand.u32 %v2131, 31
  %v2134 = vsub.s32 32, %v2133
  %v2135 = vshrl.u32 683565275, %v2134
  %v2136 = vshll.u32 683565275, %v2133
  %v2137 = vshrl.u32 2475754826, %v2134
  %v2138 = vor.u32 %v2136, %v2137
  %v2139 = vshll.u32 2475754826, %v2133
  %v2140 = vshrl.u32 2131351028, %v2134
  %v2141 = vor.u32 %v2139, %v2140
  %v2142 = vshll.u32 2131351028, %v2133
  %v2143 = vshrl.u32 2102212464, %v2134
  %v2144 = vor.u32 %v2142, %v2143
  %v2145 = vshll.u32 2102212464, %v2133
  %v2146 = vshrl.u32 920167782, %v2134
  %v2147 = vor.u32 %v2145, %v2146
  %v2148 = vshll.u32 920167782, %v2133
  %v2149 = vshrl.u32 1326507024, %v2134
  %v2150 = vor.u32 %v2148, %v2149
  %vm2151 = vcmp.lt.s32.totalorder %v2132, 1
  %vm2152 = vcmp.lt.s32.totalorder %v2132, 2
  %vm2153 = vcmp.lt.s32.totalorder %v2132, 3
  %vm2154 = vcmp.lt.s32.totalorder %v2132, 4
  %v2155 = vsel %vm2151, %v2135, %v2138
  %v2156 = vsel %vm2154, %v2144, 2102212464
  %v2157 = vsel %vm2153, %v2141, %v2156
  %v2158 = vsel %vm2152, %v2155, %v2157
  %v2159 = vsel %vm2151, %v2138, %v2141
  %v2160 = vsel %vm2154, %v2147, 920167782
  %v2161 = vsel %vm2153, %v2144, %v2160
  %v2162 = vsel %vm2152, %v2159, %v2161
  %v2163 = vsel %vm2151, %v2141, %v2144
  %v2164 = vsel %vm2154, %v2150, 1326507024
  %v2165 = vsel %vm2153, %v2147, %v2164
  %v2166 = vsel %vm2152, %v2163, %v2165
  %v2167 = vshll.u32 %v2127, 8
  %v2168 = vand.u32 %v2167, 65535
  %v2169 = vshrl.u32 %v2167, 16
  %v2170 = vand.u32 %v2166, 65535
  %v2171 = vshrl.u32 %v2166, 16
  %v2172 = vmul.u32 %v2168, %v2170
  %v2173 = vmul.u32 %v2168, %v2171
  %v2174 = vmul.u32 %v2169, %v2170
  %v2175 = vmul.u32 %v2169, %v2171
  %v2176 = vshll.u32 %v2173, 16
  %v2177 = vshrl.u32 %v2173, 16
  %v2178 = vshll.u32 %v2174, 16
  %v2179 = vshrl.u32 %v2174, 16
  %vm2180 = vc.u32 %v2172, %v2176
  %v2181 = vsel %vm2180, 1, 0
  %v2182 = vadd.s32 %v2172, %v2176
  %v2183 = vadd.s32 %v2175, %v2181
  %vm2184 = vc.u32 %v2182, %v2178
  %v2185 = vsel %vm2184, 1, 0
  %v2186 = vadd.s32 %v2182, %v2178
  %v2187 = vadd.s32 %v2183, %v2185
  %v2188 = vadd.s32 %v2187, %v2177
  %v2189 = vadd.s32 %v2188, %v2179
  %v2190 = vand.u32 %v2167, 65535
  %v2191 = vshrl.u32 %v2167, 16
  %v2192 = vand.u32 %v2162, 65535
  %v2193 = vshrl.u32 %v2162, 16
  %v2194 = vmul.u32 %v2190, %v2192
  %v2195 = vmul.u32 %v2190, %v2193
  %v2196 = vmul.u32 %v2191, %v2192
  %v2197 = vmul.u32 %v2191, %v2193
  %v2198 = vshll.u32 %v2195, 16
  %v2199 = vshrl.u32 %v2195, 16
  %v2200 = vshll.u32 %v2196, 16
  %v2201 = vshrl.u32 %v2196, 16
  %vm2202 = vc.u32 %v2194, %v2198
  %v2203 = vsel %vm2202, 1, 0
  %v2204 = vadd.s32 %v2194, %v2198
  %v2205 = vadd.s32 %v2197, %v2203
  %vm2206 = vc.u32 %v2204, %v2200
  %v2207 = vsel %vm2206, 1, 0
  %v2208 = vadd.s32 %v2204, %v2200
  %v2209 = vadd.s32 %v2205, %v2207
  %v2210 = vadd.s32 %v2209, %v2199
  %v2211 = vadd.s32 %v2210, %v2201
  %v2212 = vmul.u32 %v2167, %v2158
  %v2213 = vadd.s32 %v2189, %v2208
  %vm2214 = vc.u32 %v2189, %v2208
  %v2215 = vadd.s32 %v2211, 1
  %v2216 = vsel %vm2214, %v2215, %v2211
  %v2217 = vadd.s32 %v2212, %v2216
  %v2218 = vadd.s32 %v2217, 536870912
  %v2219 = vshrl.u32 %v2218, 30
  %v2220 = vshll.u32 %v2219, 30
  %v2221 = vsub.s32 %v2217, %v2220
  %vm2222 = vcmp.lt.s32.totalorder %v2221, 0
  %v2223 = vsub.s32 0, %v2221
  %v2224 = vsel %vm2222, %v2223, %v2221
  %v2225 = vclz %v2224
  %v2226 = vsub.s32 %v2225, 2
  %vm2227 = vcmp.gt.s32.totalorder 0, %v2226
  %v2228 = vsel %vm2227, 0, %v2226
  %v2229 = vsub.s32 32, %v2228
  %v2230 = vshll.u32 %v2221, %v2228
  %v2231 = vshrl.u32 %v2213, %v2229
  %v2232 = vor.u32 %v2230, %v2231
  %v2233 = vsub.s32 4294967266, %v2228
  %v2234 = vadd.s32 %v2233, 127
  %v2235 = vshll.u32 %v2234, 23
  %v2236 = vor.u32 4788187, %v2235
  %v2237 = vand.u32 2147483647, %v2236
  %v2239 = vcvt.s32.f32 %v2232
  %v2240 = vmul.f32 %v2239, %v2237
  %v2241 = vxor.u32 %v2240, 2147483648
  %v2242 = vsel %vm2121, %v2241, %v2240
  %v2243 = vsub.s32 4, %v2219
  %v2244 = vsel %vm2121, %v2243, %v2219
  %v2245 = vsel %vm2120, %v773, %v2242
  %v2246 = vsel %vm2120, 0, %v2244
  %v2247 = vmul.f32 %v2245, %v2245
  %v2248 = vmul.f32 %v2247, -0.001358992
  %v2249 = vadd.f32 %v2248, 0.041655596
  %v2250 = vmul.f32 %v2247, %v2249
  %v2251 = vadd.f32 %v2250, -0.4999988
  %v2252 = vmul.f32 %v2247, %v2251
  %v2253 = vadd.f32 1.0, %v2252
  %v2254 = vmul.f32 %v2245, %v2245
  %v2255 = vmul.f32 %v2254, -0.00019511016
  %v2256 = vadd.f32 %v2255, 0.008332121
  %v2257 = vmul.f32 %v2254, %v2256
  %v2258 = vadd.f32 %v2257, -0.16666654
  %v2259 = vmul.f32 %v2254, %v2258
  %v2260 = vadd.f32 %v2259, 1.0
  %v2261 = vmul.f32 %v2260, %v2245
  %vm2262 = vweird.f32 %v773
  %v2263 = vadd.s32 %v2246, 3
  %v2264 = vand.u32 %v2263, 3
  %vm2265 = vcmp.lt.s32.totalorder %v2264, 2
  %vm2266 = vcmp.eq.s32.totalorder %v2264, 0
  %v2267 = vxor.u32 %v2261, 2147483648
  %v2268 = vsel %vm2266, %v2253, %v2267
  %vm2269 = vcmp.eq.s32.totalorder %v2264, 2
  %v2270 = vxor.u32 %v2253, 2147483648
  %v2271 = vsel %vm2269, %v2270, %v2261
  %v2272 = vsel %vm2265, %v2268, %v2271
  %v2273 = vsel %vm2262, nan, %v2272
  %v2274 = vand.u32 2147483647, %v774
  %vm2275 = vcmp.le.f32.partialorder %v2274, 0.7853982
  %vm2276 = vcmp.lt.s32.totalorder %v774, 0
  %v2277 = vand.u32 %v774, 2139095040
  %v2278 = vshrl.u32 %v2277, 23
  %v2279 = vsub.s32 %v2278, 127
  %v2280 = vand.u32 2147483647, %v774
  %v2281 = vand.u32 %v2280, 8388607
  %v2282 = vor.u32 %v2281, 8388608
  %v2283 = vsub.s32 0, %v2282
  %v2284 = vadd.s32 %v2279, 1
  %vm2285 = vcmp.gt.s32.totalorder %v2284, 0
  %v2286 = vsel %vm2285, %v2284, 0
  %v2287 = vshrl.u32 %v2286, 5
  %v2288 = vand.u32 %v2286, 31
  %v2289 = vsub.s32 32, %v2288
  %v2290 = vshrl.u32 683565275, %v2289
  %v2291 = vshll.u32 683565275, %v2288
  %v2292 = vshrl.u32 2475754826, %v2289
  %v2293 = vor.u32 %v2291, %v2292
  %v2294 = vshll.u32 2475754826, %v2288
  %v2295 = vshrl.u32 2131351028, %v2289
  %v2296 = vor.u32 %v2294, %v2295
  %v2297 = vshll.u32 2131351028, %v2288
  %v2298 = vshrl.u32 2102212464, %v2289
  %v2299 = vor.u32 %v2297, %v2298
  %v2300 = vshll.u32 2102212464, %v2288
  %v2301 = vshrl.u32 920167782, %v2289
  %v2302 = vor.u32 %v2300, %v2301
  %v2303 = vshll.u32 920167782, %v2288
  %v2304 = vshrl.u32 1326507024, %v2289
  %v2305 = vor.u32 %v2303, %v2304
  %vm2306 = vcmp.lt.s32.totalorder %v2287, 1
  %vm2307 = vcmp.lt.s32.totalorder %v2287, 2
  %vm2308 = vcmp.lt.s32.totalorder %v2287, 3
  %vm2309 = vcmp.lt.s32.totalorder %v2287, 4
  %v2310 = vsel %vm2306, %v2290, %v2293
  %v2311 = vsel %vm2309, %v2299, 2102212464
  %v2312 = vsel %vm2308, %v2296, %v2311
  %v2313 = vsel %vm2307, %v2310, %v2312
  %v2314 = vsel %vm2306, %v2293, %v2296
  %v2315 = vsel %vm2309, %v2302, 920167782
  %v2316 = vsel %vm2308, %v2299, %v2315
  %v2317 = vsel %vm2307, %v2314, %v2316
  %v2318 = vsel %vm2306, %v2296, %v2299
  %v2319 = vsel %vm2309, %v2305, 1326507024
  %v2320 = vsel %vm2308, %v2302, %v2319
  %v2321 = vsel %vm2307, %v2318, %v2320
  %v2322 = vshll.u32 %v2282, 8
  %v2323 = vand.u32 %v2322, 65535
  %v2324 = vshrl.u32 %v2322, 16
  %v2325 = vand.u32 %v2321, 65535
  %v2326 = vshrl.u32 %v2321, 16
  %v2327 = vmul.u32 %v2323, %v2325
  %v2328 = vmul.u32 %v2323, %v2326
  %v2329 = vmul.u32 %v2324, %v2325
  %v2330 = vmul.u32 %v2324, %v2326
  %v2331 = vshll.u32 %v2328, 16
  %v2332 = vshrl.u32 %v2328, 16
  %v2333 = vshll.u32 %v2329, 16
  %v2334 = vshrl.u32 %v2329, 16
  %vm2335 = vc.u32 %v2327, %v2331
  %v2336 = vsel %vm2335, 1, 0
  %v2337 = vadd.s32 %v2327, %v2331
  %v2338 = vadd.s32 %v2330, %v2336
  %vm2339 = vc.u32 %v2337, %v2333
  %v2340 = vsel %vm2339, 1, 0
  %v2341 = vadd.s32 %v2337, %v2333
  %v2342 = vadd.s32 %v2338, %v2340
  %v2343 = vadd.s32 %v2342, %v2332
  %v2344 = vadd.s32 %v2343, %v2334
  %v2345 = vand.u32 %v2322, 65535
  %v2346 = vshrl.u32 %v2322, 16
  %v2347 = vand.u32 %v2317, 65535
  %v2348 = vshrl.u32 %v2317, 16
  %v2349 = vmul.u32 %v2345, %v2347
  %v2350 = vmul.u32 %v2345, %v2348
  %v2351 = vmul.u32 %v2346, %v2347
  %v2352 = vmul.u32 %v2346, %v2348
  %v2353 = vshll.u32 %v2350, 16
  %v2354 = vshrl.u32 %v2350, 16
  %v2355 = vshll.u32 %v2351, 16
  %v2356 = vshrl.u32 %v2351, 16
  %vm2357 = vc.u32 %v2349, %v2353
  %v2358 = vsel %vm2357, 1, 0
  %v2359 = vadd.s32 %v2349, %v2353
  %v2360 = vadd.s32 %v2352, %v2358
  %vm2361 = vc.u32 %v2359, %v2355
  %v2362 = vsel %vm2361, 1, 0
  %v2363 = vadd.s32 %v2359, %v2355
  %v2364 = vadd.s32 %v2360, %v2362
  %v2365 = vadd.s32 %v2364, %v2354
  %v2366 = vadd.s32 %v2365, %v2356
  %v2367 = vmul.u32 %v2322, %v2313
  %v2368 = vadd.s32 %v2344, %v2363
  %vm2369 = vc.u32 %v2344, %v2363
  %v2370 = vadd.s32 %v2366, 1
  %v2371 = vsel %vm2369, %v2370, %v2366
  %v2372 = vadd.s32 %v2367, %v2371
  %v2373 = vadd.s32 %v2372, 536870912
  %v2374 = vshrl.u32 %v2373, 30
  %v2375 = vshll.u32 %v2374, 30
  %v2376 = vsub.s32 %v2372, %v2375
  %vm2377 = vcmp.lt.s32.totalorder %v2376, 0
  %v2378 = vsub.s32 0, %v2376
  %v2379 = vsel %vm2377, %v2378, %v2376
  %v2380 = vclz %v2379
  %v2381 = vsub.s32 %v2380, 2
  %vm2382 = vcmp.gt.s32.totalorder 0, %v2381
  %v2383 = vsel %vm2382, 0, %v2381
  %v2384 = vsub.s32 32, %v2383
  %v2385 = vshll.u32 %v2376, %v2383
  %v2386 = vshrl.u32 %v2368, %v2384
  %v2387 = vor.u32 %v2385, %v2386
  %v2388 = vsub.s32 4294967266, %v2383
  %v2389 = vadd.s32 %v2388, 127
  %v2390 = vshll.u32 %v2389, 23
  %v2391 = vor.u32 4788187, %v2390
  %v2392 = vand.u32 2147483647, %v2391
  %v2394 = vcvt.s32.f32 %v2387
  %v2395 = vmul.f32 %v2394, %v2392
  %v2396 = vxor.u32 %v2395, 2147483648
  %v2397 = vsel %vm2276, %v2396, %v2395
  %v2398 = vsub.s32 4, %v2374
  %v2399 = vsel %vm2276, %v2398, %v2374
  %v2400 = vsel %vm2275, %v774, %v2397
  %v2401 = vsel %vm2275, 0, %v2399
  %v2402 = vmul.f32 %v2400, %v2400
  %v2403 = vmul.f32 %v2402, -0.001358992
  %v2404 = vadd.f32 %v2403, 0.041655596
  %v2405 = vmul.f32 %v2402, %v2404
  %v2406 = vadd.f32 %v2405, -0.4999988
  %v2407 = vmul.f32 %v2402, %v2406
  %v2408 = vadd.f32 1.0, %v2407
  %v2409 = vmul.f32 %v2400, %v2400
  %v2410 = vmul.f32 %v2409, -0.00019511016
  %v2411 = vadd.f32 %v2410, 0.008332121
  %v2412 = vmul.f32 %v2409, %v2411
  %v2413 = vadd.f32 %v2412, -0.16666654
  %v2414 = vmul.f32 %v2409, %v2413
  %v2415 = vadd.f32 %v2414, 1.0
  %v2416 = vmul.f32 %v2415, %v2400
  %vm2417 = vweird.f32 %v774
  %v2418 = vadd.s32 %v2401, 3
  %v2419 = vand.u32 %v2418, 3
  %vm2420 = vcmp.lt.s32.totalorder %v2419, 2
  %vm2421 = vcmp.eq.s32.totalorder %v2419, 0
  %v2422 = vxor.u32 %v2416, 2147483648
  %v2423 = vsel %vm2421, %v2408, %v2422
  %vm2424 = vcmp.eq.s32.totalorder %v2419, 2
  %v2425 = vxor.u32 %v2408, 2147483648
  %v2426 = vsel %vm2424, %v2425, %v2416
  %v2427 = vsel %vm2420, %v2423, %v2426
  %v2428 = vsel %vm2417, nan, %v2427
  %v2429 = vand.u32 2147483647, %v775
  %vm2430 = vcmp.le.f32.partialorder %v2429, 0.7853982
  %vm2431 = vcmp.lt.s32.totalorder %v775, 0
  %v2432 = vand.u32 %v775, 2139095040
  %v2433 = vshrl.u32 %v2432, 23
  %v2434 = vsub.s32 %v2433, 127
  %v2435 = vand.u32 2147483647, %v775
  %v2436 = vand.u32 %v2435, 8388607
  %v2437 = vor.u32 %v2436, 8388608
  %v2438 = vsub.s32 0, %v2437
  %v2439 = vadd.s32 %v2434, 1
  %vm2440 = vcmp.gt.s32.totalorder %v2439, 0
  %v2441 = vsel %vm2440, %v2439, 0
  %v2442 = vshrl.u32 %v2441, 5
  %v2443 = vand.u32 %v2441, 31
  %v2444 = vsub.s32 32, %v2443
  %v2445 = vshrl.u32 683565275, %v2444
  %v2446 = vshll.u32 683565275, %v2443
  %v2447 = vshrl.u32 2475754826, %v2444
  %v2448 = vor.u32 %v2446, %v2447
  %v2449 = vshll.u32 2475754826, %v2443
  %v2450 = vshrl.u32 2131351028, %v2444
  %v2451 = vor.u32 %v2449, %v2450
  %v2452 = vshll.u32 2131351028, %v2443
  %v2453 = vshrl.u32 2102212464, %v2444
  %v2454 = vor.u32 %v2452, %v2453
  %v2455 = vshll.u32 2102212464, %v2443
  %v2456 = vshrl.u32 920167782, %v2444
  %v2457 = vor.u32 %v2455, %v2456
  %v2458 = vshll.u32 920167782, %v2443
  %v2459 = vshrl.u32 1326507024, %v2444
  %v2460 = vor.u32 %v2458, %v2459
  %vm2461 = vcmp.lt.s32.totalorder %v2442, 1
  %vm2462 = vcmp.lt.s32.totalorder %v2442, 2
  %vm2463 = vcmp.lt.s32.totalorder %v2442, 3
  %vm2464 = vcmp.lt.s32.totalorder %v2442, 4
  %v2465 = vsel %vm2461, %v2445, %v2448
  %v2466 = vsel %vm2464, %v2454, 2102212464
  %v2467 = vsel %vm2463, %v2451, %v2466
  %v2468 = vsel %vm2462, %v2465, %v2467
  %v2469 = vsel %vm2461, %v2448, %v2451
  %v2470 = vsel %vm2464, %v2457, 920167782
  %v2471 = vsel %vm2463, %v2454, %v2470
  %v2472 = vsel %vm2462, %v2469, %v2471
  %v2473 = vsel %vm2461, %v2451, %v2454
  %v2474 = vsel %vm2464, %v2460, 1326507024
  %v2475 = vsel %vm2463, %v2457, %v2474
  %v2476 = vsel %vm2462, %v2473, %v2475
  %v2477 = vshll.u32 %v2437, 8
  %v2478 = vand.u32 %v2477, 65535
  %v2479 = vshrl.u32 %v2477, 16
  %v2480 = vand.u32 %v2476, 65535
  %v2481 = vshrl.u32 %v2476, 16
  %v2482 = vmul.u32 %v2478, %v2480
  %v2483 = vmul.u32 %v2478, %v2481
  %v2484 = vmul.u32 %v2479, %v2480
  %v2485 = vmul.u32 %v2479, %v2481
  %v2486 = vshll.u32 %v2483, 16
  %v2487 = vshrl.u32 %v2483, 16
  %v2488 = vshll.u32 %v2484, 16
  %v2489 = vshrl.u32 %v2484, 16
  %vm2490 = vc.u32 %v2482, %v2486
  %v2491 = vsel %vm2490, 1, 0
  %v2492 = vadd.s32 %v2482, %v2486
  %v2493 = vadd.s32 %v2485, %v2491
  %vm2494 = vc.u32 %v2492, %v2488
  %v2495 = vsel %vm2494, 1, 0
  %v2496 = vadd.s32 %v2492, %v2488
  %v2497 = vadd.s32 %v2493, %v2495
  %v2498 = vadd.s32 %v2497, %v2487
  %v2499 = vadd.s32 %v2498, %v2489
  %v2500 = vand.u32 %v2477, 65535
  %v2501 = vshrl.u32 %v2477, 16
  %v2502 = vand.u32 %v2472, 65535
  %v2503 = vshrl.u32 %v2472, 16
  %v2504 = vmul.u32 %v2500, %v2502
  %v2505 = vmul.u32 %v2500, %v2503
  %v2506 = vmul.u32 %v2501, %v2502
  %v2507 = vmul.u32 %v2501, %v2503
  %v2508 = vshll.u32 %v2505, 16
  %v2509 = vshrl.u32 %v2505, 16
  %v2510 = vshll.u32 %v2506, 16
  %v2511 = vshrl.u32 %v2506, 16
  %vm2512 = vc.u32 %v2504, %v2508
  %v2513 = vsel %vm2512, 1, 0
  %v2514 = vadd.s32 %v2504, %v2508
  %v2515 = vadd.s32 %v2507, %v2513
  %vm2516 = vc.u32 %v2514, %v2510
  %v2517 = vsel %vm2516, 1, 0
  %v2518 = vadd.s32 %v2514, %v2510
  %v2519 = vadd.s32 %v2515, %v2517
  %v2520 = vadd.s32 %v2519, %v2509
  %v2521 = vadd.s32 %v2520, %v2511
  %v2522 = vmul.u32 %v2477, %v2468
  %v2523 = vadd.s32 %v2499, %v2518
  %vm2524 = vc.u32 %v2499, %v2518
  %v2525 = vadd.s32 %v2521, 1
  %v2526 = vsel %vm2524, %v2525, %v2521
  %v2527 = vadd.s32 %v2522, %v2526
  %v2528 = vadd.s32 %v2527, 536870912
  %v2529 = vshrl.u32 %v2528, 30
  %v2530 = vshll.u32 %v2529, 30
  %v2531 = vsub.s32 %v2527, %v2530
  %vm2532 = vcmp.lt.s32.totalorder %v2531, 0
  %v2533 = vsub.s32 0, %v2531
  %v2534 = vsel %vm2532, %v2533, %v2531
  %v2535 = vclz %v2534
  %v2536 = vsub.s32 %v2535, 2
  %vm2537 = vcmp.gt.s32.totalorder 0, %v2536
  %v2538 = vsel %vm2537, 0, %v2536
  %v2539 = vsub.s32 32, %v2538
  %v2540 = vshll.u32 %v2531, %v2538
  %v2541 = vshrl.u32 %v2523, %v2539
  %v2542 = vor.u32 %v2540, %v2541
  %v2543 = vsub.s32 4294967266, %v2538
  %v2544 = vadd.s32 %v2543, 127
  %v2545 = vshll.u32 %v2544, 23
  %v2546 = vor.u32 4788187, %v2545
  %v2547 = vand.u32 2147483647, %v2546
  %v2549 = vcvt.s32.f32 %v2542
  %v2550 = vmul.f32 %v2549, %v2547
  %v2551 = vxor.u32 %v2550, 2147483648
  %v2552 = vsel %vm2431, %v2551, %v2550
  %v2553 = vsub.s32 4, %v2529
  %v2554 = vsel %vm2431, %v2553, %v2529
  %v2555 = vsel %vm2430, %v775, %v2552
  %v2556 = vsel %vm2430, 0, %v2554
  %v2557 = vmul.f32 %v2555, %v2555
  %v2558 = vmul.f32 %v2557, -0.001358992
  %v2559 = vadd.f32 %v2558, 0.041655596
  %v2560 = vmul.f32 %v2557, %v2559
  %v2561 = vadd.f32 %v2560, -0.4999988
  %v2562 = vmul.f32 %v2557, %v2561
  %v2563 = vadd.f32 1.0, %v2562
  %v2564 = vmul.f32 %v2555, %v2555
  %v2565 = vmul.f32 %v2564, -0.00019511016
  %v2566 = vadd.f32 %v2565, 0.008332121
  %v2567 = vmul.f32 %v2564, %v2566
  %v2568 = vadd.f32 %v2567, -0.16666654
  %v2569 = vmul.f32 %v2564, %v2568
  %v2570 = vadd.f32 %v2569, 1.0
  %v2571 = vmul.f32 %v2570, %v2555
  %vm2572 = vweird.f32 %v775
  %v2573 = vadd.s32 %v2556, 3
  %v2574 = vand.u32 %v2573, 3
  %vm2575 = vcmp.lt.s32.totalorder %v2574, 2
  %vm2576 = vcmp.eq.s32.totalorder %v2574, 0
  %v2577 = vxor.u32 %v2571, 2147483648
  %v2578 = vsel %vm2576, %v2563, %v2577
  %vm2579 = vcmp.eq.s32.totalorder %v2574, 2
  %v2580 = vxor.u32 %v2563, 2147483648
  %v2581 = vsel %vm2579, %v2580, %v2571
  %v2582 = vsel %vm2575, %v2578, %v2581
  %v2583 = vsel %vm2572, nan, %v2582
  %v2584 = vand.u32 2147483647, %v776
  %vm2585 = vcmp.le.f32.partialorder %v2584, 0.7853982
  %vm2586 = vcmp.lt.s32.totalorder %v776, 0
  %v2587 = vand.u32 %v776, 2139095040
  %v2588 = vshrl.u32 %v2587, 23
  %v2589 = vsub.s32 %v2588, 127
  %v2590 = vand.u32 2147483647, %v776
  %v2591 = vand.u32 %v2590, 8388607
  %v2592 = vor.u32 %v2591, 8388608
  %v2593 = vsub.s32 0, %v2592
  %v2594 = vadd.s32 %v2589, 1
  %vm2595 = vcmp.gt.s32.totalorder %v2594, 0
  %v2596 = vsel %vm2595, %v2594, 0
  %v2597 = vshrl.u32 %v2596, 5
  %v2598 = vand.u32 %v2596, 31
  %v2599 = vsub.s32 32, %v2598
  %v2600 = vshrl.u32 683565275, %v2599
  %v2601 = vshll.u32 683565275, %v2598
  %v2602 = vshrl.u32 2475754826, %v2599
  %v2603 = vor.u32 %v2601, %v2602
  %v2604 = vshll.u32 2475754826, %v2598
  %v2605 = vshrl.u32 2131351028, %v2599
  %v2606 = vor.u32 %v2604, %v2605
  %v2607 = vshll.u32 2131351028, %v2598
  %v2608 = vshrl.u32 2102212464, %v2599
  %v2609 = vor.u32 %v2607, %v2608
  %v2610 = vshll.u32 2102212464, %v2598
  %v2611 = vshrl.u32 920167782, %v2599
  %v2612 = vor.u32 %v2610, %v2611
  %v2613 = vshll.u32 920167782, %v2598
  %v2614 = vshrl.u32 1326507024, %v2599
  %v2615 = vor.u32 %v2613, %v2614
  %vm2616 = vcmp.lt.s32.totalorder %v2597, 1
  %vm2617 = vcmp.lt.s32.totalorder %v2597, 2
  %vm2618 = vcmp.lt.s32.totalorder %v2597, 3
  %vm2619 = vcmp.lt.s32.totalorder %v2597, 4
  %v2620 = vsel %vm2616, %v2600, %v2603
  %v2621 = vsel %vm2619, %v2609, 2102212464
  %v2622 = vsel %vm2618, %v2606, %v2621
  %v2623 = vsel %vm2617, %v2620, %v2622
  %v2624 = vsel %vm2616, %v2603, %v2606
  %v2625 = vsel %vm2619, %v2612, 920167782
  %v2626 = vsel %vm2618, %v2609, %v2625
  %v2627 = vsel %vm2617, %v2624, %v2626
  %v2628 = vsel %vm2616, %v2606, %v2609
  %v2629 = vsel %vm2619, %v2615, 1326507024
  %v2630 = vsel %vm2618, %v2612, %v2629
  %v2631 = vsel %vm2617, %v2628, %v2630
  %v2632 = vshll.u32 %v2592, 8
  %v2633 = vand.u32 %v2632, 65535
  %v2634 = vshrl.u32 %v2632, 16
  %v2635 = vand.u32 %v2631, 65535
  %v2636 = vshrl.u32 %v2631, 16
  %v2637 = vmul.u32 %v2633, %v2635
  %v2638 = vmul.u32 %v2633, %v2636
  %v2639 = vmul.u32 %v2634, %v2635
  %v2640 = vmul.u32 %v2634, %v2636
  %v2641 = vshll.u32 %v2638, 16
  %v2642 = vshrl.u32 %v2638, 16
  %v2643 = vshll.u32 %v2639, 16
  %v2644 = vshrl.u32 %v2639, 16
  %vm2645 = vc.u32 %v2637, %v2641
  %v2646 = vsel %vm2645, 1, 0
  %v2647 = vadd.s32 %v2637, %v2641
  %v2648 = vadd.s32 %v2640, %v2646
  %vm2649 = vc.u32 %v2647, %v2643
  %v2650 = vsel %vm2649, 1, 0
  %v2651 = vadd.s32 %v2647, %v2643
  %v2652 = vadd.s32 %v2648, %v2650
  %v2653 = vadd.s32 %v2652, %v2642
  %v2654 = vadd.s32 %v2653, %v2644
  %v2655 = vand.u32 %v2632, 65535
  %v2656 = vshrl.u32 %v2632, 16
  %v2657 = vand.u32 %v2627, 65535
  %v2658 = vshrl.u32 %v2627, 16
  %v2659 = vmul.u32 %v2655, %v2657
  %v2660 = vmul.u32 %v2655, %v2658
  %v2661 = vmul.u32 %v2656, %v2657
  %v2662 = vmul.u32 %v2656, %v2658
  %v2663 = vshll.u32 %v2660, 16
  %v2664 = vshrl.u32 %v2660, 16
  %v2665 = vshll.u32 %v2661, 16
  %v2666 = vshrl.u32 %v2661, 16
  %vm2667 = vc.u32 %v2659, %v2663
  %v2668 = vsel %vm2667, 1, 0
  %v2669 = vadd.s32 %v2659, %v2663
  %v2670 = vadd.s32 %v2662, %v2668
  %vm2671 = vc.u32 %v2669, %v2665
  %v2672 = vsel %vm2671, 1, 0
  %v2673 = vadd.s32 %v2669, %v2665
  %v2674 = vadd.s32 %v2670, %v2672
  %v2675 = vadd.s32 %v2674, %v2664
  %v2676 = vadd.s32 %v2675, %v2666
  %v2677 = vmul.u32 %v2632, %v2623
  %v2678 = vadd.s32 %v2654, %v2673
  %vm2679 = vc.u32 %v2654, %v2673
  %v2680 = vadd.s32 %v2676, 1
  %v2681 = vsel %vm2679, %v2680, %v2676
  %v2682 = vadd.s32 %v2677, %v2681
  %v2683 = vadd.s32 %v2682, 536870912
  %v2684 = vshrl.u32 %v2683, 30
  %v2685 = vshll.u32 %v2684, 30
  %v2686 = vsub.s32 %v2682, %v2685
  %vm2687 = vcmp.lt.s32.totalorder %v2686, 0
  %v2688 = vsub.s32 0, %v2686
  %v2689 = vsel %vm2687, %v2688, %v2686
  %v2690 = vclz %v2689
  %v2691 = vsub.s32 %v2690, 2
  %vm2692 = vcmp.gt.s32.totalorder 0, %v2691
  %v2693 = vsel %vm2692, 0, %v2691
  %v2694 = vsub.s32 32, %v2693
  %v2695 = vshll.u32 %v2686, %v2693
  %v2696 = vshrl.u32 %v2678, %v2694
  %v2697 = vor.u32 %v2695, %v2696
  %v2698 = vsub.s32 4294967266, %v2693
  %v2699 = vadd.s32 %v2698, 127
  %v2700 = vshll.u32 %v2699, 23
  %v2701 = vor.u32 4788187, %v2700
  %v2702 = vand.u32 2147483647, %v2701
  %v2704 = vcvt.s32.f32 %v2697
  %v2705 = vmul.f32 %v2704, %v2702
  %v2706 = vxor.u32 %v2705, 2147483648
  %v2707 = vsel %vm2586, %v2706, %v2705
  %v2708 = vsub.s32 4, %v2684
  %v2709 = vsel %vm2586, %v2708, %v2684
  %v2710 = vsel %vm2585, %v776, %v2707
  %v2711 = vsel %vm2585, 0, %v2709
  %v2712 = vmul.f32 %v2710, %v2710
  %v2713 = vmul.f32 %v2712, -0.001358992
  %v2714 = vadd.f32 %v2713, 0.041655596
  %v2715 = vmul.f32 %v2712, %v2714
  %v2716 = vadd.f32 %v2715, -0.4999988
  %v2717 = vmul.f32 %v2712, %v2716
  %v2718 = vadd.f32 1.0, %v2717
  %v2719 = vmul.f32 %v2710, %v2710
  %v2720 = vmul.f32 %v2719, -0.00019511016
  %v2721 = vadd.f32 %v2720, 0.008332121
  %v2722 = vmul.f32 %v2719, %v2721
  %v2723 = vadd.f32 %v2722, -0.16666654
  %v2724 = vmul.f32 %v2719, %v2723
  %v2725 = vadd.f32 %v2724, 1.0
  %v2726 = vmul.f32 %v2725, %v2710
  %vm2727 = vweird.f32 %v776
  %v2728 = vadd.s32 %v2711, 3
  %v2729 = vand.u32 %v2728, 3
  %vm2730 = vcmp.lt.s32.totalorder %v2729, 2
  %vm2731 = vcmp.eq.s32.totalorder %v2729, 0
  %v2732 = vxor.u32 %v2726, 2147483648
  %v2733 = vsel %vm2731, %v2718, %v2732
  %vm2734 = vcmp.eq.s32.totalorder %v2729, 2
  %v2735 = vxor.u32 %v2718, 2147483648
  %v2736 = vsel %vm2734, %v2735, %v2726
  %v2737 = vsel %vm2730, %v2733, %v2736
  %v2738 = vsel %vm2727, nan, %v2737
  %v2739 = vand.u32 2147483647, %v777
  %vm2740 = vcmp.le.f32.partialorder %v2739, 0.7853982
  %vm2741 = vcmp.lt.s32.totalorder %v777, 0
  %v2742 = vand.u32 %v777, 2139095040
  %v2743 = vshrl.u32 %v2742, 23
  %v2744 = vsub.s32 %v2743, 127
  %v2745 = vand.u32 2147483647, %v777
  %v2746 = vand.u32 %v2745, 8388607
  %v2747 = vor.u32 %v2746, 8388608
  %v2748 = vsub.s32 0, %v2747
  %v2749 = vadd.s32 %v2744, 1
  %vm2750 = vcmp.gt.s32.totalorder %v2749, 0
  %v2751 = vsel %vm2750, %v2749, 0
  %v2752 = vshrl.u32 %v2751, 5
  %v2753 = vand.u32 %v2751, 31
  %v2754 = vsub.s32 32, %v2753
  %v2755 = vshrl.u32 683565275, %v2754
  %v2756 = vshll.u32 683565275, %v2753
  %v2757 = vshrl.u32 2475754826, %v2754
  %v2758 = vor.u32 %v2756, %v2757
  %v2759 = vshll.u32 2475754826, %v2753
  %v2760 = vshrl.u32 2131351028, %v2754
  %v2761 = vor.u32 %v2759, %v2760
  %v2762 = vshll.u32 2131351028, %v2753
  %v2763 = vshrl.u32 2102212464, %v2754
  %v2764 = vor.u32 %v2762, %v2763
  %v2765 = vshll.u32 2102212464, %v2753
  %v2766 = vshrl.u32 920167782, %v2754
  %v2767 = vor.u32 %v2765, %v2766
  %v2768 = vshll.u32 920167782, %v2753
  %v2769 = vshrl.u32 1326507024, %v2754
  %v2770 = vor.u32 %v2768, %v2769
  %vm2771 = vcmp.lt.s32.totalorder %v2752, 1
  %vm2772 = vcmp.lt.s32.totalorder %v2752, 2
  %vm2773 = vcmp.lt.s32.totalorder %v2752, 3
  %vm2774 = vcmp.lt.s32.totalorder %v2752, 4
  %v2775 = vsel %vm2771, %v2755, %v2758
  %v2776 = vsel %vm2774, %v2764, 2102212464
  %v2777 = vsel %vm2773, %v2761, %v2776
  %v2778 = vsel %vm2772, %v2775, %v2777
  %v2779 = vsel %vm2771, %v2758, %v2761
  %v2780 = vsel %vm2774, %v2767, 920167782
  %v2781 = vsel %vm2773, %v2764, %v2780
  %v2782 = vsel %vm2772, %v2779, %v2781
  %v2783 = vsel %vm2771, %v2761, %v2764
  %v2784 = vsel %vm2774, %v2770, 1326507024
  %v2785 = vsel %vm2773, %v2767, %v2784
  %v2786 = vsel %vm2772, %v2783, %v2785
  %v2787 = vshll.u32 %v2747, 8
  %v2788 = vand.u32 %v2787, 65535
  %v2789 = vshrl.u32 %v2787, 16
  %v2790 = vand.u32 %v2786, 65535
  %v2791 = vshrl.u32 %v2786, 16
  %v2792 = vmul.u32 %v2788, %v2790
  %v2793 = vmul.u32 %v2788, %v2791
  %v2794 = vmul.u32 %v2789, %v2790
  %v2795 = vmul.u32 %v2789, %v2791
  %v2796 = vshll.u32 %v2793, 16
  %v2797 = vshrl.u32 %v2793, 16
  %v2798 = vshll.u32 %v2794, 16
  %v2799 = vshrl.u32 %v2794, 16
  %vm2800 = vc.u32 %v2792, %v2796
  %v2801 = vsel %vm2800, 1, 0
  %v2802 = vadd.s32 %v2792, %v2796
  %v2803 = vadd.s32 %v2795, %v2801
  %vm2804 = vc.u32 %v2802, %v2798
  %v2805 = vsel %vm2804, 1, 0
  %v2806 = vadd.s32 %v2802, %v2798
  %v2807 = vadd.s32 %v2803, %v2805
  %v2808 = vadd.s32 %v2807, %v2797
  %v2809 = vadd.s32 %v2808, %v2799
  %v2810 = vand.u32 %v2787, 65535
  %v2811 = vshrl.u32 %v2787, 16
  %v2812 = vand.u32 %v2782, 65535
  %v2813 = vshrl.u32 %v2782, 16
  %v2814 = vmul.u32 %v2810, %v2812
  %v2815 = vmul.u32 %v2810, %v2813
  %v2816 = vmul.u32 %v2811, %v2812
  %v2817 = vmul.u32 %v2811, %v2813
  %v2818 = vshll.u32 %v2815, 16
  %v2819 = vshrl.u32 %v2815, 16
  %v2820 = vshll.u32 %v2816, 16
  %v2821 = vshrl.u32 %v2816, 16
  %vm2822 = vc.u32 %v2814, %v2818
  %v2823 = vsel %vm2822, 1, 0
  %v2824 = vadd.s32 %v2814, %v2818
  %v2825 = vadd.s32 %v2817, %v2823
  %vm2826 = vc.u32 %v2824, %v2820
  %v2827 = vsel %vm2826, 1, 0
  %v2828 = vadd.s32 %v2824, %v2820
  %v2829 = vadd.s32 %v2825, %v2827
  %v2830 = vadd.s32 %v2829, %v2819
  %v2831 = vadd.s32 %v2830, %v2821
  %v2832 = vmul.u32 %v2787, %v2778
  %v2833 = vadd.s32 %v2809, %v2828
  %vm2834 = vc.u32 %v2809, %v2828
  %v2835 = vadd.s32 %v2831, 1
  %v2836 = vsel %vm2834, %v2835, %v2831
  %v2837 = vadd.s32 %v2832, %v2836
  %v2838 = vadd.s32 %v2837, 536870912
  %v2839 = vshrl.u32 %v2838, 30
  %v2840 = vshll.u32 %v2839, 30
  %v2841 = vsub.s32 %v2837, %v2840
  %vm2842 = vcmp.lt.s32.totalorder %v2841, 0
  %v2843 = vsub.s32 0, %v2841
  %v2844 = vsel %vm2842, %v2843, %v2841
  %v2845 = vclz %v2844
  %v2846 = vsub.s32 %v2845, 2
  %vm2847 = vcmp.gt.s32.totalorder 0, %v2846
  %v2848 = vsel %vm2847, 0, %v2846
  %v2849 = vsub.s32 32, %v2848
  %v2850 = vshll.u32 %v2841, %v2848
  %v2851 = vshrl.u32 %v2833, %v2849
  %v2852 = vor.u32 %v2850, %v2851
  %v2853 = vsub.s32 4294967266, %v2848
  %v2854 = vadd.s32 %v2853, 127
  %v2855 = vshll.u32 %v2854, 23
  %v2856 = vor.u32 4788187, %v2855
  %v2857 = vand.u32 2147483647, %v2856
  %v2859 = vcvt.s32.f32 %v2852
  %v2860 = vmul.f32 %v2859, %v2857
  %v2861 = vxor.u32 %v2860, 2147483648
  %v2862 = vsel %vm2741, %v2861, %v2860
  %v2863 = vsub.s32 4, %v2839
  %v2864 = vsel %vm2741, %v2863, %v2839
  %v2865 = vsel %vm2740, %v777, %v2862
  %v2866 = vsel %vm2740, 0, %v2864
  %v2867 = vmul.f32 %v2865, %v2865
  %v2868 = vmul.f32 %v2867, -0.001358992
  %v2869 = vadd.f32 %v2868, 0.041655596
  %v2870 = vmul.f32 %v2867, %v2869
  %v2871 = vadd.f32 %v2870, -0.4999988
  %v2872 = vmul.f32 %v2867, %v2871
  %v2873 = vadd.f32 1.0, %v2872
  %v2874 = vmul.f32 %v2865, %v2865
  %v2875 = vmul.f32 %v2874, -0.00019511016
  %v2876 = vadd.f32 %v2875, 0.008332121
  %v2877 = vmul.f32 %v2874, %v2876
  %v2878 = vadd.f32 %v2877, -0.16666654
  %v2879 = vmul.f32 %v2874, %v2878
  %v2880 = vadd.f32 %v2879, 1.0
  %v2881 = vmul.f32 %v2880, %v2865
  %vm2882 = vweird.f32 %v777
  %v2883 = vadd.s32 %v2866, 3
  %v2884 = vand.u32 %v2883, 3
  %vm2885 = vcmp.lt.s32.totalorder %v2884, 2
  %vm2886 = vcmp.eq.s32.totalorder %v2884, 0
  %v2887 = vxor.u32 %v2881, 2147483648
  %v2888 = vsel %vm2886, %v2873, %v2887
  %vm2889 = vcmp.eq.s32.totalorder %v2884, 2
  %v2890 = vxor.u32 %v2873, 2147483648
  %v2891 = vsel %vm2889, %v2890, %v2881
  %v2892 = vsel %vm2885, %v2888, %v2891
  %v2893 = vsel %vm2882, nan, %v2892
  %v2894 = vand.u32 2147483647, %v778
  %vm2895 = vcmp.le.f32.partialorder %v2894, 0.7853982
  %vm2896 = vcmp.lt.s32.totalorder %v778, 0
  %v2897 = vand.u32 %v778, 2139095040
  %v2898 = vshrl.u32 %v2897, 23
  %v2899 = vsub.s32 %v2898, 127
  %v2900 = vand.u32 2147483647, %v778
  %v2901 = vand.u32 %v2900, 8388607
  %v2902 = vor.u32 %v2901, 8388608
  %v2903 = vsub.s32 0, %v2902
  %v2904 = vadd.s32 %v2899, 1
  %vm2905 = vcmp.gt.s32.totalorder %v2904, 0
  %v2906 = vsel %vm2905, %v2904, 0
  %v2907 = vshrl.u32 %v2906, 5
  %v2908 = vand.u32 %v2906, 31
  %v2909 = vsub.s32 32, %v2908
  %v2910 = vshrl.u32 683565275, %v2909
  %v2911 = vshll.u32 683565275, %v2908
  %v2912 = vshrl.u32 2475754826, %v2909
  %v2913 = vor.u32 %v2911, %v2912
  %v2914 = vshll.u32 2475754826, %v2908
  %v2915 = vshrl.u32 2131351028, %v2909
  %v2916 = vor.u32 %v2914, %v2915
  %v2917 = vshll.u32 2131351028, %v2908
  %v2918 = vshrl.u32 2102212464, %v2909
  %v2919 = vor.u32 %v2917, %v2918
  %v2920 = vshll.u32 2102212464, %v2908
  %v2921 = vshrl.u32 920167782, %v2909
  %v2922 = vor.u32 %v2920, %v2921
  %v2923 = vshll.u32 920167782, %v2908
  %v2924 = vshrl.u32 1326507024, %v2909
  %v2925 = vor.u32 %v2923, %v2924
  %vm2926 = vcmp.lt.s32.totalorder %v2907, 1
  %vm2927 = vcmp.lt.s32.totalorder %v2907, 2
  %vm2928 = vcmp.lt.s32.totalorder %v2907, 3
  %vm2929 = vcmp.lt.s32.totalorder %v2907, 4
  %v2930 = vsel %vm2926, %v2910, %v2913
  %v2931 = vsel %vm2929, %v2919, 2102212464
  %v2932 = vsel %vm2928, %v2916, %v2931
  %v2933 = vsel %vm2927, %v2930, %v2932
  %v2934 = vsel %vm2926, %v2913, %v2916
  %v2935 = vsel %vm2929, %v2922, 920167782
  %v2936 = vsel %vm2928, %v2919, %v2935
  %v2937 = vsel %vm2927, %v2934, %v2936
  %v2938 = vsel %vm2926, %v2916, %v2919
  %v2939 = vsel %vm2929, %v2925, 1326507024
  %v2940 = vsel %vm2928, %v2922, %v2939
  %v2941 = vsel %vm2927, %v2938, %v2940
  %v2942 = vshll.u32 %v2902, 8
  %v2943 = vand.u32 %v2942, 65535
  %v2944 = vshrl.u32 %v2942, 16
  %v2945 = vand.u32 %v2941, 65535
  %v2946 = vshrl.u32 %v2941, 16
  %v2947 = vmul.u32 %v2943, %v2945
  %v2948 = vmul.u32 %v2943, %v2946
  %v2949 = vmul.u32 %v2944, %v2945
  %v2950 = vmul.u32 %v2944, %v2946
  %v2951 = vshll.u32 %v2948, 16
  %v2952 = vshrl.u32 %v2948, 16
  %v2953 = vshll.u32 %v2949, 16
  %v2954 = vshrl.u32 %v2949, 16
  %vm2955 = vc.u32 %v2947, %v2951
  %v2956 = vsel %vm2955, 1, 0
  %v2957 = vadd.s32 %v2947, %v2951
  %v2958 = vadd.s32 %v2950, %v2956
  %vm2959 = vc.u32 %v2957, %v2953
  %v2960 = vsel %vm2959, 1, 0
  %v2961 = vadd.s32 %v2957, %v2953
  %v2962 = vadd.s32 %v2958, %v2960
  %v2963 = vadd.s32 %v2962, %v2952
  %v2964 = vadd.s32 %v2963, %v2954
  %v2965 = vand.u32 %v2942, 65535
  %v2966 = vshrl.u32 %v2942, 16
  %v2967 = vand.u32 %v2937, 65535
  %v2968 = vshrl.u32 %v2937, 16
  %v2969 = vmul.u32 %v2965, %v2967
  %v2970 = vmul.u32 %v2965, %v2968
  %v2971 = vmul.u32 %v2966, %v2967
  %v2972 = vmul.u32 %v2966, %v2968
  %v2973 = vshll.u32 %v2970, 16
  %v2974 = vshrl.u32 %v2970, 16
  %v2975 = vshll.u32 %v2971, 16
  %v2976 = vshrl.u32 %v2971, 16
  %vm2977 = vc.u32 %v2969, %v2973
  %v2978 = vsel %vm2977, 1, 0
  %v2979 = vadd.s32 %v2969, %v2973
  %v2980 = vadd.s32 %v2972, %v2978
  %vm2981 = vc.u32 %v2979, %v2975
  %v2982 = vsel %vm2981, 1, 0
  %v2983 = vadd.s32 %v2979, %v2975
  %v2984 = vadd.s32 %v2980, %v2982
  %v2985 = vadd.s32 %v2984, %v2974
  %v2986 = vadd.s32 %v2985, %v2976
  %v2987 = vmul.u32 %v2942, %v2933
  %v2988 = vadd.s32 %v2964, %v2983
  %vm2989 = vc.u32 %v2964, %v2983
  %v2990 = vadd.s32 %v2986, 1
  %v2991 = vsel %vm2989, %v2990, %v2986
  %v2992 = vadd.s32 %v2987, %v2991
  %v2993 = vadd.s32 %v2992, 536870912
  %v2994 = vshrl.u32 %v2993, 30
  %v2995 = vshll.u32 %v2994, 30
  %v2996 = vsub.s32 %v2992, %v2995
  %vm2997 = vcmp.lt.s32.totalorder %v2996, 0
  %v2998 = vsub.s32 0, %v2996
  %v2999 = vsel %vm2997, %v2998, %v2996
  %v3000 = vclz %v2999
  %v3001 = vsub.s32 %v3000, 2
  %vm3002 = vcmp.gt.s32.totalorder 0, %v3001
  %v3003 = vsel %vm3002, 0, %v3001
  %v3004 = vsub.s32 32, %v3003
  %v3005 = vshll.u32 %v2996, %v3003
  %v3006 = vshrl.u32 %v2988, %v3004
  %v3007 = vor.u32 %v3005, %v3006
  %v3008 = vsub.s32 4294967266, %v3003
  %v3009 = vadd.s32 %v3008, 127
  %v3010 = vshll.u32 %v3009, 23
  %v3011 = vor.u32 4788187, %v3010
  %v3012 = vand.u32 2147483647, %v3011
  %v3014 = vcvt.s32.f32 %v3007
  %v3015 = vmul.f32 %v3014, %v3012
  %v3016 = vxor.u32 %v3015, 2147483648
  %v3017 = vsel %vm2896, %v3016, %v3015
  %v3018 = vsub.s32 4, %v2994
  %v3019 = vsel %vm2896, %v3018, %v2994
  %v3020 = vsel %vm2895, %v778, %v3017
  %v3021 = vsel %vm2895, 0, %v3019
  %v3022 = vmul.f32 %v3020, %v3020
  %v3023 = vmul.f32 %v3022, -0.001358992
  %v3024 = vadd.f32 %v3023, 0.041655596
  %v3025 = vmul.f32 %v3022, %v3024
  %v3026 = vadd.f32 %v3025, -0.4999988
  %v3027 = vmul.f32 %v3022, %v3026
  %v3028 = vadd.f32 1.0, %v3027
  %v3029 = vmul.f32 %v3020, %v3020
  %v3030 = vmul.f32 %v3029, -0.00019511016
  %v3031 = vadd.f32 %v3030, 0.008332121
  %v3032 = vmul.f32 %v3029, %v3031
  %v3033 = vadd.f32 %v3032, -0.16666654
  %v3034 = vmul.f32 %v3029, %v3033
  %v3035 = vadd.f32 %v3034, 1.0
  %v3036 = vmul.f32 %v3035, %v3020
  %vm3037 = vweird.f32 %v778
  %v3038 = vadd.s32 %v3021, 3
  %v3039 = vand.u32 %v3038, 3
  %vm3040 = vcmp.lt.s32.totalorder %v3039, 2
  %vm3041 = vcmp.eq.s32.totalorder %v3039, 0
  %v3042 = vxor.u32 %v3036, 2147483648
  %v3043 = vsel %vm3041, %v3028, %v3042
  %vm3044 = vcmp.eq.s32.totalorder %v3039, 2
  %v3045 = vxor.u32 %v3028, 2147483648
  %v3046 = vsel %vm3044, %v3045, %v3036
  %v3047 = vsel %vm3040, %v3043, %v3046
  %v3048 = vsel %vm3037, nan, %v3047
  %v3049 = vand.u32 2147483647, %v779
  %vm3050 = vcmp.le.f32.partialorder %v3049, 0.7853982
  %vm3051 = vcmp.lt.s32.totalorder %v779, 0
  %v3052 = vand.u32 %v779, 2139095040
  %v3053 = vshrl.u32 %v3052, 23
  %v3054 = vsub.s32 %v3053, 127
  %v3055 = vand.u32 2147483647, %v779
  %v3056 = vand.u32 %v3055, 8388607
  %v3057 = vor.u32 %v3056, 8388608
  %v3058 = vsub.s32 0, %v3057
  %v3059 = vadd.s32 %v3054, 1
  %vm3060 = vcmp.gt.s32.totalorder %v3059, 0
  %v3061 = vsel %vm3060, %v3059, 0
  %v3062 = vshrl.u32 %v3061, 5
  %v3063 = vand.u32 %v3061, 31
  %v3064 = vsub.s32 32, %v3063
  %v3065 = vshrl.u32 683565275, %v3064
  %v3066 = vshll.u32 683565275, %v3063
  %v3067 = vshrl.u32 2475754826, %v3064
  %v3068 = vor.u32 %v3066, %v3067
  %v3069 = vshll.u32 2475754826, %v3063
  %v3070 = vshrl.u32 2131351028, %v3064
  %v3071 = vor.u32 %v3069, %v3070
  %v3072 = vshll.u32 2131351028, %v3063
  %v3073 = vshrl.u32 2102212464, %v3064
  %v3074 = vor.u32 %v3072, %v3073
  %v3075 = vshll.u32 2102212464, %v3063
  %v3076 = vshrl.u32 920167782, %v3064
  %v3077 = vor.u32 %v3075, %v3076
  %v3078 = vshll.u32 920167782, %v3063
  %v3079 = vshrl.u32 1326507024, %v3064
  %v3080 = vor.u32 %v3078, %v3079
  %vm3081 = vcmp.lt.s32.totalorder %v3062, 1
  %vm3082 = vcmp.lt.s32.totalorder %v3062, 2
  %vm3083 = vcmp.lt.s32.totalorder %v3062, 3
  %vm3084 = vcmp.lt.s32.totalorder %v3062, 4
  %v3085 = vsel %vm3081, %v3065, %v3068
  %v3086 = vsel %vm3084, %v3074, 2102212464
  %v3087 = vsel %vm3083, %v3071, %v3086
  %v3088 = vsel %vm3082, %v3085, %v3087
  %v3089 = vsel %vm3081, %v3068, %v3071
  %v3090 = vsel %vm3084, %v3077, 920167782
  %v3091 = vsel %vm3083, %v3074, %v3090
  %v3092 = vsel %vm3082, %v3089, %v3091
  %v3093 = vsel %vm3081, %v3071, %v3074
  %v3094 = vsel %vm3084, %v3080, 1326507024
  %v3095 = vsel %vm3083, %v3077, %v3094
  %v3096 = vsel %vm3082, %v3093, %v3095
  %v3097 = vshll.u32 %v3057, 8
  %v3098 = vand.u32 %v3097, 65535
  %v3099 = vshrl.u32 %v3097, 16
  %v3100 = vand.u32 %v3096, 65535
  %v3101 = vshrl.u32 %v3096, 16
  %v3102 = vmul.u32 %v3098, %v3100
  %v3103 = vmul.u32 %v3098, %v3101
  %v3104 = vmul.u32 %v3099, %v3100
  %v3105 = vmul.u32 %v3099, %v3101
  %v3106 = vshll.u32 %v3103, 16
  %v3107 = vshrl.u32 %v3103, 16
  %v3108 = vshll.u32 %v3104, 16
  %v3109 = vshrl.u32 %v3104, 16
  %vm3110 = vc.u32 %v3102, %v3106
  %v3111 = vsel %vm3110, 1, 0
  %v3112 = vadd.s32 %v3102, %v3106
  %v3113 = vadd.s32 %v3105, %v3111
  %vm3114 = vc.u32 %v3112, %v3108
  %v3115 = vsel %vm3114, 1, 0
  %v3116 = vadd.s32 %v3112, %v3108
  %v3117 = vadd.s32 %v3113, %v3115
  %v3118 = vadd.s32 %v3117, %v3107
  %v3119 = vadd.s32 %v3118, %v3109
  %v3120 = vand.u32 %v3097, 65535
  %v3121 = vshrl.u32 %v3097, 16
  %v3122 = vand.u32 %v3092, 65535
  %v3123 = vshrl.u32 %v3092, 16
  %v3124 = vmul.u32 %v3120, %v3122
  %v3125 = vmul.u32 %v3120, %v3123
  %v3126 = vmul.u32 %v3121, %v3122
  %v3127 = vmul.u32 %v3121, %v3123
  %v3128 = vshll.u32 %v3125, 16
  %v3129 = vshrl.u32 %v3125, 16
  %v3130 = vshll.u32 %v3126, 16
  %v3131 = vshrl.u32 %v3126, 16
  %vm3132 = vc.u32 %v3124, %v3128
  %v3133 = vsel %vm3132, 1, 0
  %v3134 = vadd.s32 %v3124, %v3128
  %v3135 = vadd.s32 %v3127, %v3133
  %vm3136 = vc.u32 %v3134, %v3130
  %v3137 = vsel %vm3136, 1, 0
  %v3138 = vadd.s32 %v3134, %v3130
  %v3139 = vadd.s32 %v3135, %v3137
  %v3140 = vadd.s32 %v3139, %v3129
  %v3141 = vadd.s32 %v3140, %v3131
  %v3142 = vmul.u32 %v3097, %v3088
  %v3143 = vadd.s32 %v3119, %v3138
  %vm3144 = vc.u32 %v3119, %v3138
  %v3145 = vadd.s32 %v3141, 1
  %v3146 = vsel %vm3144, %v3145, %v3141
  %v3147 = vadd.s32 %v3142, %v3146
  %v3148 = vadd.s32 %v3147, 536870912
  %v3149 = vshrl.u32 %v3148, 30
  %v3150 = vshll.u32 %v3149, 30
  %v3151 = vsub.s32 %v3147, %v3150
  %vm3152 = vcmp.lt.s32.totalorder %v3151, 0
  %v3153 = vsub.s32 0, %v3151
  %v3154 = vsel %vm3152, %v3153, %v3151
  %v3155 = vclz %v3154
  %v3156 = vsub.s32 %v3155, 2
  %vm3157 = vcmp.gt.s32.totalorder 0, %v3156
  %v3158 = vsel %vm3157, 0, %v3156
  %v3159 = vsub.s32 32, %v3158
  %v3160 = vshll.u32 %v3151, %v3158
  %v3161 = vshrl.u32 %v3143, %v3159
  %v3162 = vor.u32 %v3160, %v3161
  %v3163 = vsub.s32 4294967266, %v3158
  %v3164 = vadd.s32 %v3163, 127
  %v3165 = vshll.u32 %v3164, 23
  %v3166 = vor.u32 4788187, %v3165
  %v3167 = vand.u32 2147483647, %v3166
  %v3169 = vcvt.s32.f32 %v3162
  %v3170 = vmul.f32 %v3169, %v3167
  %v3171 = vxor.u32 %v3170, 2147483648
  %v3172 = vsel %vm3051, %v3171, %v3170
  %v3173 = vsub.s32 4, %v3149
  %v3174 = vsel %vm3051, %v3173, %v3149
  %v3175 = vsel %vm3050, %v779, %v3172
  %v3176 = vsel %vm3050, 0, %v3174
  %v3177 = vmul.f32 %v3175, %v3175
  %v3178 = vmul.f32 %v3177, -0.001358992
  %v3179 = vadd.f32 %v3178, 0.041655596
  %v3180 = vmul.f32 %v3177, %v3179
  %v3181 = vadd.f32 %v3180, -0.4999988
  %v3182 = vmul.f32 %v3177, %v3181
  %v3183 = vadd.f32 1.0, %v3182
  %v3184 = vmul.f32 %v3175, %v3175
  %v3185 = vmul.f32 %v3184, -0.00019511016
  %v3186 = vadd.f32 %v3185, 0.008332121
  %v3187 = vmul.f32 %v3184, %v3186
  %v3188 = vadd.f32 %v3187, -0.16666654
  %v3189 = vmul.f32 %v3184, %v3188
  %v3190 = vadd.f32 %v3189, 1.0
  %v3191 = vmul.f32 %v3190, %v3175
  %vm3192 = vweird.f32 %v779
  %v3193 = vadd.s32 %v3176, 3
  %v3194 = vand.u32 %v3193, 3
  %vm3195 = vcmp.lt.s32.totalorder %v3194, 2
  %vm3196 = vcmp.eq.s32.totalorder %v3194, 0
  %v3197 = vxor.u32 %v3191, 2147483648
  %v3198 = vsel %vm3196, %v3183, %v3197
  %vm3199 = vcmp.eq.s32.totalorder %v3194, 2
  %v3200 = vxor.u32 %v3183, 2147483648
  %v3201 = vsel %vm3199, %v3200, %v3191
  %v3202 = vsel %vm3195, %v3198, %v3201
  %v3203 = vsel %vm3192, nan, %v3202
  %v3204 = vand.u32 2147483647, %v780
  %vm3205 = vcmp.le.f32.partialorder %v3204, 0.7853982
  %vm3206 = vcmp.lt.s32.totalorder %v780, 0
  %v3207 = vand.u32 %v780, 2139095040
  %v3208 = vshrl.u32 %v3207, 23
  %v3209 = vsub.s32 %v3208, 127
  %v3210 = vand.u32 2147483647, %v780
  %v3211 = vand.u32 %v3210, 8388607
  %v3212 = vor.u32 %v3211, 8388608
  %v3213 = vsub.s32 0, %v3212
  %v3214 = vadd.s32 %v3209, 1
  %vm3215 = vcmp.gt.s32.totalorder %v3214, 0
  %v3216 = vsel %vm3215, %v3214, 0
  %v3217 = vshrl.u32 %v3216, 5
  %v3218 = vand.u32 %v3216, 31
  %v3219 = vsub.s32 32, %v3218
  %v3220 = vshrl.u32 683565275, %v3219
  %v3221 = vshll.u32 683565275, %v3218
  %v3222 = vshrl.u32 2475754826, %v3219
  %v3223 = vor.u32 %v3221, %v3222
  %v3224 = vshll.u32 2475754826, %v3218
  %v3225 = vshrl.u32 2131351028, %v3219
  %v3226 = vor.u32 %v3224, %v3225
  %v3227 = vshll.u32 2131351028, %v3218
  %v3228 = vshrl.u32 2102212464, %v3219
  %v3229 = vor.u32 %v3227, %v3228
  %v3230 = vshll.u32 2102212464, %v3218
  %v3231 = vshrl.u32 920167782, %v3219
  %v3232 = vor.u32 %v3230, %v3231
  %v3233 = vshll.u32 920167782, %v3218
  %v3234 = vshrl.u32 1326507024, %v3219
  %v3235 = vor.u32 %v3233, %v3234
  %vm3236 = vcmp.lt.s32.totalorder %v3217, 1
  %vm3237 = vcmp.lt.s32.totalorder %v3217, 2
  %vm3238 = vcmp.lt.s32.totalorder %v3217, 3
  %vm3239 = vcmp.lt.s32.totalorder %v3217, 4
  %v3240 = vsel %vm3236, %v3220, %v3223
  %v3241 = vsel %vm3239, %v3229, 2102212464
  %v3242 = vsel %vm3238, %v3226, %v3241
  %v3243 = vsel %vm3237, %v3240, %v3242
  %v3244 = vsel %vm3236, %v3223, %v3226
  %v3245 = vsel %vm3239, %v3232, 920167782
  %v3246 = vsel %vm3238, %v3229, %v3245
  %v3247 = vsel %vm3237, %v3244, %v3246
  %v3248 = vsel %vm3236, %v3226, %v3229
  %v3249 = vsel %vm3239, %v3235, 1326507024
  %v3250 = vsel %vm3238, %v3232, %v3249
  %v3251 = vsel %vm3237, %v3248, %v3250
  %v3252 = vshll.u32 %v3212, 8
  %v3253 = vand.u32 %v3252, 65535
  %v3254 = vshrl.u32 %v3252, 16
  %v3255 = vand.u32 %v3251, 65535
  %v3256 = vshrl.u32 %v3251, 16
  %v3257 = vmul.u32 %v3253, %v3255
  %v3258 = vmul.u32 %v3253, %v3256
  %v3259 = vmul.u32 %v3254, %v3255
  %v3260 = vmul.u32 %v3254, %v3256
  %v3261 = vshll.u32 %v3258, 16
  %v3262 = vshrl.u32 %v3258, 16
  %v3263 = vshll.u32 %v3259, 16
  %v3264 = vshrl.u32 %v3259, 16
  %vm3265 = vc.u32 %v3257, %v3261
  %v3266 = vsel %vm3265, 1, 0
  %v3267 = vadd.s32 %v3257, %v3261
  %v3268 = vadd.s32 %v3260, %v3266
  %vm3269 = vc.u32 %v3267, %v3263
  %v3270 = vsel %vm3269, 1, 0
  %v3271 = vadd.s32 %v3267, %v3263
  %v3272 = vadd.s32 %v3268, %v3270
  %v3273 = vadd.s32 %v3272, %v3262
  %v3274 = vadd.s32 %v3273, %v3264
  %v3275 = vand.u32 %v3252, 65535
  %v3276 = vshrl.u32 %v3252, 16
  %v3277 = vand.u32 %v3247, 65535
  %v3278 = vshrl.u32 %v3247, 16
  %v3279 = vmul.u32 %v3275, %v3277
  %v3280 = vmul.u32 %v3275, %v3278
  %v3281 = vmul.u32 %v3276, %v3277
  %v3282 = vmul.u32 %v3276, %v3278
  %v3283 = vshll.u32 %v3280, 16
  %v3284 = vshrl.u32 %v3280, 16
  %v3285 = vshll.u32 %v3281, 16
  %v3286 = vshrl.u32 %v3281, 16
  %vm3287 = vc.u32 %v3279, %v3283
  %v3288 = vsel %vm3287, 1, 0
  %v3289 = vadd.s32 %v3279, %v3283
  %v3290 = vadd.s32 %v3282, %v3288
  %vm3291 = vc.u32 %v3289, %v3285
  %v3292 = vsel %vm3291, 1, 0
  %v3293 = vadd.s32 %v3289, %v3285
  %v3294 = vadd.s32 %v3290, %v3292
  %v3295 = vadd.s32 %v3294, %v3284
  %v3296 = vadd.s32 %v3295, %v3286
  %v3297 = vmul.u32 %v3252, %v3243
  %v3298 = vadd.s32 %v3274, %v3293
  %vm3299 = vc.u32 %v3274, %v3293
  %v3300 = vadd.s32 %v3296, 1
  %v3301 = vsel %vm3299, %v3300, %v3296
  %v3302 = vadd.s32 %v3297, %v3301
  %v3303 = vadd.s32 %v3302, 536870912
  %v3304 = vshrl.u32 %v3303, 30
  %v3305 = vshll.u32 %v3304, 30
  %v3306 = vsub.s32 %v3302, %v3305
  %vm3307 = vcmp.lt.s32.totalorder %v3306, 0
  %v3308 = vsub.s32 0, %v3306
  %v3309 = vsel %vm3307, %v3308, %v3306
  %v3310 = vclz %v3309
  %v3311 = vsub.s32 %v3310, 2
  %vm3312 = vcmp.gt.s32.totalorder 0, %v3311
  %v3313 = vsel %vm3312, 0, %v3311
  %v3314 = vsub.s32 32, %v3313
  %v3315 = vshll.u32 %v3306, %v3313
  %v3316 = vshrl.u32 %v3298, %v3314
  %v3317 = vor.u32 %v3315, %v3316
  %v3318 = vsub.s32 4294967266, %v3313
  %v3319 = vadd.s32 %v3318, 127
  %v3320 = vshll.u32 %v3319, 23
  %v3321 = vor.u32 4788187, %v3320
  %v3322 = vand.u32 2147483647, %v3321
  %v3324 = vcvt.s32.f32 %v3317
  %v3325 = vmul.f32 %v3324, %v3322
  %v3326 = vxor.u32 %v3325, 2147483648
  %v3327 = vsel %vm3206, %v3326, %v3325
  %v3328 = vsub.s32 4, %v3304
  %v3329 = vsel %vm3206, %v3328, %v3304
  %v3330 = vsel %vm3205, %v780, %v3327
  %v3331 = vsel %vm3205, 0, %v3329
  %v3332 = vmul.f32 %v3330, %v3330
  %v3333 = vmul.f32 %v3332, -0.001358992
  %v3334 = vadd.f32 %v3333, 0.041655596
  %v3335 = vmul.f32 %v3332, %v3334
  %v3336 = vadd.f32 %v3335, -0.4999988
  %v3337 = vmul.f32 %v3332, %v3336
  %v3338 = vadd.f32 1.0, %v3337
  %v3339 = vmul.f32 %v3330, %v3330
  %v3340 = vmul.f32 %v3339, -0.00019511016
  %v3341 = vadd.f32 %v3340, 0.008332121
  %v3342 = vmul.f32 %v3339, %v3341
  %v3343 = vadd.f32 %v3342, -0.16666654
  %v3344 = vmul.f32 %v3339, %v3343
  %v3345 = vadd.f32 %v3344, 1.0
  %v3346 = vmul.f32 %v3345, %v3330
  %vm3347 = vweird.f32 %v780
  %v3348 = vadd.s32 %v3331, 3
  %v3349 = vand.u32 %v3348, 3
  %vm3350 = vcmp.lt.s32.totalorder %v3349, 2
  %vm3351 = vcmp.eq.s32.totalorder %v3349, 0
  %v3352 = vxor.u32 %v3346, 2147483648
  %v3353 = vsel %vm3351, %v3338, %v3352
  %vm3354 = vcmp.eq.s32.totalorder %v3349, 2
  %v3355 = vxor.u32 %v3338, 2147483648
  %v3356 = vsel %vm3354, %v3355, %v3346
  %v3357 = vsel %vm3350, %v3353, %v3356
  %v3358 = vsel %vm3347, nan, %v3357
  %v3359 = vand.u32 2147483647, %v863
  %vm3360 = vcmp.le.f32.partialorder %v3359, 0.7853982
  %vm3361 = vcmp.lt.s32.totalorder %v863, 0
  %v3362 = vand.u32 %v863, 2139095040
  %v3363 = vshrl.u32 %v3362, 23
  %v3364 = vsub.s32 %v3363, 127
  %v3365 = vand.u32 2147483647, %v863
  %v3366 = vand.u32 %v3365, 8388607
  %v3367 = vor.u32 %v3366, 8388608
  %v3368 = vsub.s32 0, %v3367
  %v3369 = vadd.s32 %v3364, 1
  %vm3370 = vcmp.gt.s32.totalorder %v3369, 0
  %v3371 = vsel %vm3370, %v3369, 0
  %v3372 = vshrl.u32 %v3371, 5
  %v3373 = vand.u32 %v3371, 31
  %v3374 = vsub.s32 32, %v3373
  %v3375 = vshrl.u32 683565275, %v3374
  %v3376 = vshll.u32 683565275, %v3373
  %v3377 = vshrl.u32 2475754826, %v3374
  %v3378 = vor.u32 %v3376, %v3377
  %v3379 = vshll.u32 2475754826, %v3373
  %v3380 = vshrl.u32 2131351028, %v3374
  %v3381 = vor.u32 %v3379, %v3380
  %v3382 = vshll.u32 2131351028, %v3373
  %v3383 = vshrl.u32 2102212464, %v3374
  %v3384 = vor.u32 %v3382, %v3383
  %v3385 = vshll.u32 2102212464, %v3373
  %v3386 = vshrl.u32 920167782, %v3374
  %v3387 = vor.u32 %v3385, %v3386
  %v3388 = vshll.u32 920167782, %v3373
  %v3389 = vshrl.u32 1326507024, %v3374
  %v3390 = vor.u32 %v3388, %v3389
  %vm3391 = vcmp.lt.s32.totalorder %v3372, 1
  %vm3392 = vcmp.lt.s32.totalorder %v3372, 2
  %vm3393 = vcmp.lt.s32.totalorder %v3372, 3
  %vm3394 = vcmp.lt.s32.totalorder %v3372, 4
  %v3395 = vsel %vm3391, %v3375, %v3378
  %v3396 = vsel %vm3394, %v3384, 2102212464
  %v3397 = vsel %vm3393, %v3381, %v3396
  %v3398 = vsel %vm3392, %v3395, %v3397
  %v3399 = vsel %vm3391, %v3378, %v3381
  %v3400 = vsel %vm3394, %v3387, 920167782
  %v3401 = vsel %vm3393, %v3384, %v3400
  %v3402 = vsel %vm3392, %v3399, %v3401
  %v3403 = vsel %vm3391, %v3381, %v3384
  %v3404 = vsel %vm3394, %v3390, 1326507024
  %v3405 = vsel %vm3393, %v3387, %v3404
  %v3406 = vsel %vm3392, %v3403, %v3405
  %v3407 = vshll.u32 %v3367, 8
  %v3408 = vand.u32 %v3407, 65535
  %v3409 = vshrl.u32 %v3407, 16
  %v3410 = vand.u32 %v3406, 65535
  %v3411 = vshrl.u32 %v3406, 16
  %v3412 = vmul.u32 %v3408, %v3410
  %v3413 = vmul.u32 %v3408, %v3411
  %v3414 = vmul.u32 %v3409, %v3410
  %v3415 = vmul.u32 %v3409, %v3411
  %v3416 = vshll.u32 %v3413, 16
  %v3417 = vshrl.u32 %v3413, 16
  %v3418 = vshll.u32 %v3414, 16
  %v3419 = vshrl.u32 %v3414, 16
  %vm3420 = vc.u32 %v3412, %v3416
  %v3421 = vsel %vm3420, 1, 0
  %v3422 = vadd.s32 %v3412, %v3416
  %v3423 = vadd.s32 %v3415, %v3421
  %vm3424 = vc.u32 %v3422, %v3418
  %v3425 = vsel %vm3424, 1, 0
  %v3426 = vadd.s32 %v3422, %v3418
  %v3427 = vadd.s32 %v3423, %v3425
  %v3428 = vadd.s32 %v3427, %v3417
  %v3429 = vadd.s32 %v3428, %v3419
  %v3430 = vand.u32 %v3407, 65535
  %v3431 = vshrl.u32 %v3407, 16
  %v3432 = vand.u32 %v3402, 65535
  %v3433 = vshrl.u32 %v3402, 16
  %v3434 = vmul.u32 %v3430, %v3432
  %v3435 = vmul.u32 %v3430, %v3433
  %v3436 = vmul.u32 %v3431, %v3432
  %v3437 = vmul.u32 %v3431, %v3433
  %v3438 = vshll.u32 %v3435, 16
  %v3439 = vshrl.u32 %v3435, 16
  %v3440 = vshll.u32 %v3436, 16
  %v3441 = vshrl.u32 %v3436, 16
  %vm3442 = vc.u32 %v3434, %v3438
  %v3443 = vsel %vm3442, 1, 0
  %v3444 = vadd.s32 %v3434, %v3438
  %v3445 = vadd.s32 %v3437, %v3443
  %vm3446 = vc.u32 %v3444, %v3440
  %v3447 = vsel %vm3446, 1, 0
  %v3448 = vadd.s32 %v3444, %v3440
  %v3449 = vadd.s32 %v3445, %v3447
  %v3450 = vadd.s32 %v3449, %v3439
  %v3451 = vadd.s32 %v3450, %v3441
  %v3452 = vmul.u32 %v3407, %v3398
  %v3453 = vadd.s32 %v3429, %v3448
  %vm3454 = vc.u32 %v3429, %v3448
  %v3455 = vadd.s32 %v3451, 1
  %v3456 = vsel %vm3454, %v3455, %v3451
  %v3457 = vadd.s32 %v3452, %v3456
  %v3458 = vadd.s32 %v3457, 536870912
  %v3459 = vshrl.u32 %v3458, 30
  %v3460 = vshll.u32 %v3459, 30
  %v3461 = vsub.s32 %v3457, %v3460
  %vm3462 = vcmp.lt.s32.totalorder %v3461, 0
  %v3463 = vsub.s32 0, %v3461
  %v3464 = vsel %vm3462, %v3463, %v3461
  %v3465 = vclz %v3464
  %v3466 = vsub.s32 %v3465, 2
  %vm3467 = vcmp.gt.s32.totalorder 0, %v3466
  %v3468 = vsel %vm3467, 0, %v3466
  %v3469 = vsub.s32 32, %v3468
  %v3470 = vshll.u32 %v3461, %v3468
  %v3471 = vshrl.u32 %v3453, %v3469
  %v3472 = vor.u32 %v3470, %v3471
  %v3473 = vsub.s32 4294967266, %v3468
  %v3474 = vadd.s32 %v3473, 127
  %v3475 = vshll.u32 %v3474, 23
  %v3476 = vor.u32 4788187, %v3475
  %v3477 = vand.u32 2147483647, %v3476
  %v3479 = vcvt.s32.f32 %v3472
  %v3480 = vmul.f32 %v3479, %v3477
  %v3481 = vxor.u32 %v3480, 2147483648
  %v3482 = vsel %vm3361, %v3481, %v3480
  %v3483 = vsub.s32 4, %v3459
  %v3484 = vsel %vm3361, %v3483, %v3459
  %v3485 = vsel %vm3360, %v863, %v3482
  %v3486 = vsel %vm3360, 0, %v3484
  %v3487 = vmul.f32 %v3485, %v3485
  %v3488 = vmul.f32 %v3487, -0.001358992
  %v3489 = vadd.f32 %v3488, 0.041655596
  %v3490 = vmul.f32 %v3487, %v3489
  %v3491 = vadd.f32 %v3490, -0.4999988
  %v3492 = vmul.f32 %v3487, %v3491
  %v3493 = vadd.f32 1.0, %v3492
  %v3494 = vmul.f32 %v3485, %v3485
  %v3495 = vmul.f32 %v3494, -0.00019511016
  %v3496 = vadd.f32 %v3495, 0.008332121
  %v3497 = vmul.f32 %v3494, %v3496
  %v3498 = vadd.f32 %v3497, -0.16666654
  %v3499 = vmul.f32 %v3494, %v3498
  %v3500 = vadd.f32 %v3499, 1.0
  %v3501 = vmul.f32 %v3500, %v3485
  %vm3502 = vweird.f32 %v863
  %v3503 = vadd.s32 %v3486, 3
  %v3504 = vand.u32 %v3503, 3
  %vm3505 = vcmp.lt.s32.totalorder %v3504, 2
  %vm3506 = vcmp.eq.s32.totalorder %v3504, 0
  %v3507 = vxor.u32 %v3501, 2147483648
  %v3508 = vsel %vm3506, %v3493, %v3507
  %vm3509 = vcmp.eq.s32.totalorder %v3504, 2
  %v3510 = vxor.u32 %v3493, 2147483648
  %v3511 = vsel %vm3509, %v3510, %v3501
  %v3512 = vsel %vm3505, %v3508, %v3511
  %v3513 = vsel %vm3502, nan, %v3512
  %v3514 = vand.u32 2147483647, %v864
  %vm3515 = vcmp.le.f32.partialorder %v3514, 0.7853982
  %vm3516 = vcmp.lt.s32.totalorder %v864, 0
  %v3517 = vand.u32 %v864, 2139095040
  %v3518 = vshrl.u32 %v3517, 23
  %v3519 = vsub.s32 %v3518, 127
  %v3520 = vand.u32 2147483647, %v864
  %v3521 = vand.u32 %v3520, 8388607
  %v3522 = vor.u32 %v3521, 8388608
  %v3523 = vsub.s32 0, %v3522
  %v3524 = vadd.s32 %v3519, 1
  %vm3525 = vcmp.gt.s32.totalorder %v3524, 0
  %v3526 = vsel %vm3525, %v3524, 0
  %v3527 = vshrl.u32 %v3526, 5
  %v3528 = vand.u32 %v3526, 31
  %v3529 = vsub.s32 32, %v3528
  %v3530 = vshrl.u32 683565275, %v3529
  %v3531 = vshll.u32 683565275, %v3528
  %v3532 = vshrl.u32 2475754826, %v3529
  %v3533 = vor.u32 %v3531, %v3532
  %v3534 = vshll.u32 2475754826, %v3528
  %v3535 = vshrl.u32 2131351028, %v3529
  %v3536 = vor.u32 %v3534, %v3535
  %v3537 = vshll.u32 2131351028, %v3528
  %v3538 = vshrl.u32 2102212464, %v3529
  %v3539 = vor.u32 %v3537, %v3538
  %v3540 = vshll.u32 2102212464, %v3528
  %v3541 = vshrl.u32 920167782, %v3529
  %v3542 = vor.u32 %v3540, %v3541
  %v3543 = vshll.u32 920167782, %v3528
  %v3544 = vshrl.u32 1326507024, %v3529
  %v3545 = vor.u32 %v3543, %v3544
  %vm3546 = vcmp.lt.s32.totalorder %v3527, 1
  %vm3547 = vcmp.lt.s32.totalorder %v3527, 2
  %vm3548 = vcmp.lt.s32.totalorder %v3527, 3
  %vm3549 = vcmp.lt.s32.totalorder %v3527, 4
  %v3550 = vsel %vm3546, %v3530, %v3533
  %v3551 = vsel %vm3549, %v3539, 2102212464
  %v3552 = vsel %vm3548, %v3536, %v3551
  %v3553 = vsel %vm3547, %v3550, %v3552
  %v3554 = vsel %vm3546, %v3533, %v3536
  %v3555 = vsel %vm3549, %v3542, 920167782
  %v3556 = vsel %vm3548, %v3539, %v3555
  %v3557 = vsel %vm3547, %v3554, %v3556
  %v3558 = vsel %vm3546, %v3536, %v3539
  %v3559 = vsel %vm3549, %v3545, 1326507024
  %v3560 = vsel %vm3548, %v3542, %v3559
  %v3561 = vsel %vm3547, %v3558, %v3560
  %v3562 = vshll.u32 %v3522, 8
  %v3563 = vand.u32 %v3562, 65535
  %v3564 = vshrl.u32 %v3562, 16
  %v3565 = vand.u32 %v3561, 65535
  %v3566 = vshrl.u32 %v3561, 16
  %v3567 = vmul.u32 %v3563, %v3565
  %v3568 = vmul.u32 %v3563, %v3566
  %v3569 = vmul.u32 %v3564, %v3565
  %v3570 = vmul.u32 %v3564, %v3566
  %v3571 = vshll.u32 %v3568, 16
  %v3572 = vshrl.u32 %v3568, 16
  %v3573 = vshll.u32 %v3569, 16
  %v3574 = vshrl.u32 %v3569, 16
  %vm3575 = vc.u32 %v3567, %v3571
  %v3576 = vsel %vm3575, 1, 0
  %v3577 = vadd.s32 %v3567, %v3571
  %v3578 = vadd.s32 %v3570, %v3576
  %vm3579 = vc.u32 %v3577, %v3573
  %v3580 = vsel %vm3579, 1, 0
  %v3581 = vadd.s32 %v3577, %v3573
  %v3582 = vadd.s32 %v3578, %v3580
  %v3583 = vadd.s32 %v3582, %v3572
  %v3584 = vadd.s32 %v3583, %v3574
  %v3585 = vand.u32 %v3562, 65535
  %v3586 = vshrl.u32 %v3562, 16
  %v3587 = vand.u32 %v3557, 65535
  %v3588 = vshrl.u32 %v3557, 16
  %v3589 = vmul.u32 %v3585, %v3587
  %v3590 = vmul.u32 %v3585, %v3588
  %v3591 = vmul.u32 %v3586, %v3587
  %v3592 = vmul.u32 %v3586, %v3588
  %v3593 = vshll.u32 %v3590, 16
  %v3594 = vshrl.u32 %v3590, 16
  %v3595 = vshll.u32 %v3591, 16
  %v3596 = vshrl.u32 %v3591, 16
  %vm3597 = vc.u32 %v3589, %v3593
  %v3598 = vsel %vm3597, 1, 0
  %v3599 = vadd.s32 %v3589, %v3593
  %v3600 = vadd.s32 %v3592, %v3598
  %vm3601 = vc.u32 %v3599, %v3595
  %v3602 = vsel %vm3601, 1, 0
  %v3603 = vadd.s32 %v3599, %v3595
  %v3604 = vadd.s32 %v3600, %v3602
  %v3605 = vadd.s32 %v3604, %v3594
  %v3606 = vadd.s32 %v3605, %v3596
  %v3607 = vmul.u32 %v3562, %v3553
  %v3608 = vadd.s32 %v3584, %v3603
  %vm3609 = vc.u32 %v3584, %v3603
  %v3610 = vadd.s32 %v3606, 1
  %v3611 = vsel %vm3609, %v3610, %v3606
  %v3612 = vadd.s32 %v3607, %v3611
  %v3613 = vadd.s32 %v3612, 536870912
  %v3614 = vshrl.u32 %v3613, 30
  %v3615 = vshll.u32 %v3614, 30
  %v3616 = vsub.s32 %v3612, %v3615
  %vm3617 = vcmp.lt.s32.totalorder %v3616, 0
  %v3618 = vsub.s32 0, %v3616
  %v3619 = vsel %vm3617, %v3618, %v3616
  %v3620 = vclz %v3619
  %v3621 = vsub.s32 %v3620, 2
  %vm3622 = vcmp.gt.s32.totalorder 0, %v3621
  %v3623 = vsel %vm3622, 0, %v3621
  %v3624 = vsub.s32 32, %v3623
  %v3625 = vshll.u32 %v3616, %v3623
  %v3626 = vshrl.u32 %v3608, %v3624
  %v3627 = vor.u32 %v3625, %v3626
  %v3628 = vsub.s32 4294967266, %v3623
  %v3629 = vadd.s32 %v3628, 127
  %v3630 = vshll.u32 %v3629, 23
  %v3631 = vor.u32 4788187, %v3630
  %v3632 = vand.u32 2147483647, %v3631
  %v3634 = vcvt.s32.f32 %v3627
  %v3635 = vmul.f32 %v3634, %v3632
  %v3636 = vxor.u32 %v3635, 2147483648
  %v3637 = vsel %vm3516, %v3636, %v3635
  %v3638 = vsub.s32 4, %v3614
  %v3639 = vsel %vm3516, %v3638, %v3614
  %v3640 = vsel %vm3515, %v864, %v3637
  %v3641 = vsel %vm3515, 0, %v3639
  %v3642 = vmul.f32 %v3640, %v3640
  %v3643 = vmul.f32 %v3642, -0.001358992
  %v3644 = vadd.f32 %v3643, 0.041655596
  %v3645 = vmul.f32 %v3642, %v3644
  %v3646 = vadd.f32 %v3645, -0.4999988
  %v3647 = vmul.f32 %v3642, %v3646
  %v3648 = vadd.f32 1.0, %v3647
  %v3649 = vmul.f32 %v3640, %v3640
  %v3650 = vmul.f32 %v3649, -0.00019511016
  %v3651 = vadd.f32 %v3650, 0.008332121
  %v3652 = vmul.f32 %v3649, %v3651
  %v3653 = vadd.f32 %v3652, -0.16666654
  %v3654 = vmul.f32 %v3649, %v3653
  %v3655 = vadd.f32 %v3654, 1.0
  %v3656 = vmul.f32 %v3655, %v3640
  %vm3657 = vweird.f32 %v864
  %v3658 = vadd.s32 %v3641, 3
  %v3659 = vand.u32 %v3658, 3
  %vm3660 = vcmp.lt.s32.totalorder %v3659, 2
  %vm3661 = vcmp.eq.s32.totalorder %v3659, 0
  %v3662 = vxor.u32 %v3656, 2147483648
  %v3663 = vsel %vm3661, %v3648, %v3662
  %vm3664 = vcmp.eq.s32.totalorder %v3659, 2
  %v3665 = vxor.u32 %v3648, 2147483648
  %v3666 = vsel %vm3664, %v3665, %v3656
  %v3667 = vsel %vm3660, %v3663, %v3666
  %v3668 = vsel %vm3657, nan, %v3667
  %v3669 = vand.u32 2147483647, %v865
  %vm3670 = vcmp.le.f32.partialorder %v3669, 0.7853982
  %vm3671 = vcmp.lt.s32.totalorder %v865, 0
  %v3672 = vand.u32 %v865, 2139095040
  %v3673 = vshrl.u32 %v3672, 23
  %v3674 = vsub.s32 %v3673, 127
  %v3675 = vand.u32 2147483647, %v865
  %v3676 = vand.u32 %v3675, 8388607
  %v3677 = vor.u32 %v3676, 8388608
  %v3678 = vsub.s32 0, %v3677
  %v3679 = vadd.s32 %v3674, 1
  %vm3680 = vcmp.gt.s32.totalorder %v3679, 0
  %v3681 = vsel %vm3680, %v3679, 0
  %v3682 = vshrl.u32 %v3681, 5
  %v3683 = vand.u32 %v3681, 31
  %v3684 = vsub.s32 32, %v3683
  %v3685 = vshrl.u32 683565275, %v3684
  %v3686 = vshll.u32 683565275, %v3683
  %v3687 = vshrl.u32 2475754826, %v3684
  %v3688 = vor.u32 %v3686, %v3687
  %v3689 = vshll.u32 2475754826, %v3683
  %v3690 = vshrl.u32 2131351028, %v3684
  %v3691 = vor.u32 %v3689, %v3690
  %v3692 = vshll.u32 2131351028, %v3683
  %v3693 = vshrl.u32 2102212464, %v3684
  %v3694 = vor.u32 %v3692, %v3693
  %v3695 = vshll.u32 2102212464, %v3683
  %v3696 = vshrl.u32 920167782, %v3684
  %v3697 = vor.u32 %v3695, %v3696
  %v3698 = vshll.u32 920167782, %v3683
  %v3699 = vshrl.u32 1326507024, %v3684
  %v3700 = vor.u32 %v3698, %v3699
  %vm3701 = vcmp.lt.s32.totalorder %v3682, 1
  %vm3702 = vcmp.lt.s32.totalorder %v3682, 2
  %vm3703 = vcmp.lt.s32.totalorder %v3682, 3
  %vm3704 = vcmp.lt.s32.totalorder %v3682, 4
  %v3705 = vsel %vm3701, %v3685, %v3688
  %v3706 = vsel %vm3704, %v3694, 2102212464
  %v3707 = vsel %vm3703, %v3691, %v3706
  %v3708 = vsel %vm3702, %v3705, %v3707
  %v3709 = vsel %vm3701, %v3688, %v3691
  %v3710 = vsel %vm3704, %v3697, 920167782
  %v3711 = vsel %vm3703, %v3694, %v3710
  %v3712 = vsel %vm3702, %v3709, %v3711
  %v3713 = vsel %vm3701, %v3691, %v3694
  %v3714 = vsel %vm3704, %v3700, 1326507024
  %v3715 = vsel %vm3703, %v3697, %v3714
  %v3716 = vsel %vm3702, %v3713, %v3715
  %v3717 = vshll.u32 %v3677, 8
  %v3718 = vand.u32 %v3717, 65535
  %v3719 = vshrl.u32 %v3717, 16
  %v3720 = vand.u32 %v3716, 65535
  %v3721 = vshrl.u32 %v3716, 16
  %v3722 = vmul.u32 %v3718, %v3720
  %v3723 = vmul.u32 %v3718, %v3721
  %v3724 = vmul.u32 %v3719, %v3720
  %v3725 = vmul.u32 %v3719, %v3721
  %v3726 = vshll.u32 %v3723, 16
  %v3727 = vshrl.u32 %v3723, 16
  %v3728 = vshll.u32 %v3724, 16
  %v3729 = vshrl.u32 %v3724, 16
  %vm3730 = vc.u32 %v3722, %v3726
  %v3731 = vsel %vm3730, 1, 0
  %v3732 = vadd.s32 %v3722, %v3726
  %v3733 = vadd.s32 %v3725, %v3731
  %vm3734 = vc.u32 %v3732, %v3728
  %v3735 = vsel %vm3734, 1, 0
  %v3736 = vadd.s32 %v3732, %v3728
  %v3737 = vadd.s32 %v3733, %v3735
  %v3738 = vadd.s32 %v3737, %v3727
  %v3739 = vadd.s32 %v3738, %v3729
  %v3740 = vand.u32 %v3717, 65535
  %v3741 = vshrl.u32 %v3717, 16
  %v3742 = vand.u32 %v3712, 65535
  %v3743 = vshrl.u32 %v3712, 16
  %v3744 = vmul.u32 %v3740, %v3742
  %v3745 = vmul.u32 %v3740, %v3743
  %v3746 = vmul.u32 %v3741, %v3742
  %v3747 = vmul.u32 %v3741, %v3743
  %v3748 = vshll.u32 %v3745, 16
  %v3749 = vshrl.u32 %v3745, 16
  %v3750 = vshll.u32 %v3746, 16
  %v3751 = vshrl.u32 %v3746, 16
  %vm3752 = vc.u32 %v3744, %v3748
  %v3753 = vsel %vm3752, 1, 0
  %v3754 = vadd.s32 %v3744, %v3748
  %v3755 = vadd.s32 %v3747, %v3753
  %vm3756 = vc.u32 %v3754, %v3750
  %v3757 = vsel %vm3756, 1, 0
  %v3758 = vadd.s32 %v3754, %v3750
  %v3759 = vadd.s32 %v3755, %v3757
  %v3760 = vadd.s32 %v3759, %v3749
  %v3761 = vadd.s32 %v3760, %v3751
  %v3762 = vmul.u32 %v3717, %v3708
  %v3763 = vadd.s32 %v3739, %v3758
  %vm3764 = vc.u32 %v3739, %v3758
  %v3765 = vadd.s32 %v3761, 1
  %v3766 = vsel %vm3764, %v3765, %v3761
  %v3767 = vadd.s32 %v3762, %v3766
  %v3768 = vadd.s32 %v3767, 536870912
  %v3769 = vshrl.u32 %v3768, 30
  %v3770 = vshll.u32 %v3769, 30
  %v3771 = vsub.s32 %v3767, %v3770
  %vm3772 = vcmp.lt.s32.totalorder %v3771, 0
  %v3773 = vsub.s32 0, %v3771
  %v3774 = vsel %vm3772, %v3773, %v3771
  %v3775 = vclz %v3774
  %v3776 = vsub.s32 %v3775, 2
  %vm3777 = vcmp.gt.s32.totalorder 0, %v3776
  %v3778 = vsel %vm3777, 0, %v3776
  %v3779 = vsub.s32 32, %v3778
  %v3780 = vshll.u32 %v3771, %v3778
  %v3781 = vshrl.u32 %v3763, %v3779
  %v3782 = vor.u32 %v3780, %v3781
  %v3783 = vsub.s32 4294967266, %v3778
  %v3784 = vadd.s32 %v3783, 127
  %v3785 = vshll.u32 %v3784, 23
  %v3786 = vor.u32 4788187, %v3785
  %v3787 = vand.u32 2147483647, %v3786
  %v3789 = vcvt.s32.f32 %v3782
  %v3790 = vmul.f32 %v3789, %v3787
  %v3791 = vxor.u32 %v3790, 2147483648
  %v3792 = vsel %vm3671, %v3791, %v3790
  %v3793 = vsub.s32 4, %v3769
  %v3794 = vsel %vm3671, %v3793, %v3769
  %v3795 = vsel %vm3670, %v865, %v3792
  %v3796 = vsel %vm3670, 0, %v3794
  %v3797 = vmul.f32 %v3795, %v3795
  %v3798 = vmul.f32 %v3797, -0.001358992
  %v3799 = vadd.f32 %v3798, 0.041655596
  %v3800 = vmul.f32 %v3797, %v3799
  %v3801 = vadd.f32 %v3800, -0.4999988
  %v3802 = vmul.f32 %v3797, %v3801
  %v3803 = vadd.f32 1.0, %v3802
  %v3804 = vmul.f32 %v3795, %v3795
  %v3805 = vmul.f32 %v3804, -0.00019511016
  %v3806 = vadd.f32 %v3805, 0.008332121
  %v3807 = vmul.f32 %v3804, %v3806
  %v3808 = vadd.f32 %v3807, -0.16666654
  %v3809 = vmul.f32 %v3804, %v3808
  %v3810 = vadd.f32 %v3809, 1.0
  %v3811 = vmul.f32 %v3810, %v3795
  %vm3812 = vweird.f32 %v865
  %v3813 = vadd.s32 %v3796, 3
  %v3814 = vand.u32 %v3813, 3
  %vm3815 = vcmp.lt.s32.totalorder %v3814, 2
  %vm3816 = vcmp.eq.s32.totalorder %v3814, 0
  %v3817 = vxor.u32 %v3811, 2147483648
  %v3818 = vsel %vm3816, %v3803, %v3817
  %vm3819 = vcmp.eq.s32.totalorder %v3814, 2
  %v3820 = vxor.u32 %v3803, 2147483648
  %v3821 = vsel %vm3819, %v3820, %v3811
  %v3822 = vsel %vm3815, %v3818, %v3821
  %v3823 = vsel %vm3812, nan, %v3822
  %v3824 = vand.u32 2147483647, %v866
  %vm3825 = vcmp.le.f32.partialorder %v3824, 0.7853982
  %vm3826 = vcmp.lt.s32.totalorder %v866, 0
  %v3827 = vand.u32 %v866, 2139095040
  %v3828 = vshrl.u32 %v3827, 23
  %v3829 = vsub.s32 %v3828, 127
  %v3830 = vand.u32 2147483647, %v866
  %v3831 = vand.u32 %v3830, 8388607
  %v3832 = vor.u32 %v3831, 8388608
  %v3833 = vsub.s32 0, %v3832
  %v3834 = vadd.s32 %v3829, 1
  %vm3835 = vcmp.gt.s32.totalorder %v3834, 0
  %v3836 = vsel %vm3835, %v3834, 0
  %v3837 = vshrl.u32 %v3836, 5
  %v3838 = vand.u32 %v3836, 31
  %v3839 = vsub.s32 32, %v3838
  %v3840 = vshrl.u32 683565275, %v3839
  %v3841 = vshll.u32 683565275, %v3838
  %v3842 = vshrl.u32 2475754826, %v3839
  %v3843 = vor.u32 %v3841, %v3842
  %v3844 = vshll.u32 2475754826, %v3838
  %v3845 = vshrl.u32 2131351028, %v3839
  %v3846 = vor.u32 %v3844, %v3845
  %v3847 = vshll.u32 2131351028, %v3838
  %v3848 = vshrl.u32 2102212464, %v3839
  %v3849 = vor.u32 %v3847, %v3848
  %v3850 = vshll.u32 2102212464, %v3838
  %v3851 = vshrl.u32 920167782, %v3839
  %v3852 = vor.u32 %v3850, %v3851
  %v3853 = vshll.u32 920167782, %v3838
  %v3854 = vshrl.u32 1326507024, %v3839
  %v3855 = vor.u32 %v3853, %v3854
  %vm3856 = vcmp.lt.s32.totalorder %v3837, 1
  %vm3857 = vcmp.lt.s32.totalorder %v3837, 2
  %vm3858 = vcmp.lt.s32.totalorder %v3837, 3
  %vm3859 = vcmp.lt.s32.totalorder %v3837, 4
  %v3860 = vsel %vm3856, %v3840, %v3843
  %v3861 = vsel %vm3859, %v3849, 2102212464
  %v3862 = vsel %vm3858, %v3846, %v3861
  %v3863 = vsel %vm3857, %v3860, %v3862
  %v3864 = vsel %vm3856, %v3843, %v3846
  %v3865 = vsel %vm3859, %v3852, 920167782
  %v3866 = vsel %vm3858, %v3849, %v3865
  %v3867 = vsel %vm3857, %v3864, %v3866
  %v3868 = vsel %vm3856, %v3846, %v3849
  %v3869 = vsel %vm3859, %v3855, 1326507024
  %v3870 = vsel %vm3858, %v3852, %v3869
  %v3871 = vsel %vm3857, %v3868, %v3870
  %v3872 = vshll.u32 %v3832, 8
  %v3873 = vand.u32 %v3872, 65535
  %v3874 = vshrl.u32 %v3872, 16
  %v3875 = vand.u32 %v3871, 65535
  %v3876 = vshrl.u32 %v3871, 16
  %v3877 = vmul.u32 %v3873, %v3875
  %v3878 = vmul.u32 %v3873, %v3876
  %v3879 = vmul.u32 %v3874, %v3875
  %v3880 = vmul.u32 %v3874, %v3876
  %v3881 = vshll.u32 %v3878, 16
  %v3882 = vshrl.u32 %v3878, 16
  %v3883 = vshll.u32 %v3879, 16
  %v3884 = vshrl.u32 %v3879, 16
  %vm3885 = vc.u32 %v3877, %v3881
  %v3886 = vsel %vm3885, 1, 0
  %v3887 = vadd.s32 %v3877, %v3881
  %v3888 = vadd.s32 %v3880, %v3886
  %vm3889 = vc.u32 %v3887, %v3883
  %v3890 = vsel %vm3889, 1, 0
  %v3891 = vadd.s32 %v3887, %v3883
  %v3892 = vadd.s32 %v3888, %v3890
  %v3893 = vadd.s32 %v3892, %v3882
  %v3894 = vadd.s32 %v3893, %v3884
  %v3895 = vand.u32 %v3872, 65535
  %v3896 = vshrl.u32 %v3872, 16
  %v3897 = vand.u32 %v3867, 65535
  %v3898 = vshrl.u32 %v3867, 16
  %v3899 = vmul.u32 %v3895, %v3897
  %v3900 = vmul.u32 %v3895, %v3898
  %v3901 = vmul.u32 %v3896, %v3897
  %v3902 = vmul.u32 %v3896, %v3898
  %v3903 = vshll.u32 %v3900, 16
  %v3904 = vshrl.u32 %v3900, 16
  %v3905 = vshll.u32 %v3901, 16
  %v3906 = vshrl.u32 %v3901, 16
  %vm3907 = vc.u32 %v3899, %v3903
  %v3908 = vsel %vm3907, 1, 0
  %v3909 = vadd.s32 %v3899, %v3903
  %v3910 = vadd.s32 %v3902, %v3908
  %vm3911 = vc.u32 %v3909, %v3905
  %v3912 = vsel %vm3911, 1, 0
  %v3913 = vadd.s32 %v3909, %v3905
  %v3914 = vadd.s32 %v3910, %v3912
  %v3915 = vadd.s32 %v3914, %v3904
  %v3916 = vadd.s32 %v3915, %v3906
  %v3917 = vmul.u32 %v3872, %v3863
  %v3918 = vadd.s32 %v3894, %v3913
  %vm3919 = vc.u32 %v3894, %v3913
  %v3920 = vadd.s32 %v3916, 1
  %v3921 = vsel %vm3919, %v3920, %v3916
  %v3922 = vadd.s32 %v3917, %v3921
  %v3923 = vadd.s32 %v3922, 536870912
  %v3924 = vshrl.u32 %v3923, 30
  %v3925 = vshll.u32 %v3924, 30
  %v3926 = vsub.s32 %v3922, %v3925
  %vm3927 = vcmp.lt.s32.totalorder %v3926, 0
  %v3928 = vsub.s32 0, %v3926
  %v3929 = vsel %vm3927, %v3928, %v3926
  %v3930 = vclz %v3929
  %v3931 = vsub.s32 %v3930, 2
  %vm3932 = vcmp.gt.s32.totalorder 0, %v3931
  %v3933 = vsel %vm3932, 0, %v3931
  %v3934 = vsub.s32 32, %v3933
  %v3935 = vshll.u32 %v3926, %v3933
  %v3936 = vshrl.u32 %v3918, %v3934
  %v3937 = vor.u32 %v3935, %v3936
  %v3938 = vsub.s32 4294967266, %v3933
  %v3939 = vadd.s32 %v3938, 127
  %v3940 = vshll.u32 %v3939, 23
  %v3941 = vor.u32 4788187, %v3940
  %v3942 = vand.u32 2147483647, %v3941
  %v3944 = vcvt.s32.f32 %v3937
  %v3945 = vmul.f32 %v3944, %v3942
  %v3946 = vxor.u32 %v3945, 2147483648
  %v3947 = vsel %vm3826, %v3946, %v3945
  %v3948 = vsub.s32 4, %v3924
  %v3949 = vsel %vm3826, %v3948, %v3924
  %v3950 = vsel %vm3825, %v866, %v3947
  %v3951 = vsel %vm3825, 0, %v3949
  %v3952 = vmul.f32 %v3950, %v3950
  %v3953 = vmul.f32 %v3952, -0.001358992
  %v3954 = vadd.f32 %v3953, 0.041655596
  %v3955 = vmul.f32 %v3952, %v3954
  %v3956 = vadd.f32 %v3955, -0.4999988
  %v3957 = vmul.f32 %v3952, %v3956
  %v3958 = vadd.f32 1.0, %v3957
  %v3959 = vmul.f32 %v3950, %v3950
  %v3960 = vmul.f32 %v3959, -0.00019511016
  %v3961 = vadd.f32 %v3960, 0.008332121
  %v3962 = vmul.f32 %v3959, %v3961
  %v3963 = vadd.f32 %v3962, -0.16666654
  %v3964 = vmul.f32 %v3959, %v3963
  %v3965 = vadd.f32 %v3964, 1.0
  %v3966 = vmul.f32 %v3965, %v3950
  %vm3967 = vweird.f32 %v866
  %v3968 = vadd.s32 %v3951, 3
  %v3969 = vand.u32 %v3968, 3
  %vm3970 = vcmp.lt.s32.totalorder %v3969, 2
  %vm3971 = vcmp.eq.s32.totalorder %v3969, 0
  %v3972 = vxor.u32 %v3966, 2147483648
  %v3973 = vsel %vm3971, %v3958, %v3972
  %vm3974 = vcmp.eq.s32.totalorder %v3969, 2
  %v3975 = vxor.u32 %v3958, 2147483648
  %v3976 = vsel %vm3974, %v3975, %v3966
  %v3977 = vsel %vm3970, %v3973, %v3976
  %v3978 = vsel %vm3967, nan, %v3977
  %v3979 = vand.u32 2147483647, %v867
  %vm3980 = vcmp.le.f32.partialorder %v3979, 0.7853982
  %vm3981 = vcmp.lt.s32.totalorder %v867, 0
  %v3982 = vand.u32 %v867, 2139095040
  %v3983 = vshrl.u32 %v3982, 23
  %v3984 = vsub.s32 %v3983, 127
  %v3985 = vand.u32 2147483647, %v867
  %v3986 = vand.u32 %v3985, 8388607
  %v3987 = vor.u32 %v3986, 8388608
  %v3988 = vsub.s32 0, %v3987
  %v3989 = vadd.s32 %v3984, 1
  %vm3990 = vcmp.gt.s32.totalorder %v3989, 0
  %v3991 = vsel %vm3990, %v3989, 0
  %v3992 = vshrl.u32 %v3991, 5
  %v3993 = vand.u32 %v3991, 31
  %v3994 = vsub.s32 32, %v3993
  %v3995 = vshrl.u32 683565275, %v3994
  %v3996 = vshll.u32 683565275, %v3993
  %v3997 = vshrl.u32 2475754826, %v3994
  %v3998 = vor.u32 %v3996, %v3997
  %v3999 = vshll.u32 2475754826, %v3993
  %v4000 = vshrl.u32 2131351028, %v3994
  %v4001 = vor.u32 %v3999, %v4000
  %v4002 = vshll.u32 2131351028, %v3993
  %v4003 = vshrl.u32 2102212464, %v3994
  %v4004 = vor.u32 %v4002, %v4003
  %v4005 = vshll.u32 2102212464, %v3993
  %v4006 = vshrl.u32 920167782, %v3994
  %v4007 = vor.u32 %v4005, %v4006
  %v4008 = vshll.u32 920167782, %v3993
  %v4009 = vshrl.u32 1326507024, %v3994
  %v4010 = vor.u32 %v4008, %v4009
  %vm4011 = vcmp.lt.s32.totalorder %v3992, 1
  %vm4012 = vcmp.lt.s32.totalorder %v3992, 2
  %vm4013 = vcmp.lt.s32.totalorder %v3992, 3
  %vm4014 = vcmp.lt.s32.totalorder %v3992, 4
  %v4015 = vsel %vm4011, %v3995, %v3998
  %v4016 = vsel %vm4014, %v4004, 2102212464
  %v4017 = vsel %vm4013, %v4001, %v4016
  %v4018 = vsel %vm4012, %v4015, %v4017
  %v4019 = vsel %vm4011, %v3998, %v4001
  %v4020 = vsel %vm4014, %v4007, 920167782
  %v4021 = vsel %vm4013, %v4004, %v4020
  %v4022 = vsel %vm4012, %v4019, %v4021
  %v4023 = vsel %vm4011, %v4001, %v4004
  %v4024 = vsel %vm4014, %v4010, 1326507024
  %v4025 = vsel %vm4013, %v4007, %v4024
  %v4026 = vsel %vm4012, %v4023, %v4025
  %v4027 = vshll.u32 %v3987, 8
  %v4028 = vand.u32 %v4027, 65535
  %v4029 = vshrl.u32 %v4027, 16
  %v4030 = vand.u32 %v4026, 65535
  %v4031 = vshrl.u32 %v4026, 16
  %v4032 = vmul.u32 %v4028, %v4030
  %v4033 = vmul.u32 %v4028, %v4031
  %v4034 = vmul.u32 %v4029, %v4030
  %v4035 = vmul.u32 %v4029, %v4031
  %v4036 = vshll.u32 %v4033, 16
  %v4037 = vshrl.u32 %v4033, 16
  %v4038 = vshll.u32 %v4034, 16
  %v4039 = vshrl.u32 %v4034, 16
  %vm4040 = vc.u32 %v4032, %v4036
  %v4041 = vsel %vm4040, 1, 0
  %v4042 = vadd.s32 %v4032, %v4036
  %v4043 = vadd.s32 %v4035, %v4041
  %vm4044 = vc.u32 %v4042, %v4038
  %v4045 = vsel %vm4044, 1, 0
  %v4046 = vadd.s32 %v4042, %v4038
  %v4047 = vadd.s32 %v4043, %v4045
  %v4048 = vadd.s32 %v4047, %v4037
  %v4049 = vadd.s32 %v4048, %v4039
  %v4050 = vand.u32 %v4027, 65535
  %v4051 = vshrl.u32 %v4027, 16
  %v4052 = vand.u32 %v4022, 65535
  %v4053 = vshrl.u32 %v4022, 16
  %v4054 = vmul.u32 %v4050, %v4052
  %v4055 = vmul.u32 %v4050, %v4053
  %v4056 = vmul.u32 %v4051, %v4052
  %v4057 = vmul.u32 %v4051, %v4053
  %v4058 = vshll.u32 %v4055, 16
  %v4059 = vshrl.u32 %v4055, 16
  %v4060 = vshll.u32 %v4056, 16
  %v4061 = vshrl.u32 %v4056, 16
  %vm4062 = vc.u32 %v4054, %v4058
  %v4063 = vsel %vm4062, 1, 0
  %v4064 = vadd.s32 %v4054, %v4058
  %v4065 = vadd.s32 %v4057, %v4063
  %vm4066 = vc.u32 %v4064, %v4060
  %v4067 = vsel %vm4066, 1, 0
  %v4068 = vadd.s32 %v4064, %v4060
  %v4069 = vadd.s32 %v4065, %v4067
  %v4070 = vadd.s32 %v4069, %v4059
  %v4071 = vadd.s32 %v4070, %v4061
  %v4072 = vmul.u32 %v4027, %v4018
  %v4073 = vadd.s32 %v4049, %v4068
  %vm4074 = vc.u32 %v4049, %v4068
  %v4075 = vadd.s32 %v4071, 1
  %v4076 = vsel %vm4074, %v4075, %v4071
  %v4077 = vadd.s32 %v4072, %v4076
  %v4078 = vadd.s32 %v4077, 536870912
  %v4079 = vshrl.u32 %v4078, 30
  %v4080 = vshll.u32 %v4079, 30
  %v4081 = vsub.s32 %v4077, %v4080
  %vm4082 = vcmp.lt.s32.totalorder %v4081, 0
  %v4083 = vsub.s32 0, %v4081
  %v4084 = vsel %vm4082, %v4083, %v4081
  %v4085 = vclz %v4084
  %v4086 = vsub.s32 %v4085, 2
  %vm4087 = vcmp.gt.s32.totalorder 0, %v4086
  %v4088 = vsel %vm4087, 0, %v4086
  %v4089 = vsub.s32 32, %v4088
  %v4090 = vshll.u32 %v4081, %v4088
  %v4091 = vshrl.u32 %v4073, %v4089
  %v4092 = vor.u32 %v4090, %v4091
  %v4093 = vsub.s32 4294967266, %v4088
  %v4094 = vadd.s32 %v4093, 127
  %v4095 = vshll.u32 %v4094, 23
  %v4096 = vor.u32 4788187, %v4095
  %v4097 = vand.u32 2147483647, %v4096
  %v4099 = vcvt.s32.f32 %v4092
  %v4100 = vmul.f32 %v4099, %v4097
  %v4101 = vxor.u32 %v4100, 2147483648
  %v4102 = vsel %vm3981, %v4101, %v4100
  %v4103 = vsub.s32 4, %v4079
  %v4104 = vsel %vm3981, %v4103, %v4079
  %v4105 = vsel %vm3980, %v867, %v4102
  %v4106 = vsel %vm3980, 0, %v4104
  %v4107 = vmul.f32 %v4105, %v4105
  %v4108 = vmul.f32 %v4107, -0.001358992
  %v4109 = vadd.f32 %v4108, 0.041655596
  %v4110 = vmul.f32 %v4107, %v4109
  %v4111 = vadd.f32 %v4110, -0.4999988
  %v4112 = vmul.f32 %v4107, %v4111
  %v4113 = vadd.f32 1.0, %v4112
  %v4114 = vmul.f32 %v4105, %v4105
  %v4115 = vmul.f32 %v4114, -0.00019511016
  %v4116 = vadd.f32 %v4115, 0.008332121
  %v4117 = vmul.f32 %v4114, %v4116
  %v4118 = vadd.f32 %v4117, -0.16666654
  %v4119 = vmul.f32 %v4114, %v4118
  %v4120 = vadd.f32 %v4119, 1.0
  %v4121 = vmul.f32 %v4120, %v4105
  %vm4122 = vweird.f32 %v867
  %v4123 = vadd.s32 %v4106, 3
  %v4124 = vand.u32 %v4123, 3
  %vm4125 = vcmp.lt.s32.totalorder %v4124, 2
  %vm4126 = vcmp.eq.s32.totalorder %v4124, 0
  %v4127 = vxor.u32 %v4121, 2147483648
  %v4128 = vsel %vm4126, %v4113, %v4127
  %vm4129 = vcmp.eq.s32.totalorder %v4124, 2
  %v4130 = vxor.u32 %v4113, 2147483648
  %v4131 = vsel %vm4129, %v4130, %v4121
  %v4132 = vsel %vm4125, %v4128, %v4131
  %v4133 = vsel %vm4122, nan, %v4132
  %v4134 = vand.u32 2147483647, %v868
  %vm4135 = vcmp.le.f32.partialorder %v4134, 0.7853982
  %vm4136 = vcmp.lt.s32.totalorder %v868, 0
  %v4137 = vand.u32 %v868, 2139095040
  %v4138 = vshrl.u32 %v4137, 23
  %v4139 = vsub.s32 %v4138, 127
  %v4140 = vand.u32 2147483647, %v868
  %v4141 = vand.u32 %v4140, 8388607
  %v4142 = vor.u32 %v4141, 8388608
  %v4143 = vsub.s32 0, %v4142
  %v4144 = vadd.s32 %v4139, 1
  %vm4145 = vcmp.gt.s32.totalorder %v4144, 0
  %v4146 = vsel %vm4145, %v4144, 0
  %v4147 = vshrl.u32 %v4146, 5
  %v4148 = vand.u32 %v4146, 31
  %v4149 = vsub.s32 32, %v4148
  %v4150 = vshrl.u32 683565275, %v4149
  %v4151 = vshll.u32 683565275, %v4148
  %v4152 = vshrl.u32 2475754826, %v4149
  %v4153 = vor.u32 %v4151, %v4152
  %v4154 = vshll.u32 2475754826, %v4148
  %v4155 = vshrl.u32 2131351028, %v4149
  %v4156 = vor.u32 %v4154, %v4155
  %v4157 = vshll.u32 2131351028, %v4148
  %v4158 = vshrl.u32 2102212464, %v4149
  %v4159 = vor.u32 %v4157, %v4158
  %v4160 = vshll.u32 2102212464, %v4148
  %v4161 = vshrl.u32 920167782, %v4149
  %v4162 = vor.u32 %v4160, %v4161
  %v4163 = vshll.u32 920167782, %v4148
  %v4164 = vshrl.u32 1326507024, %v4149
  %v4165 = vor.u32 %v4163, %v4164
  %vm4166 = vcmp.lt.s32.totalorder %v4147, 1
  %vm4167 = vcmp.lt.s32.totalorder %v4147, 2
  %vm4168 = vcmp.lt.s32.totalorder %v4147, 3
  %vm4169 = vcmp.lt.s32.totalorder %v4147, 4
  %v4170 = vsel %vm4166, %v4150, %v4153
  %v4171 = vsel %vm4169, %v4159, 2102212464
  %v4172 = vsel %vm4168, %v4156, %v4171
  %v4173 = vsel %vm4167, %v4170, %v4172
  %v4174 = vsel %vm4166, %v4153, %v4156
  %v4175 = vsel %vm4169, %v4162, 920167782
  %v4176 = vsel %vm4168, %v4159, %v4175
  %v4177 = vsel %vm4167, %v4174, %v4176
  %v4178 = vsel %vm4166, %v4156, %v4159
  %v4179 = vsel %vm4169, %v4165, 1326507024
  %v4180 = vsel %vm4168, %v4162, %v4179
  %v4181 = vsel %vm4167, %v4178, %v4180
  %v4182 = vshll.u32 %v4142, 8
  %v4183 = vand.u32 %v4182, 65535
  %v4184 = vshrl.u32 %v4182, 16
  %v4185 = vand.u32 %v4181, 65535
  %v4186 = vshrl.u32 %v4181, 16
  %v4187 = vmul.u32 %v4183, %v4185
  %v4188 = vmul.u32 %v4183, %v4186
  %v4189 = vmul.u32 %v4184, %v4185
  %v4190 = vmul.u32 %v4184, %v4186
  %v4191 = vshll.u32 %v4188, 16
  %v4192 = vshrl.u32 %v4188, 16
  %v4193 = vshll.u32 %v4189, 16
  %v4194 = vshrl.u32 %v4189, 16
  %vm4195 = vc.u32 %v4187, %v4191
  %v4196 = vsel %vm4195, 1, 0
  %v4197 = vadd.s32 %v4187, %v4191
  %v4198 = vadd.s32 %v4190, %v4196
  %vm4199 = vc.u32 %v4197, %v4193
  %v4200 = vsel %vm4199, 1, 0
  %v4201 = vadd.s32 %v4197, %v4193
  %v4202 = vadd.s32 %v4198, %v4200
  %v4203 = vadd.s32 %v4202, %v4192
  %v4204 = vadd.s32 %v4203, %v4194
  %v4205 = vand.u32 %v4182, 65535
  %v4206 = vshrl.u32 %v4182, 16
  %v4207 = vand.u32 %v4177, 65535
  %v4208 = vshrl.u32 %v4177, 16
  %v4209 = vmul.u32 %v4205, %v4207
  %v4210 = vmul.u32 %v4205, %v4208
  %v4211 = vmul.u32 %v4206, %v4207
  %v4212 = vmul.u32 %v4206, %v4208
  %v4213 = vshll.u32 %v4210, 16
  %v4214 = vshrl.u32 %v4210, 16
  %v4215 = vshll.u32 %v4211, 16
  %v4216 = vshrl.u32 %v4211, 16
  %vm4217 = vc.u32 %v4209, %v4213
  %v4218 = vsel %vm4217, 1, 0
  %v4219 = vadd.s32 %v4209, %v4213
  %v4220 = vadd.s32 %v4212, %v4218
  %vm4221 = vc.u32 %v4219, %v4215
  %v4222 = vsel %vm4221, 1, 0
  %v4223 = vadd.s32 %v4219, %v4215
  %v4224 = vadd.s32 %v4220, %v4222
  %v4225 = vadd.s32 %v4224, %v4214
  %v4226 = vadd.s32 %v4225, %v4216
  %v4227 = vmul.u32 %v4182, %v4173
  %v4228 = vadd.s32 %v4204, %v4223
  %vm4229 = vc.u32 %v4204, %v4223
  %v4230 = vadd.s32 %v4226, 1
  %v4231 = vsel %vm4229, %v4230, %v4226
  %v4232 = vadd.s32 %v4227, %v4231
  %v4233 = vadd.s32 %v4232, 536870912
  %v4234 = vshrl.u32 %v4233, 30
  %v4235 = vshll.u32 %v4234, 30
  %v4236 = vsub.s32 %v4232, %v4235
  %vm4237 = vcmp.lt.s32.totalorder %v4236, 0
  %v4238 = vsub.s32 0, %v4236
  %v4239 = vsel %vm4237, %v4238, %v4236
  %v4240 = vclz %v4239
  %v4241 = vsub.s32 %v4240, 2
  %vm4242 = vcmp.gt.s32.totalorder 0, %v4241
  %v4243 = vsel %vm4242, 0, %v4241
  %v4244 = vsub.s32 32, %v4243
  %v4245 = vshll.u32 %v4236, %v4243
  %v4246 = vshrl.u32 %v4228, %v4244
  %v4247 = vor.u32 %v4245, %v4246
  %v4248 = vsub.s32 4294967266, %v4243
  %v4249 = vadd.s32 %v4248, 127
  %v4250 = vshll.u32 %v4249, 23
  %v4251 = vor.u32 4788187, %v4250
  %v4252 = vand.u32 2147483647, %v4251
  %v4254 = vcvt.s32.f32 %v4247
  %v4255 = vmul.f32 %v4254, %v4252
  %v4256 = vxor.u32 %v4255, 2147483648
  %v4257 = vsel %vm4136, %v4256, %v4255
  %v4258 = vsub.s32 4, %v4234
  %v4259 = vsel %vm4136, %v4258, %v4234
  %v4260 = vsel %vm4135, %v868, %v4257
  %v4261 = vsel %vm4135, 0, %v4259
  %v4262 = vmul.f32 %v4260, %v4260
  %v4263 = vmul.f32 %v4262, -0.001358992
  %v4264 = vadd.f32 %v4263, 0.041655596
  %v4265 = vmul.f32 %v4262, %v4264
  %v4266 = vadd.f32 %v4265, -0.4999988
  %v4267 = vmul.f32 %v4262, %v4266
  %v4268 = vadd.f32 1.0, %v4267
  %v4269 = vmul.f32 %v4260, %v4260
  %v4270 = vmul.f32 %v4269, -0.00019511016
  %v4271 = vadd.f32 %v4270, 0.008332121
  %v4272 = vmul.f32 %v4269, %v4271
  %v4273 = vadd.f32 %v4272, -0.16666654
  %v4274 = vmul.f32 %v4269, %v4273
  %v4275 = vadd.f32 %v4274, 1.0
  %v4276 = vmul.f32 %v4275, %v4260
  %vm4277 = vweird.f32 %v868
  %v4278 = vadd.s32 %v4261, 3
  %v4279 = vand.u32 %v4278, 3
  %vm4280 = vcmp.lt.s32.totalorder %v4279, 2
  %vm4281 = vcmp.eq.s32.totalorder %v4279, 0
  %v4282 = vxor.u32 %v4276, 2147483648
  %v4283 = vsel %vm4281, %v4268, %v4282
  %vm4284 = vcmp.eq.s32.totalorder %v4279, 2
  %v4285 = vxor.u32 %v4268, 2147483648
  %v4286 = vsel %vm4284, %v4285, %v4276
  %v4287 = vsel %vm4280, %v4283, %v4286
  %v4288 = vsel %vm4277, nan, %v4287
  %v4289 = vand.u32 2147483647, %v869
  %vm4290 = vcmp.le.f32.partialorder %v4289, 0.7853982
  %vm4291 = vcmp.lt.s32.totalorder %v869, 0
  %v4292 = vand.u32 %v869, 2139095040
  %v4293 = vshrl.u32 %v4292, 23
  %v4294 = vsub.s32 %v4293, 127
  %v4295 = vand.u32 2147483647, %v869
  %v4296 = vand.u32 %v4295, 8388607
  %v4297 = vor.u32 %v4296, 8388608
  %v4298 = vsub.s32 0, %v4297
  %v4299 = vadd.s32 %v4294, 1
  %vm4300 = vcmp.gt.s32.totalorder %v4299, 0
  %v4301 = vsel %vm4300, %v4299, 0
  %v4302 = vshrl.u32 %v4301, 5
  %v4303 = vand.u32 %v4301, 31
  %v4304 = vsub.s32 32, %v4303
  %v4305 = vshrl.u32 683565275, %v4304
  %v4306 = vshll.u32 683565275, %v4303
  %v4307 = vshrl.u32 2475754826, %v4304
  %v4308 = vor.u32 %v4306, %v4307
  %v4309 = vshll.u32 2475754826, %v4303
  %v4310 = vshrl.u32 2131351028, %v4304
  %v4311 = vor.u32 %v4309, %v4310
  %v4312 = vshll.u32 2131351028, %v4303
  %v4313 = vshrl.u32 2102212464, %v4304
  %v4314 = vor.u32 %v4312, %v4313
  %v4315 = vshll.u32 2102212464, %v4303
  %v4316 = vshrl.u32 920167782, %v4304
  %v4317 = vor.u32 %v4315, %v4316
  %v4318 = vshll.u32 920167782, %v4303
  %v4319 = vshrl.u32 1326507024, %v4304
  %v4320 = vor.u32 %v4318, %v4319
  %vm4321 = vcmp.lt.s32.totalorder %v4302, 1
  %vm4322 = vcmp.lt.s32.totalorder %v4302, 2
  %vm4323 = vcmp.lt.s32.totalorder %v4302, 3
  %vm4324 = vcmp.lt.s32.totalorder %v4302, 4
  %v4325 = vsel %vm4321, %v4305, %v4308
  %v4326 = vsel %vm4324, %v4314, 2102212464
  %v4327 = vsel %vm4323, %v4311, %v4326
  %v4328 = vsel %vm4322, %v4325, %v4327
  %v4329 = vsel %vm4321, %v4308, %v4311
  %v4330 = vsel %vm4324, %v4317, 920167782
  %v4331 = vsel %vm4323, %v4314, %v4330
  %v4332 = vsel %vm4322, %v4329, %v4331
  %v4333 = vsel %vm4321, %v4311, %v4314
  %v4334 = vsel %vm4324, %v4320, 1326507024
  %v4335 = vsel %vm4323, %v4317, %v4334
  %v4336 = vsel %vm4322, %v4333, %v4335
  %v4337 = vshll.u32 %v4297, 8
  %v4338 = vand.u32 %v4337, 65535
  %v4339 = vshrl.u32 %v4337, 16
  %v4340 = vand.u32 %v4336, 65535
  %v4341 = vshrl.u32 %v4336, 16
  %v4342 = vmul.u32 %v4338, %v4340
  %v4343 = vmul.u32 %v4338, %v4341
  %v4344 = vmul.u32 %v4339, %v4340
  %v4345 = vmul.u32 %v4339, %v4341
  %v4346 = vshll.u32 %v4343, 16
  %v4347 = vshrl.u32 %v4343, 16
  %v4348 = vshll.u32 %v4344, 16
  %v4349 = vshrl.u32 %v4344, 16
  %vm4350 = vc.u32 %v4342, %v4346
  %v4351 = vsel %vm4350, 1, 0
  %v4352 = vadd.s32 %v4342, %v4346
  %v4353 = vadd.s32 %v4345, %v4351
  %vm4354 = vc.u32 %v4352, %v4348
  %v4355 = vsel %vm4354, 1, 0
  %v4356 = vadd.s32 %v4352, %v4348
  %v4357 = vadd.s32 %v4353, %v4355
  %v4358 = vadd.s32 %v4357, %v4347
  %v4359 = vadd.s32 %v4358, %v4349
  %v4360 = vand.u32 %v4337, 65535
  %v4361 = vshrl.u32 %v4337, 16
  %v4362 = vand.u32 %v4332, 65535
  %v4363 = vshrl.u32 %v4332, 16
  %v4364 = vmul.u32 %v4360, %v4362
  %v4365 = vmul.u32 %v4360, %v4363
  %v4366 = vmul.u32 %v4361, %v4362
  %v4367 = vmul.u32 %v4361, %v4363
  %v4368 = vshll.u32 %v4365, 16
  %v4369 = vshrl.u32 %v4365, 16
  %v4370 = vshll.u32 %v4366, 16
  %v4371 = vshrl.u32 %v4366, 16
  %vm4372 = vc.u32 %v4364, %v4368
  %v4373 = vsel %vm4372, 1, 0
  %v4374 = vadd.s32 %v4364, %v4368
  %v4375 = vadd.s32 %v4367, %v4373
  %vm4376 = vc.u32 %v4374, %v4370
  %v4377 = vsel %vm4376, 1, 0
  %v4378 = vadd.s32 %v4374, %v4370
  %v4379 = vadd.s32 %v4375, %v4377
  %v4380 = vadd.s32 %v4379, %v4369
  %v4381 = vadd.s32 %v4380, %v4371
  %v4382 = vmul.u32 %v4337, %v4328
  %v4383 = vadd.s32 %v4359, %v4378
  %vm4384 = vc.u32 %v4359, %v4378
  %v4385 = vadd.s32 %v4381, 1
  %v4386 = vsel %vm4384, %v4385, %v4381
  %v4387 = vadd.s32 %v4382, %v4386
  %v4388 = vadd.s32 %v4387, 536870912
  %v4389 = vshrl.u32 %v4388, 30
  %v4390 = vshll.u32 %v4389, 30
  %v4391 = vsub.s32 %v4387, %v4390
  %vm4392 = vcmp.lt.s32.totalorder %v4391, 0
  %v4393 = vsub.s32 0, %v4391
  %v4394 = vsel %vm4392, %v4393, %v4391
  %v4395 = vclz %v4394
  %v4396 = vsub.s32 %v4395, 2
  %vm4397 = vcmp.gt.s32.totalorder 0, %v4396
  %v4398 = vsel %vm4397, 0, %v4396
  %v4399 = vsub.s32 32, %v4398
  %v4400 = vshll.u32 %v4391, %v4398
  %v4401 = vshrl.u32 %v4383, %v4399
  %v4402 = vor.u32 %v4400, %v4401
  %v4403 = vsub.s32 4294967266, %v4398
  %v4404 = vadd.s32 %v4403, 127
  %v4405 = vshll.u32 %v4404, 23
  %v4406 = vor.u32 4788187, %v4405
  %v4407 = vand.u32 2147483647, %v4406
  %v4409 = vcvt.s32.f32 %v4402
  %v4410 = vmul.f32 %v4409, %v4407
  %v4411 = vxor.u32 %v4410, 2147483648
  %v4412 = vsel %vm4291, %v4411, %v4410
  %v4413 = vsub.s32 4, %v4389
  %v4414 = vsel %vm4291, %v4413, %v4389
  %v4415 = vsel %vm4290, %v869, %v4412
  %v4416 = vsel %vm4290, 0, %v4414
  %v4417 = vmul.f32 %v4415, %v4415
  %v4418 = vmul.f32 %v4417, -0.001358992
  %v4419 = vadd.f32 %v4418, 0.041655596
  %v4420 = vmul.f32 %v4417, %v4419
  %v4421 = vadd.f32 %v4420, -0.4999988
  %v4422 = vmul.f32 %v4417, %v4421
  %v4423 = vadd.f32 1.0, %v4422
  %v4424 = vmul.f32 %v4415, %v4415
  %v4425 = vmul.f32 %v4424, -0.00019511016
  %v4426 = vadd.f32 %v4425, 0.008332121
  %v4427 = vmul.f32 %v4424, %v4426
  %v4428 = vadd.f32 %v4427, -0.16666654
  %v4429 = vmul.f32 %v4424, %v4428
  %v4430 = vadd.f32 %v4429, 1.0
  %v4431 = vmul.f32 %v4430, %v4415
  %vm4432 = vweird.f32 %v869
  %v4433 = vadd.s32 %v4416, 3
  %v4434 = vand.u32 %v4433, 3
  %vm4435 = vcmp.lt.s32.totalorder %v4434, 2
  %vm4436 = vcmp.eq.s32.totalorder %v4434, 0
  %v4437 = vxor.u32 %v4431, 2147483648
  %v4438 = vsel %vm4436, %v4423, %v4437
  %vm4439 = vcmp.eq.s32.totalorder %v4434, 2
  %v4440 = vxor.u32 %v4423, 2147483648
  %v4441 = vsel %vm4439, %v4440, %v4431
  %v4442 = vsel %vm4435, %v4438, %v4441
  %v4443 = vsel %vm4432, nan, %v4442
  %v4444 = vand.u32 2147483647, %v870
  %vm4445 = vcmp.le.f32.partialorder %v4444, 0.7853982
  %vm4446 = vcmp.lt.s32.totalorder %v870, 0
  %v4447 = vand.u32 %v870, 2139095040
  %v4448 = vshrl.u32 %v4447, 23
  %v4449 = vsub.s32 %v4448, 127
  %v4450 = vand.u32 2147483647, %v870
  %v4451 = vand.u32 %v4450, 8388607
  %v4452 = vor.u32 %v4451, 8388608
  %v4453 = vsub.s32 0, %v4452
  %v4454 = vadd.s32 %v4449, 1
  %vm4455 = vcmp.gt.s32.totalorder %v4454, 0
  %v4456 = vsel %vm4455, %v4454, 0
  %v4457 = vshrl.u32 %v4456, 5
  %v4458 = vand.u32 %v4456, 31
  %v4459 = vsub.s32 32, %v4458
  %v4460 = vshrl.u32 683565275, %v4459
  %v4461 = vshll.u32 683565275, %v4458
  %v4462 = vshrl.u32 2475754826, %v4459
  %v4463 = vor.u32 %v4461, %v4462
  %v4464 = vshll.u32 2475754826, %v4458
  %v4465 = vshrl.u32 2131351028, %v4459
  %v4466 = vor.u32 %v4464, %v4465
  %v4467 = vshll.u32 2131351028, %v4458
  %v4468 = vshrl.u32 2102212464, %v4459
  %v4469 = vor.u32 %v4467, %v4468
  %v4470 = vshll.u32 2102212464, %v4458
  %v4471 = vshrl.u32 920167782, %v4459
  %v4472 = vor.u32 %v4470, %v4471
  %v4473 = vshll.u32 920167782, %v4458
  %v4474 = vshrl.u32 1326507024, %v4459
  %v4475 = vor.u32 %v4473, %v4474
  %vm4476 = vcmp.lt.s32.totalorder %v4457, 1
  %vm4477 = vcmp.lt.s32.totalorder %v4457, 2
  %vm4478 = vcmp.lt.s32.totalorder %v4457, 3
  %vm4479 = vcmp.lt.s32.totalorder %v4457, 4
  %v4480 = vsel %vm4476, %v4460, %v4463
  %v4481 = vsel %vm4479, %v4469, 2102212464
  %v4482 = vsel %vm4478, %v4466, %v4481
  %v4483 = vsel %vm4477, %v4480, %v4482
  %v4484 = vsel %vm4476, %v4463, %v4466
  %v4485 = vsel %vm4479, %v4472, 920167782
  %v4486 = vsel %vm4478, %v4469, %v4485
  %v4487 = vsel %vm4477, %v4484, %v4486
  %v4488 = vsel %vm4476, %v4466, %v4469
  %v4489 = vsel %vm4479, %v4475, 1326507024
  %v4490 = vsel %vm4478, %v4472, %v4489
  %v4491 = vsel %vm4477, %v4488, %v4490
  %v4492 = vshll.u32 %v4452, 8
  %v4493 = vand.u32 %v4492, 65535
  %v4494 = vshrl.u32 %v4492, 16
  %v4495 = vand.u32 %v4491, 65535
  %v4496 = vshrl.u32 %v4491, 16
  %v4497 = vmul.u32 %v4493, %v4495
  %v4498 = vmul.u32 %v4493, %v4496
  %v4499 = vmul.u32 %v4494, %v4495
  %v4500 = vmul.u32 %v4494, %v4496
  %v4501 = vshll.u32 %v4498, 16
  %v4502 = vshrl.u32 %v4498, 16
  %v4503 = vshll.u32 %v4499, 16
  %v4504 = vshrl.u32 %v4499, 16
  %vm4505 = vc.u32 %v4497, %v4501
  %v4506 = vsel %vm4505, 1, 0
  %v4507 = vadd.s32 %v4497, %v4501
  %v4508 = vadd.s32 %v4500, %v4506
  %vm4509 = vc.u32 %v4507, %v4503
  %v4510 = vsel %vm4509, 1, 0
  %v4511 = vadd.s32 %v4507, %v4503
  %v4512 = vadd.s32 %v4508, %v4510
  %v4513 = vadd.s32 %v4512, %v4502
  %v4514 = vadd.s32 %v4513, %v4504
  %v4515 = vand.u32 %v4492, 65535
  %v4516 = vshrl.u32 %v4492, 16
  %v4517 = vand.u32 %v4487, 65535
  %v4518 = vshrl.u32 %v4487, 16
  %v4519 = vmul.u32 %v4515, %v4517
  %v4520 = vmul.u32 %v4515, %v4518
  %v4521 = vmul.u32 %v4516, %v4517
  %v4522 = vmul.u32 %v4516, %v4518
  %v4523 = vshll.u32 %v4520, 16
  %v4524 = vshrl.u32 %v4520, 16
  %v4525 = vshll.u32 %v4521, 16
  %v4526 = vshrl.u32 %v4521, 16
  %vm4527 = vc.u32 %v4519, %v4523
  %v4528 = vsel %vm4527, 1, 0
  %v4529 = vadd.s32 %v4519, %v4523
  %v4530 = vadd.s32 %v4522, %v4528
  %vm4531 = vc.u32 %v4529, %v4525
  %v4532 = vsel %vm4531, 1, 0
  %v4533 = vadd.s32 %v4529, %v4525
  %v4534 = vadd.s32 %v4530, %v4532
  %v4535 = vadd.s32 %v4534, %v4524
  %v4536 = vadd.s32 %v4535, %v4526
  %v4537 = vmul.u32 %v4492, %v4483
  %v4538 = vadd.s32 %v4514, %v4533
  %vm4539 = vc.u32 %v4514, %v4533
  %v4540 = vadd.s32 %v4536, 1
  %v4541 = vsel %vm4539, %v4540, %v4536
  %v4542 = vadd.s32 %v4537, %v4541
  %v4543 = vadd.s32 %v4542, 536870912
  %v4544 = vshrl.u32 %v4543, 30
  %v4545 = vshll.u32 %v4544, 30
  %v4546 = vsub.s32 %v4542, %v4545
  %vm4547 = vcmp.lt.s32.totalorder %v4546, 0
  %v4548 = vsub.s32 0, %v4546
  %v4549 = vsel %vm4547, %v4548, %v4546
  %v4550 = vclz %v4549
  %v4551 = vsub.s32 %v4550, 2
  %vm4552 = vcmp.gt.s32.totalorder 0, %v4551
  %v4553 = vsel %vm4552, 0, %v4551
  %v4554 = vsub.s32 32, %v4553
  %v4555 = vshll.u32 %v4546, %v4553
  %v4556 = vshrl.u32 %v4538, %v4554
  %v4557 = vor.u32 %v4555, %v4556
  %v4558 = vsub.s32 4294967266, %v4553
  %v4559 = vadd.s32 %v4558, 127
  %v4560 = vshll.u32 %v4559, 23
  %v4561 = vor.u32 4788187, %v4560
  %v4562 = vand.u32 2147483647, %v4561
  %v4564 = vcvt.s32.f32 %v4557
  %v4565 = vmul.f32 %v4564, %v4562
  %v4566 = vxor.u32 %v4565, 2147483648
  %v4567 = vsel %vm4446, %v4566, %v4565
  %v4568 = vsub.s32 4, %v4544
  %v4569 = vsel %vm4446, %v4568, %v4544
  %v4570 = vsel %vm4445, %v870, %v4567
  %v4571 = vsel %vm4445, 0, %v4569
  %v4572 = vmul.f32 %v4570, %v4570
  %v4573 = vmul.f32 %v4572, -0.001358992
  %v4574 = vadd.f32 %v4573, 0.041655596
  %v4575 = vmul.f32 %v4572, %v4574
  %v4576 = vadd.f32 %v4575, -0.4999988
  %v4577 = vmul.f32 %v4572, %v4576
  %v4578 = vadd.f32 1.0, %v4577
  %v4579 = vmul.f32 %v4570, %v4570
  %v4580 = vmul.f32 %v4579, -0.00019511016
  %v4581 = vadd.f32 %v4580, 0.008332121
  %v4582 = vmul.f32 %v4579, %v4581
  %v4583 = vadd.f32 %v4582, -0.16666654
  %v4584 = vmul.f32 %v4579, %v4583
  %v4585 = vadd.f32 %v4584, 1.0
  %v4586 = vmul.f32 %v4585, %v4570
  %vm4587 = vweird.f32 %v870
  %v4588 = vadd.s32 %v4571, 3
  %v4589 = vand.u32 %v4588, 3
  %vm4590 = vcmp.lt.s32.totalorder %v4589, 2
  %vm4591 = vcmp.eq.s32.totalorder %v4589, 0
  %v4592 = vxor.u32 %v4586, 2147483648
  %v4593 = vsel %vm4591, %v4578, %v4592
  %vm4594 = vcmp.eq.s32.totalorder %v4589, 2
  %v4595 = vxor.u32 %v4578, 2147483648
  %v4596 = vsel %vm4594, %v4595, %v4586
  %v4597 = vsel %vm4590, %v4593, %v4596
  %v4598 = vsel %vm4587, nan, %v4597
  %v4599 = vand.u32 2147483647, %v871
  %vm4600 = vcmp.le.f32.partialorder %v4599, 0.7853982
  %vm4601 = vcmp.lt.s32.totalorder %v871, 0
  %v4602 = vand.u32 %v871, 2139095040
  %v4603 = vshrl.u32 %v4602, 23
  %v4604 = vsub.s32 %v4603, 127
  %v4605 = vand.u32 2147483647, %v871
  %v4606 = vand.u32 %v4605, 8388607
  %v4607 = vor.u32 %v4606, 8388608
  %v4608 = vsub.s32 0, %v4607
  %v4609 = vadd.s32 %v4604, 1
  %vm4610 = vcmp.gt.s32.totalorder %v4609, 0
  %v4611 = vsel %vm4610, %v4609, 0
  %v4612 = vshrl.u32 %v4611, 5
  %v4613 = vand.u32 %v4611, 31
  %v4614 = vsub.s32 32, %v4613
  %v4615 = vshrl.u32 683565275, %v4614
  %v4616 = vshll.u32 683565275, %v4613
  %v4617 = vshrl.u32 2475754826, %v4614
  %v4618 = vor.u32 %v4616, %v4617
  %v4619 = vshll.u32 2475754826, %v4613
  %v4620 = vshrl.u32 2131351028, %v4614
  %v4621 = vor.u32 %v4619, %v4620
  %v4622 = vshll.u32 2131351028, %v4613
  %v4623 = vshrl.u32 2102212464, %v4614
  %v4624 = vor.u32 %v4622, %v4623
  %v4625 = vshll.u32 2102212464, %v4613
  %v4626 = vshrl.u32 920167782, %v4614
  %v4627 = vor.u32 %v4625, %v4626
  %v4628 = vshll.u32 920167782, %v4613
  %v4629 = vshrl.u32 1326507024, %v4614
  %v4630 = vor.u32 %v4628, %v4629
  %vm4631 = vcmp.lt.s32.totalorder %v4612, 1
  %vm4632 = vcmp.lt.s32.totalorder %v4612, 2
  %vm4633 = vcmp.lt.s32.totalorder %v4612, 3
  %vm4634 = vcmp.lt.s32.totalorder %v4612, 4
  %v4635 = vsel %vm4631, %v4615, %v4618
  %v4636 = vsel %vm4634, %v4624, 2102212464
  %v4637 = vsel %vm4633, %v4621, %v4636
  %v4638 = vsel %vm4632, %v4635, %v4637
  %v4639 = vsel %vm4631, %v4618, %v4621
  %v4640 = vsel %vm4634, %v4627, 920167782
  %v4641 = vsel %vm4633, %v4624, %v4640
  %v4642 = vsel %vm4632, %v4639, %v4641
  %v4643 = vsel %vm4631, %v4621, %v4624
  %v4644 = vsel %vm4634, %v4630, 1326507024
  %v4645 = vsel %vm4633, %v4627, %v4644
  %v4646 = vsel %vm4632, %v4643, %v4645
  %v4647 = vshll.u32 %v4607, 8
  %v4648 = vand.u32 %v4647, 65535
  %v4649 = vshrl.u32 %v4647, 16
  %v4650 = vand.u32 %v4646, 65535
  %v4651 = vshrl.u32 %v4646, 16
  %v4652 = vmul.u32 %v4648, %v4650
  %v4653 = vmul.u32 %v4648, %v4651
  %v4654 = vmul.u32 %v4649, %v4650
  %v4655 = vmul.u32 %v4649, %v4651
  %v4656 = vshll.u32 %v4653, 16
  %v4657 = vshrl.u32 %v4653, 16
  %v4658 = vshll.u32 %v4654, 16
  %v4659 = vshrl.u32 %v4654, 16
  %vm4660 = vc.u32 %v4652, %v4656
  %v4661 = vsel %vm4660, 1, 0
  %v4662 = vadd.s32 %v4652, %v4656
  %v4663 = vadd.s32 %v4655, %v4661
  %vm4664 = vc.u32 %v4662, %v4658
  %v4665 = vsel %vm4664, 1, 0
  %v4666 = vadd.s32 %v4662, %v4658
  %v4667 = vadd.s32 %v4663, %v4665
  %v4668 = vadd.s32 %v4667, %v4657
  %v4669 = vadd.s32 %v4668, %v4659
  %v4670 = vand.u32 %v4647, 65535
  %v4671 = vshrl.u32 %v4647, 16
  %v4672 = vand.u32 %v4642, 65535
  %v4673 = vshrl.u32 %v4642, 16
  %v4674 = vmul.u32 %v4670, %v4672
  %v4675 = vmul.u32 %v4670, %v4673
  %v4676 = vmul.u32 %v4671, %v4672
  %v4677 = vmul.u32 %v4671, %v4673
  %v4678 = vshll.u32 %v4675, 16
  %v4679 = vshrl.u32 %v4675, 16
  %v4680 = vshll.u32 %v4676, 16
  %v4681 = vshrl.u32 %v4676, 16
  %vm4682 = vc.u32 %v4674, %v4678
  %v4683 = vsel %vm4682, 1, 0
  %v4684 = vadd.s32 %v4674, %v4678
  %v4685 = vadd.s32 %v4677, %v4683
  %vm4686 = vc.u32 %v4684, %v4680
  %v4687 = vsel %vm4686, 1, 0
  %v4688 = vadd.s32 %v4684, %v4680
  %v4689 = vadd.s32 %v4685, %v4687
  %v4690 = vadd.s32 %v4689, %v4679
  %v4691 = vadd.s32 %v4690, %v4681
  %v4692 = vmul.u32 %v4647, %v4638
  %v4693 = vadd.s32 %v4669, %v4688
  %vm4694 = vc.u32 %v4669, %v4688
  %v4695 = vadd.s32 %v4691, 1
  %v4696 = vsel %vm4694, %v4695, %v4691
  %v4697 = vadd.s32 %v4692, %v4696
  %v4698 = vadd.s32 %v4697, 536870912
  %v4699 = vshrl.u32 %v4698, 30
  %v4700 = vshll.u32 %v4699, 30
  %v4701 = vsub.s32 %v4697, %v4700
  %vm4702 = vcmp.lt.s32.totalorder %v4701, 0
  %v4703 = vsub.s32 0, %v4701
  %v4704 = vsel %vm4702, %v4703, %v4701
  %v4705 = vclz %v4704
  %v4706 = vsub.s32 %v4705, 2
  %vm4707 = vcmp.gt.s32.totalorder 0, %v4706
  %v4708 = vsel %vm4707, 0, %v4706
  %v4709 = vsub.s32 32, %v4708
  %v4710 = vshll.u32 %v4701, %v4708
  %v4711 = vshrl.u32 %v4693, %v4709
  %v4712 = vor.u32 %v4710, %v4711
  %v4713 = vsub.s32 4294967266, %v4708
  %v4714 = vadd.s32 %v4713, 127
  %v4715 = vshll.u32 %v4714, 23
  %v4716 = vor.u32 4788187, %v4715
  %v4717 = vand.u32 2147483647, %v4716
  %v4719 = vcvt.s32.f32 %v4712
  %v4720 = vmul.f32 %v4719, %v4717
  %v4721 = vxor.u32 %v4720, 2147483648
  %v4722 = vsel %vm4601, %v4721, %v4720
  %v4723 = vsub.s32 4, %v4699
  %v4724 = vsel %vm4601, %v4723, %v4699
  %v4725 = vsel %vm4600, %v871, %v4722
  %v4726 = vsel %vm4600, 0, %v4724
  %v4727 = vmul.f32 %v4725, %v4725
  %v4728 = vmul.f32 %v4727, -0.001358992
  %v4729 = vadd.f32 %v4728, 0.041655596
  %v4730 = vmul.f32 %v4727, %v4729
  %v4731 = vadd.f32 %v4730, -0.4999988
  %v4732 = vmul.f32 %v4727, %v4731
  %v4733 = vadd.f32 1.0, %v4732
  %v4734 = vmul.f32 %v4725, %v4725
  %v4735 = vmul.f32 %v4734, -0.00019511016
  %v4736 = vadd.f32 %v4735, 0.008332121
  %v4737 = vmul.f32 %v4734, %v4736
  %v4738 = vadd.f32 %v4737, -0.16666654
  %v4739 = vmul.f32 %v4734, %v4738
  %v4740 = vadd.f32 %v4739, 1.0
  %v4741 = vmul.f32 %v4740, %v4725
  %vm4742 = vweird.f32 %v871
  %v4743 = vadd.s32 %v4726, 3
  %v4744 = vand.u32 %v4743, 3
  %vm4745 = vcmp.lt.s32.totalorder %v4744, 2
  %vm4746 = vcmp.eq.s32.totalorder %v4744, 0
  %v4747 = vxor.u32 %v4741, 2147483648
  %v4748 = vsel %vm4746, %v4733, %v4747
  %vm4749 = vcmp.eq.s32.totalorder %v4744, 2
  %v4750 = vxor.u32 %v4733, 2147483648
  %v4751 = vsel %vm4749, %v4750, %v4741
  %v4752 = vsel %vm4745, %v4748, %v4751
  %v4753 = vsel %vm4742, nan, %v4752
  %v4754 = vand.u32 2147483647, %v872
  %vm4755 = vcmp.le.f32.partialorder %v4754, 0.7853982
  %vm4756 = vcmp.lt.s32.totalorder %v872, 0
  %v4757 = vand.u32 %v872, 2139095040
  %v4758 = vshrl.u32 %v4757, 23
  %v4759 = vsub.s32 %v4758, 127
  %v4760 = vand.u32 2147483647, %v872
  %v4761 = vand.u32 %v4760, 8388607
  %v4762 = vor.u32 %v4761, 8388608
  %v4763 = vsub.s32 0, %v4762
  %v4764 = vadd.s32 %v4759, 1
  %vm4765 = vcmp.gt.s32.totalorder %v4764, 0
  %v4766 = vsel %vm4765, %v4764, 0
  %v4767 = vshrl.u32 %v4766, 5
  %v4768 = vand.u32 %v4766, 31
  %v4769 = vsub.s32 32, %v4768
  %v4770 = vshrl.u32 683565275, %v4769
  %v4771 = vshll.u32 683565275, %v4768
  %v4772 = vshrl.u32 2475754826, %v4769
  %v4773 = vor.u32 %v4771, %v4772
  %v4774 = vshll.u32 2475754826, %v4768
  %v4775 = vshrl.u32 2131351028, %v4769
  %v4776 = vor.u32 %v4774, %v4775
  %v4777 = vshll.u32 2131351028, %v4768
  %v4778 = vshrl.u32 2102212464, %v4769
  %v4779 = vor.u32 %v4777, %v4778
  %v4780 = vshll.u32 2102212464, %v4768
  %v4781 = vshrl.u32 920167782, %v4769
  %v4782 = vor.u32 %v4780, %v4781
  %v4783 = vshll.u32 920167782, %v4768
  %v4784 = vshrl.u32 1326507024, %v4769
  %v4785 = vor.u32 %v4783, %v4784
  %vm4786 = vcmp.lt.s32.totalorder %v4767, 1
  %vm4787 = vcmp.lt.s32.totalorder %v4767, 2
  %vm4788 = vcmp.lt.s32.totalorder %v4767, 3
  %vm4789 = vcmp.lt.s32.totalorder %v4767, 4
  %v4790 = vsel %vm4786, %v4770, %v4773
  %v4791 = vsel %vm4789, %v4779, 2102212464
  %v4792 = vsel %vm4788, %v4776, %v4791
  %v4793 = vsel %vm4787, %v4790, %v4792
  %v4794 = vsel %vm4786, %v4773, %v4776
  %v4795 = vsel %vm4789, %v4782, 920167782
  %v4796 = vsel %vm4788, %v4779, %v4795
  %v4797 = vsel %vm4787, %v4794, %v4796
  %v4798 = vsel %vm4786, %v4776, %v4779
  %v4799 = vsel %vm4789, %v4785, 1326507024
  %v4800 = vsel %vm4788, %v4782, %v4799
  %v4801 = vsel %vm4787, %v4798, %v4800
  %v4802 = vshll.u32 %v4762, 8
  %v4803 = vand.u32 %v4802, 65535
  %v4804 = vshrl.u32 %v4802, 16
  %v4805 = vand.u32 %v4801, 65535
  %v4806 = vshrl.u32 %v4801, 16
  %v4807 = vmul.u32 %v4803, %v4805
  %v4808 = vmul.u32 %v4803, %v4806
  %v4809 = vmul.u32 %v4804, %v4805
  %v4810 = vmul.u32 %v4804, %v4806
  %v4811 = vshll.u32 %v4808, 16
  %v4812 = vshrl.u32 %v4808, 16
  %v4813 = vshll.u32 %v4809, 16
  %v4814 = vshrl.u32 %v4809, 16
  %vm4815 = vc.u32 %v4807, %v4811
  %v4816 = vsel %vm4815, 1, 0
  %v4817 = vadd.s32 %v4807, %v4811
  %v4818 = vadd.s32 %v4810, %v4816
  %vm4819 = vc.u32 %v4817, %v4813
  %v4820 = vsel %vm4819, 1, 0
  %v4821 = vadd.s32 %v4817, %v4813
  %v4822 = vadd.s32 %v4818, %v4820
  %v4823 = vadd.s32 %v4822, %v4812
  %v4824 = vadd.s32 %v4823, %v4814
  %v4825 = vand.u32 %v4802, 65535
  %v4826 = vshrl.u32 %v4802, 16
  %v4827 = vand.u32 %v4797, 65535
  %v4828 = vshrl.u32 %v4797, 16
  %v4829 = vmul.u32 %v4825, %v4827
  %v4830 = vmul.u32 %v4825, %v4828
  %v4831 = vmul.u32 %v4826, %v4827
  %v4832 = vmul.u32 %v4826, %v4828
  %v4833 = vshll.u32 %v4830, 16
  %v4834 = vshrl.u32 %v4830, 16
  %v4835 = vshll.u32 %v4831, 16
  %v4836 = vshrl.u32 %v4831, 16
  %vm4837 = vc.u32 %v4829, %v4833
  %v4838 = vsel %vm4837, 1, 0
  %v4839 = vadd.s32 %v4829, %v4833
  %v4840 = vadd.s32 %v4832, %v4838
  %vm4841 = vc.u32 %v4839, %v4835
  %v4842 = vsel %vm4841, 1, 0
  %v4843 = vadd.s32 %v4839, %v4835
  %v4844 = vadd.s32 %v4840, %v4842
  %v4845 = vadd.s32 %v4844, %v4834
  %v4846 = vadd.s32 %v4845, %v4836
  %v4847 = vmul.u32 %v4802, %v4793
  %v4848 = vadd.s32 %v4824, %v4843
  %vm4849 = vc.u32 %v4824, %v4843
  %v4850 = vadd.s32 %v4846, 1
  %v4851 = vsel %vm4849, %v4850, %v4846
  %v4852 = vadd.s32 %v4847, %v4851
  %v4853 = vadd.s32 %v4852, 536870912
  %v4854 = vshrl.u32 %v4853, 30
  %v4855 = vshll.u32 %v4854, 30
  %v4856 = vsub.s32 %v4852, %v4855
  %vm4857 = vcmp.lt.s32.totalorder %v4856, 0
  %v4858 = vsub.s32 0, %v4856
  %v4859 = vsel %vm4857, %v4858, %v4856
  %v4860 = vclz %v4859
  %v4861 = vsub.s32 %v4860, 2
  %vm4862 = vcmp.gt.s32.totalorder 0, %v4861
  %v4863 = vsel %vm4862, 0, %v4861
  %v4864 = vsub.s32 32, %v4863
  %v4865 = vshll.u32 %v4856, %v4863
  %v4866 = vshrl.u32 %v4848, %v4864
  %v4867 = vor.u32 %v4865, %v4866
  %v4868 = vsub.s32 4294967266, %v4863
  %v4869 = vadd.s32 %v4868, 127
  %v4870 = vshll.u32 %v4869, 23
  %v4871 = vor.u32 4788187, %v4870
  %v4872 = vand.u32 2147483647, %v4871
  %v4874 = vcvt.s32.f32 %v4867
  %v4875 = vmul.f32 %v4874, %v4872
  %v4876 = vxor.u32 %v4875, 2147483648
  %v4877 = vsel %vm4756, %v4876, %v4875
  %v4878 = vsub.s32 4, %v4854
  %v4879 = vsel %vm4756, %v4878, %v4854
  %v4880 = vsel %vm4755, %v872, %v4877
  %v4881 = vsel %vm4755, 0, %v4879
  %v4882 = vmul.f32 %v4880, %v4880
  %v4883 = vmul.f32 %v4882, -0.001358992
  %v4884 = vadd.f32 %v4883, 0.041655596
  %v4885 = vmul.f32 %v4882, %v4884
  %v4886 = vadd.f32 %v4885, -0.4999988
  %v4887 = vmul.f32 %v4882, %v4886
  %v4888 = vadd.f32 1.0, %v4887
  %v4889 = vmul.f32 %v4880, %v4880
  %v4890 = vmul.f32 %v4889, -0.00019511016
  %v4891 = vadd.f32 %v4890, 0.008332121
  %v4892 = vmul.f32 %v4889, %v4891
  %v4893 = vadd.f32 %v4892, -0.16666654
  %v4894 = vmul.f32 %v4889, %v4893
  %v4895 = vadd.f32 %v4894, 1.0
  %v4896 = vmul.f32 %v4895, %v4880
  %vm4897 = vweird.f32 %v872
  %v4898 = vadd.s32 %v4881, 3
  %v4899 = vand.u32 %v4898, 3
  %vm4900 = vcmp.lt.s32.totalorder %v4899, 2
  %vm4901 = vcmp.eq.s32.totalorder %v4899, 0
  %v4902 = vxor.u32 %v4896, 2147483648
  %v4903 = vsel %vm4901, %v4888, %v4902
  %vm4904 = vcmp.eq.s32.totalorder %v4899, 2
  %v4905 = vxor.u32 %v4888, 2147483648
  %v4906 = vsel %vm4904, %v4905, %v4896
  %v4907 = vsel %vm4900, %v4903, %v4906
  %v4908 = vsel %vm4897, nan, %v4907
  %v4909 = vand.u32 2147483647, %v873
  %vm4910 = vcmp.le.f32.partialorder %v4909, 0.7853982
  %vm4911 = vcmp.lt.s32.totalorder %v873, 0
  %v4912 = vand.u32 %v873, 2139095040
  %v4913 = vshrl.u32 %v4912, 23
  %v4914 = vsub.s32 %v4913, 127
  %v4915 = vand.u32 2147483647, %v873
  %v4916 = vand.u32 %v4915, 8388607
  %v4917 = vor.u32 %v4916, 8388608
  %v4918 = vsub.s32 0, %v4917
  %v4919 = vadd.s32 %v4914, 1
  %vm4920 = vcmp.gt.s32.totalorder %v4919, 0
  %v4921 = vsel %vm4920, %v4919, 0
  %v4922 = vshrl.u32 %v4921, 5
  %v4923 = vand.u32 %v4921, 31
  %v4924 = vsub.s32 32, %v4923
  %v4925 = vshrl.u32 683565275, %v4924
  %v4926 = vshll.u32 683565275, %v4923
  %v4927 = vshrl.u32 2475754826, %v4924
  %v4928 = vor.u32 %v4926, %v4927
  %v4929 = vshll.u32 2475754826, %v4923
  %v4930 = vshrl.u32 2131351028, %v4924
  %v4931 = vor.u32 %v4929, %v4930
  %v4932 = vshll.u32 2131351028, %v4923
  %v4933 = vshrl.u32 2102212464, %v4924
  %v4934 = vor.u32 %v4932, %v4933
  %v4935 = vshll.u32 2102212464, %v4923
  %v4936 = vshrl.u32 920167782, %v4924
  %v4937 = vor.u32 %v4935, %v4936
  %v4938 = vshll.u32 920167782, %v4923
  %v4939 = vshrl.u32 1326507024, %v4924
  %v4940 = vor.u32 %v4938, %v4939
  %vm4941 = vcmp.lt.s32.totalorder %v4922, 1
  %vm4942 = vcmp.lt.s32.totalorder %v4922, 2
  %vm4943 = vcmp.lt.s32.totalorder %v4922, 3
  %vm4944 = vcmp.lt.s32.totalorder %v4922, 4
  %v4945 = vsel %vm4941, %v4925, %v4928
  %v4946 = vsel %vm4944, %v4934, 2102212464
  %v4947 = vsel %vm4943, %v4931, %v4946
  %v4948 = vsel %vm4942, %v4945, %v4947
  %v4949 = vsel %vm4941, %v4928, %v4931
  %v4950 = vsel %vm4944, %v4937, 920167782
  %v4951 = vsel %vm4943, %v4934, %v4950
  %v4952 = vsel %vm4942, %v4949, %v4951
  %v4953 = vsel %vm4941, %v4931, %v4934
  %v4954 = vsel %vm4944, %v4940, 1326507024
  %v4955 = vsel %vm4943, %v4937, %v4954
  %v4956 = vsel %vm4942, %v4953, %v4955
  %v4957 = vshll.u32 %v4917, 8
  %v4958 = vand.u32 %v4957, 65535
  %v4959 = vshrl.u32 %v4957, 16
  %v4960 = vand.u32 %v4956, 65535
  %v4961 = vshrl.u32 %v4956, 16
  %v4962 = vmul.u32 %v4958, %v4960
  %v4963 = vmul.u32 %v4958, %v4961
  %v4964 = vmul.u32 %v4959, %v4960
  %v4965 = vmul.u32 %v4959, %v4961
  %v4966 = vshll.u32 %v4963, 16
  %v4967 = vshrl.u32 %v4963, 16
  %v4968 = vshll.u32 %v4964, 16
  %v4969 = vshrl.u32 %v4964, 16
  %vm4970 = vc.u32 %v4962, %v4966
  %v4971 = vsel %vm4970, 1, 0
  %v4972 = vadd.s32 %v4962, %v4966
  %v4973 = vadd.s32 %v4965, %v4971
  %vm4974 = vc.u32 %v4972, %v4968
  %v4975 = vsel %vm4974, 1, 0
  %v4976 = vadd.s32 %v4972, %v4968
  %v4977 = vadd.s32 %v4973, %v4975
  %v4978 = vadd.s32 %v4977, %v4967
  %v4979 = vadd.s32 %v4978, %v4969
  %v4980 = vand.u32 %v4957, 65535
  %v4981 = vshrl.u32 %v4957, 16
  %v4982 = vand.u32 %v4952, 65535
  %v4983 = vshrl.u32 %v4952, 16
  %v4984 = vmul.u32 %v4980, %v4982
  %v4985 = vmul.u32 %v4980, %v4983
  %v4986 = vmul.u32 %v4981, %v4982
  %v4987 = vmul.u32 %v4981, %v4983
  %v4988 = vshll.u32 %v4985, 16
  %v4989 = vshrl.u32 %v4985, 16
  %v4990 = vshll.u32 %v4986, 16
  %v4991 = vshrl.u32 %v4986, 16
  %vm4992 = vc.u32 %v4984, %v4988
  %v4993 = vsel %vm4992, 1, 0
  %v4994 = vadd.s32 %v4984, %v4988
  %v4995 = vadd.s32 %v4987, %v4993
  %vm4996 = vc.u32 %v4994, %v4990
  %v4997 = vsel %vm4996, 1, 0
  %v4998 = vadd.s32 %v4994, %v4990
  %v4999 = vadd.s32 %v4995, %v4997
  %v5000 = vadd.s32 %v4999, %v4989
  %v5001 = vadd.s32 %v5000, %v4991
  %v5002 = vmul.u32 %v4957, %v4948
  %v5003 = vadd.s32 %v4979, %v4998
  %vm5004 = vc.u32 %v4979, %v4998
  %v5005 = vadd.s32 %v5001, 1
  %v5006 = vsel %vm5004, %v5005, %v5001
  %v5007 = vadd.s32 %v5002, %v5006
  %v5008 = vadd.s32 %v5007, 536870912
  %v5009 = vshrl.u32 %v5008, 30
  %v5010 = vshll.u32 %v5009, 30
  %v5011 = vsub.s32 %v5007, %v5010
  %vm5012 = vcmp.lt.s32.totalorder %v5011, 0
  %v5013 = vsub.s32 0, %v5011
  %v5014 = vsel %vm5012, %v5013, %v5011
  %v5015 = vclz %v5014
  %v5016 = vsub.s32 %v5015, 2
  %vm5017 = vcmp.gt.s32.totalorder 0, %v5016
  %v5018 = vsel %vm5017, 0, %v5016
  %v5019 = vsub.s32 32, %v5018
  %v5020 = vshll.u32 %v5011, %v5018
  %v5021 = vshrl.u32 %v5003, %v5019
  %v5022 = vor.u32 %v5020, %v5021
  %v5023 = vsub.s32 4294967266, %v5018
  %v5024 = vadd.s32 %v5023, 127
  %v5025 = vshll.u32 %v5024, 23
  %v5026 = vor.u32 4788187, %v5025
  %v5027 = vand.u32 2147483647, %v5026
  %v5029 = vcvt.s32.f32 %v5022
  %v5030 = vmul.f32 %v5029, %v5027
  %v5031 = vxor.u32 %v5030, 2147483648
  %v5032 = vsel %vm4911, %v5031, %v5030
  %v5033 = vsub.s32 4, %v5009
  %v5034 = vsel %vm4911, %v5033, %v5009
  %v5035 = vsel %vm4910, %v873, %v5032
  %v5036 = vsel %vm4910, 0, %v5034
  %v5037 = vmul.f32 %v5035, %v5035
  %v5038 = vmul.f32 %v5037, -0.001358992
  %v5039 = vadd.f32 %v5038, 0.041655596
  %v5040 = vmul.f32 %v5037, %v5039
  %v5041 = vadd.f32 %v5040, -0.4999988
  %v5042 = vmul.f32 %v5037, %v5041
  %v5043 = vadd.f32 1.0, %v5042
  %v5044 = vmul.f32 %v5035, %v5035
  %v5045 = vmul.f32 %v5044, -0.00019511016
  %v5046 = vadd.f32 %v5045, 0.008332121
  %v5047 = vmul.f32 %v5044, %v5046
  %v5048 = vadd.f32 %v5047, -0.16666654
  %v5049 = vmul.f32 %v5044, %v5048
  %v5050 = vadd.f32 %v5049, 1.0
  %v5051 = vmul.f32 %v5050, %v5035
  %vm5052 = vweird.f32 %v873
  %v5053 = vadd.s32 %v5036, 3
  %v5054 = vand.u32 %v5053, 3
  %vm5055 = vcmp.lt.s32.totalorder %v5054, 2
  %vm5056 = vcmp.eq.s32.totalorder %v5054, 0
  %v5057 = vxor.u32 %v5051, 2147483648
  %v5058 = vsel %vm5056, %v5043, %v5057
  %vm5059 = vcmp.eq.s32.totalorder %v5054, 2
  %v5060 = vxor.u32 %v5043, 2147483648
  %v5061 = vsel %vm5059, %v5060, %v5051
  %v5062 = vsel %vm5055, %v5058, %v5061
  %v5063 = vsel %vm5052, nan, %v5062
  %v5064 = vand.u32 2147483647, %v874
  %vm5065 = vcmp.le.f32.partialorder %v5064, 0.7853982
  %vm5066 = vcmp.lt.s32.totalorder %v874, 0
  %v5067 = vand.u32 %v874, 2139095040
  %v5068 = vshrl.u32 %v5067, 23
  %v5069 = vsub.s32 %v5068, 127
  %v5070 = vand.u32 2147483647, %v874
  %v5071 = vand.u32 %v5070, 8388607
  %v5072 = vor.u32 %v5071, 8388608
  %v5073 = vsub.s32 0, %v5072
  %v5074 = vadd.s32 %v5069, 1
  %vm5075 = vcmp.gt.s32.totalorder %v5074, 0
  %v5076 = vsel %vm5075, %v5074, 0
  %v5077 = vshrl.u32 %v5076, 5
  %v5078 = vand.u32 %v5076, 31
  %v5079 = vsub.s32 32, %v5078
  %v5080 = vshrl.u32 683565275, %v5079
  %v5081 = vshll.u32 683565275, %v5078
  %v5082 = vshrl.u32 2475754826, %v5079
  %v5083 = vor.u32 %v5081, %v5082
  %v5084 = vshll.u32 2475754826, %v5078
  %v5085 = vshrl.u32 2131351028, %v5079
  %v5086 = vor.u32 %v5084, %v5085
  %v5087 = vshll.u32 2131351028, %v5078
  %v5088 = vshrl.u32 2102212464, %v5079
  %v5089 = vor.u32 %v5087, %v5088
  %v5090 = vshll.u32 2102212464, %v5078
  %v5091 = vshrl.u32 920167782, %v5079
  %v5092 = vor.u32 %v5090, %v5091
  %v5093 = vshll.u32 920167782, %v5078
  %v5094 = vshrl.u32 1326507024, %v5079
  %v5095 = vor.u32 %v5093, %v5094
  %vm5096 = vcmp.lt.s32.totalorder %v5077, 1
  %vm5097 = vcmp.lt.s32.totalorder %v5077, 2
  %vm5098 = vcmp.lt.s32.totalorder %v5077, 3
  %vm5099 = vcmp.lt.s32.totalorder %v5077, 4
  %v5100 = vsel %vm5096, %v5080, %v5083
  %v5101 = vsel %vm5099, %v5089, 2102212464
  %v5102 = vsel %vm5098, %v5086, %v5101
  %v5103 = vsel %vm5097, %v5100, %v5102
  %v5104 = vsel %vm5096, %v5083, %v5086
  %v5105 = vsel %vm5099, %v5092, 920167782
  %v5106 = vsel %vm5098, %v5089, %v5105
  %v5107 = vsel %vm5097, %v5104, %v5106
  %v5108 = vsel %vm5096, %v5086, %v5089
  %v5109 = vsel %vm5099, %v5095, 1326507024
  %v5110 = vsel %vm5098, %v5092, %v5109
  %v5111 = vsel %vm5097, %v5108, %v5110
  %v5112 = vshll.u32 %v5072, 8
  %v5113 = vand.u32 %v5112, 65535
  %v5114 = vshrl.u32 %v5112, 16
  %v5115 = vand.u32 %v5111, 65535
  %v5116 = vshrl.u32 %v5111, 16
  %v5117 = vmul.u32 %v5113, %v5115
  %v5118 = vmul.u32 %v5113, %v5116
  %v5119 = vmul.u32 %v5114, %v5115
  %v5120 = vmul.u32 %v5114, %v5116
  %v5121 = vshll.u32 %v5118, 16
  %v5122 = vshrl.u32 %v5118, 16
  %v5123 = vshll.u32 %v5119, 16
  %v5124 = vshrl.u32 %v5119, 16
  %vm5125 = vc.u32 %v5117, %v5121
  %v5126 = vsel %vm5125, 1, 0
  %v5127 = vadd.s32 %v5117, %v5121
  %v5128 = vadd.s32 %v5120, %v5126
  %vm5129 = vc.u32 %v5127, %v5123
  %v5130 = vsel %vm5129, 1, 0
  %v5131 = vadd.s32 %v5127, %v5123
  %v5132 = vadd.s32 %v5128, %v5130
  %v5133 = vadd.s32 %v5132, %v5122
  %v5134 = vadd.s32 %v5133, %v5124
  %v5135 = vand.u32 %v5112, 65535
  %v5136 = vshrl.u32 %v5112, 16
  %v5137 = vand.u32 %v5107, 65535
  %v5138 = vshrl.u32 %v5107, 16
  %v5139 = vmul.u32 %v5135, %v5137
  %v5140 = vmul.u32 %v5135, %v5138
  %v5141 = vmul.u32 %v5136, %v5137
  %v5142 = vmul.u32 %v5136, %v5138
  %v5143 = vshll.u32 %v5140, 16
  %v5144 = vshrl.u32 %v5140, 16
  %v5145 = vshll.u32 %v5141, 16
  %v5146 = vshrl.u32 %v5141, 16
  %vm5147 = vc.u32 %v5139, %v5143
  %v5148 = vsel %vm5147, 1, 0
  %v5149 = vadd.s32 %v5139, %v5143
  %v5150 = vadd.s32 %v5142, %v5148
  %vm5151 = vc.u32 %v5149, %v5145
  %v5152 = vsel %vm5151, 1, 0
  %v5153 = vadd.s32 %v5149, %v5145
  %v5154 = vadd.s32 %v5150, %v5152
  %v5155 = vadd.s32 %v5154, %v5144
  %v5156 = vadd.s32 %v5155, %v5146
  %v5157 = vmul.u32 %v5112, %v5103
  %v5158 = vadd.s32 %v5134, %v5153
  %vm5159 = vc.u32 %v5134, %v5153
  %v5160 = vadd.s32 %v5156, 1
  %v5161 = vsel %vm5159, %v5160, %v5156
  %v5162 = vadd.s32 %v5157, %v5161
  %v5163 = vadd.s32 %v5162, 536870912
  %v5164 = vshrl.u32 %v5163, 30
  %v5165 = vshll.u32 %v5164, 30
  %v5166 = vsub.s32 %v5162, %v5165
  %vm5167 = vcmp.lt.s32.totalorder %v5166, 0
  %v5168 = vsub.s32 0, %v5166
  %v5169 = vsel %vm5167, %v5168, %v5166
  %v5170 = vclz %v5169
  %v5171 = vsub.s32 %v5170, 2
  %vm5172 = vcmp.gt.s32.totalorder 0, %v5171
  %v5173 = vsel %vm5172, 0, %v5171
  %v5174 = vsub.s32 32, %v5173
  %v5175 = vshll.u32 %v5166, %v5173
  %v5176 = vshrl.u32 %v5158, %v5174
  %v5177 = vor.u32 %v5175, %v5176
  %v5178 = vsub.s32 4294967266, %v5173
  %v5179 = vadd.s32 %v5178, 127
  %v5180 = vshll.u32 %v5179, 23
  %v5181 = vor.u32 4788187, %v5180
  %v5182 = vand.u32 2147483647, %v5181
  %v5184 = vcvt.s32.f32 %v5177
  %v5185 = vmul.f32 %v5184, %v5182
  %v5186 = vxor.u32 %v5185, 2147483648
  %v5187 = vsel %vm5066, %v5186, %v5185
  %v5188 = vsub.s32 4, %v5164
  %v5189 = vsel %vm5066, %v5188, %v5164
  %v5190 = vsel %vm5065, %v874, %v5187
  %v5191 = vsel %vm5065, 0, %v5189
  %v5192 = vmul.f32 %v5190, %v5190
  %v5193 = vmul.f32 %v5192, -0.001358992
  %v5194 = vadd.f32 %v5193, 0.041655596
  %v5195 = vmul.f32 %v5192, %v5194
  %v5196 = vadd.f32 %v5195, -0.4999988
  %v5197 = vmul.f32 %v5192, %v5196
  %v5198 = vadd.f32 1.0, %v5197
  %v5199 = vmul.f32 %v5190, %v5190
  %v5200 = vmul.f32 %v5199, -0.00019511016
  %v5201 = vadd.f32 %v5200, 0.008332121
  %v5202 = vmul.f32 %v5199, %v5201
  %v5203 = vadd.f32 %v5202, -0.16666654
  %v5204 = vmul.f32 %v5199, %v5203
  %v5205 = vadd.f32 %v5204, 1.0
  %v5206 = vmul.f32 %v5205, %v5190
  %vm5207 = vweird.f32 %v874
  %v5208 = vadd.s32 %v5191, 3
  %v5209 = vand.u32 %v5208, 3
  %vm5210 = vcmp.lt.s32.totalorder %v5209, 2
  %vm5211 = vcmp.eq.s32.totalorder %v5209, 0
  %v5212 = vxor.u32 %v5206, 2147483648
  %v5213 = vsel %vm5211, %v5198, %v5212
  %vm5214 = vcmp.eq.s32.totalorder %v5209, 2
  %v5215 = vxor.u32 %v5198, 2147483648
  %v5216 = vsel %vm5214, %v5215, %v5206
  %v5217 = vsel %vm5210, %v5213, %v5216
  %v5218 = vsel %vm5207, nan, %v5217
  %v5219 = vand.u32 2147483647, %v875
  %vm5220 = vcmp.le.f32.partialorder %v5219, 0.7853982
  %vm5221 = vcmp.lt.s32.totalorder %v875, 0
  %v5222 = vand.u32 %v875, 2139095040
  %v5223 = vshrl.u32 %v5222, 23
  %v5224 = vsub.s32 %v5223, 127
  %v5225 = vand.u32 2147483647, %v875
  %v5226 = vand.u32 %v5225, 8388607
  %v5227 = vor.u32 %v5226, 8388608
  %v5228 = vsub.s32 0, %v5227
  %v5229 = vadd.s32 %v5224, 1
  %vm5230 = vcmp.gt.s32.totalorder %v5229, 0
  %v5231 = vsel %vm5230, %v5229, 0
  %v5232 = vshrl.u32 %v5231, 5
  %v5233 = vand.u32 %v5231, 31
  %v5234 = vsub.s32 32, %v5233
  %v5235 = vshrl.u32 683565275, %v5234
  %v5236 = vshll.u32 683565275, %v5233
  %v5237 = vshrl.u32 2475754826, %v5234
  %v5238 = vor.u32 %v5236, %v5237
  %v5239 = vshll.u32 2475754826, %v5233
  %v5240 = vshrl.u32 2131351028, %v5234
  %v5241 = vor.u32 %v5239, %v5240
  %v5242 = vshll.u32 2131351028, %v5233
  %v5243 = vshrl.u32 2102212464, %v5234
  %v5244 = vor.u32 %v5242, %v5243
  %v5245 = vshll.u32 2102212464, %v5233
  %v5246 = vshrl.u32 920167782, %v5234
  %v5247 = vor.u32 %v5245, %v5246
  %v5248 = vshll.u32 920167782, %v5233
  %v5249 = vshrl.u32 1326507024, %v5234
  %v5250 = vor.u32 %v5248, %v5249
  %vm5251 = vcmp.lt.s32.totalorder %v5232, 1
  %vm5252 = vcmp.lt.s32.totalorder %v5232, 2
  %vm5253 = vcmp.lt.s32.totalorder %v5232, 3
  %vm5254 = vcmp.lt.s32.totalorder %v5232, 4
  %v5255 = vsel %vm5251, %v5235, %v5238
  %v5256 = vsel %vm5254, %v5244, 2102212464
  %v5257 = vsel %vm5253, %v5241, %v5256
  %v5258 = vsel %vm5252, %v5255, %v5257
  %v5259 = vsel %vm5251, %v5238, %v5241
  %v5260 = vsel %vm5254, %v5247, 920167782
  %v5261 = vsel %vm5253, %v5244, %v5260
  %v5262 = vsel %vm5252, %v5259, %v5261
  %v5263 = vsel %vm5251, %v5241, %v5244
  %v5264 = vsel %vm5254, %v5250, 1326507024
  %v5265 = vsel %vm5253, %v5247, %v5264
  %v5266 = vsel %vm5252, %v5263, %v5265
  %v5267 = vshll.u32 %v5227, 8
  %v5268 = vand.u32 %v5267, 65535
  %v5269 = vshrl.u32 %v5267, 16
  %v5270 = vand.u32 %v5266, 65535
  %v5271 = vshrl.u32 %v5266, 16
  %v5272 = vmul.u32 %v5268, %v5270
  %v5273 = vmul.u32 %v5268, %v5271
  %v5274 = vmul.u32 %v5269, %v5270
  %v5275 = vmul.u32 %v5269, %v5271
  %v5276 = vshll.u32 %v5273, 16
  %v5277 = vshrl.u32 %v5273, 16
  %v5278 = vshll.u32 %v5274, 16
  %v5279 = vshrl.u32 %v5274, 16
  %vm5280 = vc.u32 %v5272, %v5276
  %v5281 = vsel %vm5280, 1, 0
  %v5282 = vadd.s32 %v5272, %v5276
  %v5283 = vadd.s32 %v5275, %v5281
  %vm5284 = vc.u32 %v5282, %v5278
  %v5285 = vsel %vm5284, 1, 0
  %v5286 = vadd.s32 %v5282, %v5278
  %v5287 = vadd.s32 %v5283, %v5285
  %v5288 = vadd.s32 %v5287, %v5277
  %v5289 = vadd.s32 %v5288, %v5279
  %v5290 = vand.u32 %v5267, 65535
  %v5291 = vshrl.u32 %v5267, 16
  %v5292 = vand.u32 %v5262, 65535
  %v5293 = vshrl.u32 %v5262, 16
  %v5294 = vmul.u32 %v5290, %v5292
  %v5295 = vmul.u32 %v5290, %v5293
  %v5296 = vmul.u32 %v5291, %v5292
  %v5297 = vmul.u32 %v5291, %v5293
  %v5298 = vshll.u32 %v5295, 16
  %v5299 = vshrl.u32 %v5295, 16
  %v5300 = vshll.u32 %v5296, 16
  %v5301 = vshrl.u32 %v5296, 16
  %vm5302 = vc.u32 %v5294, %v5298
  %v5303 = vsel %vm5302, 1, 0
  %v5304 = vadd.s32 %v5294, %v5298
  %v5305 = vadd.s32 %v5297, %v5303
  %vm5306 = vc.u32 %v5304, %v5300
  %v5307 = vsel %vm5306, 1, 0
  %v5308 = vadd.s32 %v5304, %v5300
  %v5309 = vadd.s32 %v5305, %v5307
  %v5310 = vadd.s32 %v5309, %v5299
  %v5311 = vadd.s32 %v5310, %v5301
  %v5312 = vmul.u32 %v5267, %v5258
  %v5313 = vadd.s32 %v5289, %v5308
  %vm5314 = vc.u32 %v5289, %v5308
  %v5315 = vadd.s32 %v5311, 1
  %v5316 = vsel %vm5314, %v5315, %v5311
  %v5317 = vadd.s32 %v5312, %v5316
  %v5318 = vadd.s32 %v5317, 536870912
  %v5319 = vshrl.u32 %v5318, 30
  %v5320 = vshll.u32 %v5319, 30
  %v5321 = vsub.s32 %v5317, %v5320
  %vm5322 = vcmp.lt.s32.totalorder %v5321, 0
  %v5323 = vsub.s32 0, %v5321
  %v5324 = vsel %vm5322, %v5323, %v5321
  %v5325 = vclz %v5324
  %v5326 = vsub.s32 %v5325, 2
  %vm5327 = vcmp.gt.s32.totalorder 0, %v5326
  %v5328 = vsel %vm5327, 0, %v5326
  %v5329 = vsub.s32 32, %v5328
  %v5330 = vshll.u32 %v5321, %v5328
  %v5331 = vshrl.u32 %v5313, %v5329
  %v5332 = vor.u32 %v5330, %v5331
  %v5333 = vsub.s32 4294967266, %v5328
  %v5334 = vadd.s32 %v5333, 127
  %v5335 = vshll.u32 %v5334, 23
  %v5336 = vor.u32 4788187, %v5335
  %v5337 = vand.u32 2147483647, %v5336
  %v5339 = vcvt.s32.f32 %v5332
  %v5340 = vmul.f32 %v5339, %v5337
  %v5341 = vxor.u32 %v5340, 2147483648
  %v5342 = vsel %vm5221, %v5341, %v5340
  %v5343 = vsub.s32 4, %v5319
  %v5344 = vsel %vm5221, %v5343, %v5319
  %v5345 = vsel %vm5220, %v875, %v5342
  %v5346 = vsel %vm5220, 0, %v5344
  %v5347 = vmul.f32 %v5345, %v5345
  %v5348 = vmul.f32 %v5347, -0.001358992
  %v5349 = vadd.f32 %v5348, 0.041655596
  %v5350 = vmul.f32 %v5347, %v5349
  %v5351 = vadd.f32 %v5350, -0.4999988
  %v5352 = vmul.f32 %v5347, %v5351
  %v5353 = vadd.f32 1.0, %v5352
  %v5354 = vmul.f32 %v5345, %v5345
  %v5355 = vmul.f32 %v5354, -0.00019511016
  %v5356 = vadd.f32 %v5355, 0.008332121
  %v5357 = vmul.f32 %v5354, %v5356
  %v5358 = vadd.f32 %v5357, -0.16666654
  %v5359 = vmul.f32 %v5354, %v5358
  %v5360 = vadd.f32 %v5359, 1.0
  %v5361 = vmul.f32 %v5360, %v5345
  %vm5362 = vweird.f32 %v875
  %v5363 = vadd.s32 %v5346, 3
  %v5364 = vand.u32 %v5363, 3
  %vm5365 = vcmp.lt.s32.totalorder %v5364, 2
  %vm5366 = vcmp.eq.s32.totalorder %v5364, 0
  %v5367 = vxor.u32 %v5361, 2147483648
  %v5368 = vsel %vm5366, %v5353, %v5367
  %vm5369 = vcmp.eq.s32.totalorder %v5364, 2
  %v5370 = vxor.u32 %v5353, 2147483648
  %v5371 = vsel %vm5369, %v5370, %v5361
  %v5372 = vsel %vm5365, %v5368, %v5371
  %v5373 = vsel %vm5362, nan, %v5372
  %v5374 = vand.u32 2147483647, %v876
  %vm5375 = vcmp.le.f32.partialorder %v5374, 0.7853982
  %vm5376 = vcmp.lt.s32.totalorder %v876, 0
  %v5377 = vand.u32 %v876, 2139095040
  %v5378 = vshrl.u32 %v5377, 23
  %v5379 = vsub.s32 %v5378, 127
  %v5380 = vand.u32 2147483647, %v876
  %v5381 = vand.u32 %v5380, 8388607
  %v5382 = vor.u32 %v5381, 8388608
  %v5383 = vsub.s32 0, %v5382
  %v5384 = vadd.s32 %v5379, 1
  %vm5385 = vcmp.gt.s32.totalorder %v5384, 0
  %v5386 = vsel %vm5385, %v5384, 0
  %v5387 = vshrl.u32 %v5386, 5
  %v5388 = vand.u32 %v5386, 31
  %v5389 = vsub.s32 32, %v5388
  %v5390 = vshrl.u32 683565275, %v5389
  %v5391 = vshll.u32 683565275, %v5388
  %v5392 = vshrl.u32 2475754826, %v5389
  %v5393 = vor.u32 %v5391, %v5392
  %v5394 = vshll.u32 2475754826, %v5388
  %v5395 = vshrl.u32 2131351028, %v5389
  %v5396 = vor.u32 %v5394, %v5395
  %v5397 = vshll.u32 2131351028, %v5388
  %v5398 = vshrl.u32 2102212464, %v5389
  %v5399 = vor.u32 %v5397, %v5398
  %v5400 = vshll.u32 2102212464, %v5388
  %v5401 = vshrl.u32 920167782, %v5389
  %v5402 = vor.u32 %v5400, %v5401
  %v5403 = vshll.u32 920167782, %v5388
  %v5404 = vshrl.u32 1326507024, %v5389
  %v5405 = vor.u32 %v5403, %v5404
  %vm5406 = vcmp.lt.s32.totalorder %v5387, 1
  %vm5407 = vcmp.lt.s32.totalorder %v5387, 2
  %vm5408 = vcmp.lt.s32.totalorder %v5387, 3
  %vm5409 = vcmp.lt.s32.totalorder %v5387, 4
  %v5410 = vsel %vm5406, %v5390, %v5393
  %v5411 = vsel %vm5409, %v5399, 2102212464
  %v5412 = vsel %vm5408, %v5396, %v5411
  %v5413 = vsel %vm5407, %v5410, %v5412
  %v5414 = vsel %vm5406, %v5393, %v5396
  %v5415 = vsel %vm5409, %v5402, 920167782
  %v5416 = vsel %vm5408, %v5399, %v5415
  %v5417 = vsel %vm5407, %v5414, %v5416
  %v5418 = vsel %vm5406, %v5396, %v5399
  %v5419 = vsel %vm5409, %v5405, 1326507024
  %v5420 = vsel %vm5408, %v5402, %v5419
  %v5421 = vsel %vm5407, %v5418, %v5420
  %v5422 = vshll.u32 %v5382, 8
  %v5423 = vand.u32 %v5422, 65535
  %v5424 = vshrl.u32 %v5422, 16
  %v5425 = vand.u32 %v5421, 65535
  %v5426 = vshrl.u32 %v5421, 16
  %v5427 = vmul.u32 %v5423, %v5425
  %v5428 = vmul.u32 %v5423, %v5426
  %v5429 = vmul.u32 %v5424, %v5425
  %v5430 = vmul.u32 %v5424, %v5426
  %v5431 = vshll.u32 %v5428, 16
  %v5432 = vshrl.u32 %v5428, 16
  %v5433 = vshll.u32 %v5429, 16
  %v5434 = vshrl.u32 %v5429, 16
  %vm5435 = vc.u32 %v5427, %v5431
  %v5436 = vsel %vm5435, 1, 0
  %v5437 = vadd.s32 %v5427, %v5431
  %v5438 = vadd.s32 %v5430, %v5436
  %vm5439 = vc.u32 %v5437, %v5433
  %v5440 = vsel %vm5439, 1, 0
  %v5441 = vadd.s32 %v5437, %v5433
  %v5442 = vadd.s32 %v5438, %v5440
  %v5443 = vadd.s32 %v5442, %v5432
  %v5444 = vadd.s32 %v5443, %v5434
  %v5445 = vand.u32 %v5422, 65535
  %v5446 = vshrl.u32 %v5422, 16
  %v5447 = vand.u32 %v5417, 65535
  %v5448 = vshrl.u32 %v5417, 16
  %v5449 = vmul.u32 %v5445, %v5447
  %v5450 = vmul.u32 %v5445, %v5448
  %v5451 = vmul.u32 %v5446, %v5447
  %v5452 = vmul.u32 %v5446, %v5448
  %v5453 = vshll.u32 %v5450, 16
  %v5454 = vshrl.u32 %v5450, 16
  %v5455 = vshll.u32 %v5451, 16
  %v5456 = vshrl.u32 %v5451, 16
  %vm5457 = vc.u32 %v5449, %v5453
  %v5458 = vsel %vm5457, 1, 0
  %v5459 = vadd.s32 %v5449, %v5453
  %v5460 = vadd.s32 %v5452, %v5458
  %vm5461 = vc.u32 %v5459, %v5455
  %v5462 = vsel %vm5461, 1, 0
  %v5463 = vadd.s32 %v5459, %v5455
  %v5464 = vadd.s32 %v5460, %v5462
  %v5465 = vadd.s32 %v5464, %v5454
  %v5466 = vadd.s32 %v5465, %v5456
  %v5467 = vmul.u32 %v5422, %v5413
  %v5468 = vadd.s32 %v5444, %v5463
  %vm5469 = vc.u32 %v5444, %v5463
  %v5470 = vadd.s32 %v5466, 1
  %v5471 = vsel %vm5469, %v5470, %v5466
  %v5472 = vadd.s32 %v5467, %v5471
  %v5473 = vadd.s32 %v5472, 536870912
  %v5474 = vshrl.u32 %v5473, 30
  %v5475 = vshll.u32 %v5474, 30
  %v5476 = vsub.s32 %v5472, %v5475
  %vm5477 = vcmp.lt.s32.totalorder %v5476, 0
  %v5478 = vsub.s32 0, %v5476
  %v5479 = vsel %vm5477, %v5478, %v5476
  %v5480 = vclz %v5479
  %v5481 = vsub.s32 %v5480, 2
  %vm5482 = vcmp.gt.s32.totalorder 0, %v5481
  %v5483 = vsel %vm5482, 0, %v5481
  %v5484 = vsub.s32 32, %v5483
  %v5485 = vshll.u32 %v5476, %v5483
  %v5486 = vshrl.u32 %v5468, %v5484
  %v5487 = vor.u32 %v5485, %v5486
  %v5488 = vsub.s32 4294967266, %v5483
  %v5489 = vadd.s32 %v5488, 127
  %v5490 = vshll.u32 %v5489, 23
  %v5491 = vor.u32 4788187, %v5490
  %v5492 = vand.u32 2147483647, %v5491
  %v5494 = vcvt.s32.f32 %v5487
  %v5495 = vmul.f32 %v5494, %v5492
  %v5496 = vxor.u32 %v5495, 2147483648
  %v5497 = vsel %vm5376, %v5496, %v5495
  %v5498 = vsub.s32 4, %v5474
  %v5499 = vsel %vm5376, %v5498, %v5474
  %v5500 = vsel %vm5375, %v876, %v5497
  %v5501 = vsel %vm5375, 0, %v5499
  %v5502 = vmul.f32 %v5500, %v5500
  %v5503 = vmul.f32 %v5502, -0.001358992
  %v5504 = vadd.f32 %v5503, 0.041655596
  %v5505 = vmul.f32 %v5502, %v5504
  %v5506 = vadd.f32 %v5505, -0.4999988
  %v5507 = vmul.f32 %v5502, %v5506
  %v5508 = vadd.f32 1.0, %v5507
  %v5509 = vmul.f32 %v5500, %v5500
  %v5510 = vmul.f32 %v5509, -0.00019511016
  %v5511 = vadd.f32 %v5510, 0.008332121
  %v5512 = vmul.f32 %v5509, %v5511
  %v5513 = vadd.f32 %v5512, -0.16666654
  %v5514 = vmul.f32 %v5509, %v5513
  %v5515 = vadd.f32 %v5514, 1.0
  %v5516 = vmul.f32 %v5515, %v5500
  %vm5517 = vweird.f32 %v876
  %v5518 = vadd.s32 %v5501, 3
  %v5519 = vand.u32 %v5518, 3
  %vm5520 = vcmp.lt.s32.totalorder %v5519, 2
  %vm5521 = vcmp.eq.s32.totalorder %v5519, 0
  %v5522 = vxor.u32 %v5516, 2147483648
  %v5523 = vsel %vm5521, %v5508, %v5522
  %vm5524 = vcmp.eq.s32.totalorder %v5519, 2
  %v5525 = vxor.u32 %v5508, 2147483648
  %v5526 = vsel %vm5524, %v5525, %v5516
  %v5527 = vsel %vm5520, %v5523, %v5526
  %v5528 = vsel %vm5517, nan, %v5527
  %v5529 = vand.u32 2147483647, %v877
  %vm5530 = vcmp.le.f32.partialorder %v5529, 0.7853982
  %vm5531 = vcmp.lt.s32.totalorder %v877, 0
  %v5532 = vand.u32 %v877, 2139095040
  %v5533 = vshrl.u32 %v5532, 23
  %v5534 = vsub.s32 %v5533, 127
  %v5535 = vand.u32 2147483647, %v877
  %v5536 = vand.u32 %v5535, 8388607
  %v5537 = vor.u32 %v5536, 8388608
  %v5538 = vsub.s32 0, %v5537
  %v5539 = vadd.s32 %v5534, 1
  %vm5540 = vcmp.gt.s32.totalorder %v5539, 0
  %v5541 = vsel %vm5540, %v5539, 0
  %v5542 = vshrl.u32 %v5541, 5
  %v5543 = vand.u32 %v5541, 31
  %v5544 = vsub.s32 32, %v5543
  %v5545 = vshrl.u32 683565275, %v5544
  %v5546 = vshll.u32 683565275, %v5543
  %v5547 = vshrl.u32 2475754826, %v5544
  %v5548 = vor.u32 %v5546, %v5547
  %v5549 = vshll.u32 2475754826, %v5543
  %v5550 = vshrl.u32 2131351028, %v5544
  %v5551 = vor.u32 %v5549, %v5550
  %v5552 = vshll.u32 2131351028, %v5543
  %v5553 = vshrl.u32 2102212464, %v5544
  %v5554 = vor.u32 %v5552, %v5553
  %v5555 = vshll.u32 2102212464, %v5543
  %v5556 = vshrl.u32 920167782, %v5544
  %v5557 = vor.u32 %v5555, %v5556
  %v5558 = vshll.u32 920167782, %v5543
  %v5559 = vshrl.u32 1326507024, %v5544
  %v5560 = vor.u32 %v5558, %v5559
  %vm5561 = vcmp.lt.s32.totalorder %v5542, 1
  %vm5562 = vcmp.lt.s32.totalorder %v5542, 2
  %vm5563 = vcmp.lt.s32.totalorder %v5542, 3
  %vm5564 = vcmp.lt.s32.totalorder %v5542, 4
  %v5565 = vsel %vm5561, %v5545, %v5548
  %v5566 = vsel %vm5564, %v5554, 2102212464
  %v5567 = vsel %vm5563, %v5551, %v5566
  %v5568 = vsel %vm5562, %v5565, %v5567
  %v5569 = vsel %vm5561, %v5548, %v5551
  %v5570 = vsel %vm5564, %v5557, 920167782
  %v5571 = vsel %vm5563, %v5554, %v5570
  %v5572 = vsel %vm5562, %v5569, %v5571
  %v5573 = vsel %vm5561, %v5551, %v5554
  %v5574 = vsel %vm5564, %v5560, 1326507024
  %v5575 = vsel %vm5563, %v5557, %v5574
  %v5576 = vsel %vm5562, %v5573, %v5575
  %v5577 = vshll.u32 %v5537, 8
  %v5578 = vand.u32 %v5577, 65535
  %v5579 = vshrl.u32 %v5577, 16
  %v5580 = vand.u32 %v5576, 65535
  %v5581 = vshrl.u32 %v5576, 16
  %v5582 = vmul.u32 %v5578, %v5580
  %v5583 = vmul.u32 %v5578, %v5581
  %v5584 = vmul.u32 %v5579, %v5580
  %v5585 = vmul.u32 %v5579, %v5581
  %v5586 = vshll.u32 %v5583, 16
  %v5587 = vshrl.u32 %v5583, 16
  %v5588 = vshll.u32 %v5584, 16
  %v5589 = vshrl.u32 %v5584, 16
  %vm5590 = vc.u32 %v5582, %v5586
  %v5591 = vsel %vm5590, 1, 0
  %v5592 = vadd.s32 %v5582, %v5586
  %v5593 = vadd.s32 %v5585, %v5591
  %vm5594 = vc.u32 %v5592, %v5588
  %v5595 = vsel %vm5594, 1, 0
  %v5596 = vadd.s32 %v5592, %v5588
  %v5597 = vadd.s32 %v5593, %v5595
  %v5598 = vadd.s32 %v5597, %v5587
  %v5599 = vadd.s32 %v5598, %v5589
  %v5600 = vand.u32 %v5577, 65535
  %v5601 = vshrl.u32 %v5577, 16
  %v5602 = vand.u32 %v5572, 65535
  %v5603 = vshrl.u32 %v5572, 16
  %v5604 = vmul.u32 %v5600, %v5602
  %v5605 = vmul.u32 %v5600, %v5603
  %v5606 = vmul.u32 %v5601, %v5602
  %v5607 = vmul.u32 %v5601, %v5603
  %v5608 = vshll.u32 %v5605, 16
  %v5609 = vshrl.u32 %v5605, 16
  %v5610 = vshll.u32 %v5606, 16
  %v5611 = vshrl.u32 %v5606, 16
  %vm5612 = vc.u32 %v5604, %v5608
  %v5613 = vsel %vm5612, 1, 0
  %v5614 = vadd.s32 %v5604, %v5608
  %v5615 = vadd.s32 %v5607, %v5613
  %vm5616 = vc.u32 %v5614, %v5610
  %v5617 = vsel %vm5616, 1, 0
  %v5618 = vadd.s32 %v5614, %v5610
  %v5619 = vadd.s32 %v5615, %v5617
  %v5620 = vadd.s32 %v5619, %v5609
  %v5621 = vadd.s32 %v5620, %v5611
  %v5622 = vmul.u32 %v5577, %v5568
  %v5623 = vadd.s32 %v5599, %v5618
  %vm5624 = vc.u32 %v5599, %v5618
  %v5625 = vadd.s32 %v5621, 1
  %v5626 = vsel %vm5624, %v5625, %v5621
  %v5627 = vadd.s32 %v5622, %v5626
  %v5628 = vadd.s32 %v5627, 536870912
  %v5629 = vshrl.u32 %v5628, 30
  %v5630 = vshll.u32 %v5629, 30
  %v5631 = vsub.s32 %v5627, %v5630
  %vm5632 = vcmp.lt.s32.totalorder %v5631, 0
  %v5633 = vsub.s32 0, %v5631
  %v5634 = vsel %vm5632, %v5633, %v5631
  %v5635 = vclz %v5634
  %v5636 = vsub.s32 %v5635, 2
  %vm5637 = vcmp.gt.s32.totalorder 0, %v5636
  %v5638 = vsel %vm5637, 0, %v5636
  %v5639 = vsub.s32 32, %v5638
  %v5640 = vshll.u32 %v5631, %v5638
  %v5641 = vshrl.u32 %v5623, %v5639
  %v5642 = vor.u32 %v5640, %v5641
  %v5643 = vsub.s32 4294967266, %v5638
  %v5644 = vadd.s32 %v5643, 127
  %v5645 = vshll.u32 %v5644, 23
  %v5646 = vor.u32 4788187, %v5645
  %v5647 = vand.u32 2147483647, %v5646
  %v5649 = vcvt.s32.f32 %v5642
  %v5650 = vmul.f32 %v5649, %v5647
  %v5651 = vxor.u32 %v5650, 2147483648
  %v5652 = vsel %vm5531, %v5651, %v5650
  %v5653 = vsub.s32 4, %v5629
  %v5654 = vsel %vm5531, %v5653, %v5629
  %v5655 = vsel %vm5530, %v877, %v5652
  %v5656 = vsel %vm5530, 0, %v5654
  %v5657 = vmul.f32 %v5655, %v5655
  %v5658 = vmul.f32 %v5657, -0.001358992
  %v5659 = vadd.f32 %v5658, 0.041655596
  %v5660 = vmul.f32 %v5657, %v5659
  %v5661 = vadd.f32 %v5660, -0.4999988
  %v5662 = vmul.f32 %v5657, %v5661
  %v5663 = vadd.f32 1.0, %v5662
  %v5664 = vmul.f32 %v5655, %v5655
  %v5665 = vmul.f32 %v5664, -0.00019511016
  %v5666 = vadd.f32 %v5665, 0.008332121
  %v5667 = vmul.f32 %v5664, %v5666
  %v5668 = vadd.f32 %v5667, -0.16666654
  %v5669 = vmul.f32 %v5664, %v5668
  %v5670 = vadd.f32 %v5669, 1.0
  %v5671 = vmul.f32 %v5670, %v5655
  %vm5672 = vweird.f32 %v877
  %v5673 = vadd.s32 %v5656, 3
  %v5674 = vand.u32 %v5673, 3
  %vm5675 = vcmp.lt.s32.totalorder %v5674, 2
  %vm5676 = vcmp.eq.s32.totalorder %v5674, 0
  %v5677 = vxor.u32 %v5671, 2147483648
  %v5678 = vsel %vm5676, %v5663, %v5677
  %vm5679 = vcmp.eq.s32.totalorder %v5674, 2
  %v5680 = vxor.u32 %v5663, 2147483648
  %v5681 = vsel %vm5679, %v5680, %v5671
  %v5682 = vsel %vm5675, %v5678, %v5681
  %v5683 = vsel %vm5672, nan, %v5682
  %v5684 = vand.u32 2147483647, %v878
  %vm5685 = vcmp.le.f32.partialorder %v5684, 0.7853982
  %vm5686 = vcmp.lt.s32.totalorder %v878, 0
  %v5687 = vand.u32 %v878, 2139095040
  %v5688 = vshrl.u32 %v5687, 23
  %v5689 = vsub.s32 %v5688, 127
  %v5690 = vand.u32 2147483647, %v878
  %v5691 = vand.u32 %v5690, 8388607
  %v5692 = vor.u32 %v5691, 8388608
  %v5693 = vsub.s32 0, %v5692
  %v5694 = vadd.s32 %v5689, 1
  %vm5695 = vcmp.gt.s32.totalorder %v5694, 0
  %v5696 = vsel %vm5695, %v5694, 0
  %v5697 = vshrl.u32 %v5696, 5
  %v5698 = vand.u32 %v5696, 31
  %v5699 = vsub.s32 32, %v5698
  %v5700 = vshrl.u32 683565275, %v5699
  %v5701 = vshll.u32 683565275, %v5698
  %v5702 = vshrl.u32 2475754826, %v5699
  %v5703 = vor.u32 %v5701, %v5702
  %v5704 = vshll.u32 2475754826, %v5698
  %v5705 = vshrl.u32 2131351028, %v5699
  %v5706 = vor.u32 %v5704, %v5705
  %v5707 = vshll.u32 2131351028, %v5698
  %v5708 = vshrl.u32 2102212464, %v5699
  %v5709 = vor.u32 %v5707, %v5708
  %v5710 = vshll.u32 2102212464, %v5698
  %v5711 = vshrl.u32 920167782, %v5699
  %v5712 = vor.u32 %v5710, %v5711
  %v5713 = vshll.u32 920167782, %v5698
  %v5714 = vshrl.u32 1326507024, %v5699
  %v5715 = vor.u32 %v5713, %v5714
  %vm5716 = vcmp.lt.s32.totalorder %v5697, 1
  %vm5717 = vcmp.lt.s32.totalorder %v5697, 2
  %vm5718 = vcmp.lt.s32.totalorder %v5697, 3
  %vm5719 = vcmp.lt.s32.totalorder %v5697, 4
  %v5720 = vsel %vm5716, %v5700, %v5703
  %v5721 = vsel %vm5719, %v5709, 2102212464
  %v5722 = vsel %vm5718, %v5706, %v5721
  %v5723 = vsel %vm5717, %v5720, %v5722
  %v5724 = vsel %vm5716, %v5703, %v5706
  %v5725 = vsel %vm5719, %v5712, 920167782
  %v5726 = vsel %vm5718, %v5709, %v5725
  %v5727 = vsel %vm5717, %v5724, %v5726
  %v5728 = vsel %vm5716, %v5706, %v5709
  %v5729 = vsel %vm5719, %v5715, 1326507024
  %v5730 = vsel %vm5718, %v5712, %v5729
  %v5731 = vsel %vm5717, %v5728, %v5730
  %v5732 = vshll.u32 %v5692, 8
  %v5733 = vand.u32 %v5732, 65535
  %v5734 = vshrl.u32 %v5732, 16
  %v5735 = vand.u32 %v5731, 65535
  %v5736 = vshrl.u32 %v5731, 16
  %v5737 = vmul.u32 %v5733, %v5735
  %v5738 = vmul.u32 %v5733, %v5736
  %v5739 = vmul.u32 %v5734, %v5735
  %v5740 = vmul.u32 %v5734, %v5736
  %v5741 = vshll.u32 %v5738, 16
  %v5742 = vshrl.u32 %v5738, 16
  %v5743 = vshll.u32 %v5739, 16
  %v5744 = vshrl.u32 %v5739, 16
  %vm5745 = vc.u32 %v5737, %v5741
  %v5746 = vsel %vm5745, 1, 0
  %v5747 = vadd.s32 %v5737, %v5741
  %v5748 = vadd.s32 %v5740, %v5746
  %vm5749 = vc.u32 %v5747, %v5743
  %v5750 = vsel %vm5749, 1, 0
  %v5751 = vadd.s32 %v5747, %v5743
  %v5752 = vadd.s32 %v5748, %v5750
  %v5753 = vadd.s32 %v5752, %v5742
  %v5754 = vadd.s32 %v5753, %v5744
  %v5755 = vand.u32 %v5732, 65535
  %v5756 = vshrl.u32 %v5732, 16
  %v5757 = vand.u32 %v5727, 65535
  %v5758 = vshrl.u32 %v5727, 16
  %v5759 = vmul.u32 %v5755, %v5757
  %v5760 = vmul.u32 %v5755, %v5758
  %v5761 = vmul.u32 %v5756, %v5757
  %v5762 = vmul.u32 %v5756, %v5758
  %v5763 = vshll.u32 %v5760, 16
  %v5764 = vshrl.u32 %v5760, 16
  %v5765 = vshll.u32 %v5761, 16
  %v5766 = vshrl.u32 %v5761, 16
  %vm5767 = vc.u32 %v5759, %v5763
  %v5768 = vsel %vm5767, 1, 0
  %v5769 = vadd.s32 %v5759, %v5763
  %v5770 = vadd.s32 %v5762, %v5768
  %vm5771 = vc.u32 %v5769, %v5765
  %v5772 = vsel %vm5771, 1, 0
  %v5773 = vadd.s32 %v5769, %v5765
  %v5774 = vadd.s32 %v5770, %v5772
  %v5775 = vadd.s32 %v5774, %v5764
  %v5776 = vadd.s32 %v5775, %v5766
  %v5777 = vmul.u32 %v5732, %v5723
  %v5778 = vadd.s32 %v5754, %v5773
  %vm5779 = vc.u32 %v5754, %v5773
  %v5780 = vadd.s32 %v5776, 1
  %v5781 = vsel %vm5779, %v5780, %v5776
  %v5782 = vadd.s32 %v5777, %v5781
  %v5783 = vadd.s32 %v5782, 536870912
  %v5784 = vshrl.u32 %v5783, 30
  %v5785 = vshll.u32 %v5784, 30
  %v5786 = vsub.s32 %v5782, %v5785
  %vm5787 = vcmp.lt.s32.totalorder %v5786, 0
  %v5788 = vsub.s32 0, %v5786
  %v5789 = vsel %vm5787, %v5788, %v5786
  %v5790 = vclz %v5789
  %v5791 = vsub.s32 %v5790, 2
  %vm5792 = vcmp.gt.s32.totalorder 0, %v5791
  %v5793 = vsel %vm5792, 0, %v5791
  %v5794 = vsub.s32 32, %v5793
  %v5795 = vshll.u32 %v5786, %v5793
  %v5796 = vshrl.u32 %v5778, %v5794
  %v5797 = vor.u32 %v5795, %v5796
  %v5798 = vsub.s32 4294967266, %v5793
  %v5799 = vadd.s32 %v5798, 127
  %v5800 = vshll.u32 %v5799, 23
  %v5801 = vor.u32 4788187, %v5800
  %v5802 = vand.u32 2147483647, %v5801
  %v5804 = vcvt.s32.f32 %v5797
  %v5805 = vmul.f32 %v5804, %v5802
  %v5806 = vxor.u32 %v5805, 2147483648
  %v5807 = vsel %vm5686, %v5806, %v5805
  %v5808 = vsub.s32 4, %v5784
  %v5809 = vsel %vm5686, %v5808, %v5784
  %v5810 = vsel %vm5685, %v878, %v5807
  %v5811 = vsel %vm5685, 0, %v5809
  %v5812 = vmul.f32 %v5810, %v5810
  %v5813 = vmul.f32 %v5812, -0.001358992
  %v5814 = vadd.f32 %v5813, 0.041655596
  %v5815 = vmul.f32 %v5812, %v5814
  %v5816 = vadd.f32 %v5815, -0.4999988
  %v5817 = vmul.f32 %v5812, %v5816
  %v5818 = vadd.f32 1.0, %v5817
  %v5819 = vmul.f32 %v5810, %v5810
  %v5820 = vmul.f32 %v5819, -0.00019511016
  %v5821 = vadd.f32 %v5820, 0.008332121
  %v5822 = vmul.f32 %v5819, %v5821
  %v5823 = vadd.f32 %v5822, -0.16666654
  %v5824 = vmul.f32 %v5819, %v5823
  %v5825 = vadd.f32 %v5824, 1.0
  %v5826 = vmul.f32 %v5825, %v5810
  %vm5827 = vweird.f32 %v878
  %v5828 = vadd.s32 %v5811, 3
  %v5829 = vand.u32 %v5828, 3
  %vm5830 = vcmp.lt.s32.totalorder %v5829, 2
  %vm5831 = vcmp.eq.s32.totalorder %v5829, 0
  %v5832 = vxor.u32 %v5826, 2147483648
  %v5833 = vsel %vm5831, %v5818, %v5832
  %vm5834 = vcmp.eq.s32.totalorder %v5829, 2
  %v5835 = vxor.u32 %v5818, 2147483648
  %v5836 = vsel %vm5834, %v5835, %v5826
  %v5837 = vsel %vm5830, %v5833, %v5836
  %v5838 = vsel %vm5827, nan, %v5837
  %v5839 = vadd.f32 %v1033, %v3513
  %v5840 = vadd.f32 %v1188, %v3668
  %v5841 = vadd.f32 %v1343, %v3823
  %v5842 = vadd.f32 %v1498, %v3978
  %v5843 = vadd.f32 %v1653, %v4133
  %v5844 = vadd.f32 %v1808, %v4288
  %v5845 = vadd.f32 %v1963, %v4443
  %v5846 = vadd.f32 %v2118, %v4598
  %v5847 = vadd.f32 %v2273, %v4753
  %v5848 = vadd.f32 %v2428, %v4908
  %v5849 = vadd.f32 %v2583, %v5063
  %v5850 = vadd.f32 %v2738, %v5218
  %v5851 = vadd.f32 %v2893, %v5373
  %v5852 = vadd.f32 %v3048, %v5528
  %v5853 = vadd.f32 %v3203, %v5683
  %v5854 = vadd.f32 %v3358, %v5838
  %s5855 = sld [smem:[#allocation2]]
  %v5856 = vld [vmem:[%s6] sm:$0xff]
  %v5857 = vld [vmem:[%s6 + $0x8] sm:$0xff]
  %v5858 = vld [vmem:[%s6 + $0x10] sm:$0xff]
  %v5859 = vld [vmem:[%s6 + $0x18] sm:$0xff]
  %v5860 = vld [vmem:[%s6 + $0x20] sm:$0xff]
  %v5861 = vld [vmem:[%s6 + $0x28] sm:$0xff]
  %v5862 = vld [vmem:[%s6 + $0x30] sm:$0xff]
  %v5863 = vld [vmem:[%s6 + $0x38] sm:$0xff]
  %v5864 = vld [vmem:[%s6 + $0x40] sm:$0xff]
  %v5865 = vld [vmem:[%s6 + $0x48] sm:$0xff]
  %v5866 = vld [vmem:[%s6 + $0x50] sm:$0xff]
  %v5867 = vld [vmem:[%s6 + $0x58] sm:$0xff]
  %v5868 = vld [vmem:[%s6 + $0x60] sm:$0xff]
  %v5869 = vld [vmem:[%s6 + $0x68] sm:$0xff]
  %v5870 = vld [vmem:[%s6 + $0x70] sm:$0xff]
  %v5871 = vld [vmem:[%s6 + $0x78] sm:$0xff]
  %v5872 = vstv %s5855
  %v5873 = vmul.f32 %v5839, %v5872
  %v5874 = vmul.f32 %v5840, %v5872
  %v5875 = vmul.f32 %v5841, %v5872
  %v5876 = vmul.f32 %v5842, %v5872
  %v5877 = vmul.f32 %v5843, %v5872
  %v5878 = vmul.f32 %v5844, %v5872
  %v5879 = vmul.f32 %v5845, %v5872
  %v5880 = vmul.f32 %v5846, %v5872
  %v5881 = vmul.f32 %v5847, %v5872
  %v5882 = vmul.f32 %v5848, %v5872
  %v5883 = vmul.f32 %v5849, %v5872
  %v5884 = vmul.f32 %v5850, %v5872
  %v5885 = vmul.f32 %v5851, %v5872
  %v5886 = vmul.f32 %v5852, %v5872
  %v5887 = vmul.f32 %v5853, %v5872
  %v5888 = vmul.f32 %v5854, %v5872
  %v5889 = vadd.f32 %v5856, %v5873
  %v5890 = vadd.f32 %v5857, %v5874
  %v5891 = vadd.f32 %v5858, %v5875
  %v5892 = vadd.f32 %v5859, %v5876
  %v5893 = vadd.f32 %v5860, %v5877
  %v5894 = vadd.f32 %v5861, %v5878
  %v5895 = vadd.f32 %v5862, %v5879
  %v5896 = vadd.f32 %v5863, %v5880
  %v5897 = vadd.f32 %v5864, %v5881
  %v5898 = vadd.f32 %v5865, %v5882
  %v5899 = vadd.f32 %v5866, %v5883
  %v5900 = vadd.f32 %v5867, %v5884
  %v5901 = vadd.f32 %v5868, %v5885
  %v5902 = vadd.f32 %v5869, %v5886
  %v5903 = vadd.f32 %v5870, %v5887
  %v5904 = vadd.f32 %v5871, %v5888
  %5905 = vst [vmem:[%s7] sm:$0xff] %v5889
  %5906 = vst [vmem:[%s7 + $0x8] sm:$0xff] %v5890
  %5907 = vst [vmem:[%s7 + $0x10] sm:$0xff] %v5891
  %5908 = vst [vmem:[%s7 + $0x18] sm:$0xff] %v5892
  %5909 = vst [vmem:[%s7 + $0x20] sm:$0xff] %v5893
  %5910 = vst [vmem:[%s7 + $0x28] sm:$0xff] %v5894
  %5911 = vst [vmem:[%s7 + $0x30] sm:$0xff] %v5895
  %5912 = vst [vmem:[%s7 + $0x38] sm:$0xff] %v5896
  %5913 = vst [vmem:[%s7 + $0x40] sm:$0xff] %v5897
  %5914 = vst [vmem:[%s7 + $0x48] sm:$0xff] %v5898
  %5915 = vst [vmem:[%s7 + $0x50] sm:$0xff] %v5899
  %5916 = vst [vmem:[%s7 + $0x58] sm:$0xff] %v5900
  %5917 = vst [vmem:[%s7 + $0x60] sm:$0xff] %v5901
  %5918 = vst [vmem:[%s7 + $0x68] sm:$0xff] %v5902
  %5919 = vst [vmem:[%s7 + $0x70] sm:$0xff] %v5903
  %5920 = vst [vmem:[%s7 + $0x78] sm:$0xff] %v5904
  // Predicated region
  $region30: #{geolocational_encoding.1} parent=0 // pred_check
    _
  $region31: #{geolocational_encoding.1} parent=0 // pred_check_branch
    %5922 = sbr.rel (0) target = $region33
  $region32: #{geolocational_encoding.1} parent=0 // pred_region
    _
  $region33: #{geolocational_encoding.1} parent=0 // pred_fallthru
    _
  // Predicated region
  $region34: #{geolocational_encoding.1} parent=0 // pred_check
    _
  $region35: #{geolocational_encoding.1} parent=0 // pred_check_branch
    %5924 = sbr.rel (0) target = $region37
  $region36: #{geolocational_encoding.1} parent=0 // pred_region
    _
  $region37: #{geolocational_encoding.1} parent=0 // pred_fallthru
    _

</llo_original>
